<compile_context>
chip_gen: v6e
topology: v6e:2x2x1
jax: 0.10.0
libtpu: 0.0.40
codegen_flags: <defaults>
</compile_context>

<pallas_src>
import functools
import math

import jax
import jax.numpy as jnp
from jax.experimental import pallas as pl
from jax.experimental.pallas import tpu as pltpu


# ----------------------------- config ---------------------------------------
CFG = dict(
    vocab_size=128,
    hidden_size=32,
    num_layers=2,
    num_heads=4,
    intermediate_size=64,
    max_position=64,
    type_vocab_size=2,
    layer_norm_eps=1e-12,
)


# ----------------------------- fused kernel ----------------------------------
def mlm_forward_kernel(
    we_ref, pe_ref, te_ref, mask_ref,
    emb_g_ref, emb_b_ref,
    wqkv_ref, bqkv_ref, wo_ref, bo_ref, ln1_g_ref, ln1_b_ref,
    wi_ref, bi_ref, wo2_ref, bo2_ref, ln2_g_ref, ln2_b_ref,
    tw_res_ref, tw_seq_ref, tb_ref,
    pdw_ref, pdb_ref, pg_ref, pb_ref, dw_ref, db_ref,
    out_ref,
    *, num_layers, num_heads, head_dim, eps, bt, seq_len,
):
    f32 = jnp.float32
    bf16 = jnp.bfloat16
    hidden = we_ref.shape[-1]
    vocab = db_ref.shape[-1]
    m_rows = bt * seq_len
    scale = 1.0 / math.sqrt(head_dim)

    def mm(a, w):
        # Activation cast to bf16 for the MXU; weights are already bf16 at rest.
        return jnp.dot(a.astype(bf16), w, preferred_element_type=f32)

    def layer_norm(x, g, b):
        # statistics kept in f32
        mu = jnp.mean(x, axis=-1, keepdims=True)
        xc = x - mu
        var = jnp.mean(xc * xc, axis=-1, keepdims=True)
        return xc * jax.lax.rsqrt(var + eps) * g + b

    def gelu(x):
        # TODO(synk): HF BERT "gelu" is the exact erf form; tanh approximation used
        # here (== HF "gelu_new") because erf lowering is not guaranteed in Mosaic.
        return 0.5 * x * (1.0 + jnp.tanh(0.7978845608028654 * (x + 0.044715 * x * x * x)))

    # ---- embeddings: word + position + token-type, then LayerNorm (f32) ----
    emb_sum = (we_ref[...].astype(f32) + te_ref[...].astype(f32)
               + pe_ref[...].astype(f32)[None, :, :])                 # (bt, S, H)
    emb = layer_norm(emb_sum.reshape(m_rows, hidden),
                     emb_g_ref[...], emb_b_ref[...])                  # (M, H)
    # TODO(synk): embedding / hidden / head dropouts are identity (inference mode).

    # Hoisted additive-mask broadcast: (bt,1,S) -> (bt,S,S), once, in f32.
    mask_b = jnp.broadcast_to(mask_ref[...], (bt, seq_len, seq_len))

    # ---- encoder layers, fully fused ----
    x = emb                                                           # (M, H) f32
    # TODO(synk): at real BERT dims (H=768, L=12) stream per-layer weights via a
    # layer grid axis / pltpu.emit_pipeline and switch to lax.fori_loop; fully
    # resident weights + static unroll are right only at these small shapes.
    for layer in range(num_layers):
        # fused QKV projection: single (H, 3H) matmul over the fat M = bt*S rows
        qkv = mm(x, wqkv_ref[layer]) + bqkv_ref[layer]                # (M, 3H) f32
        qkv3 = qkv.reshape(bt, seq_len, 3 * hidden)
        wo_l = wo_ref[layer]                                          # (H, H) bf16

        # Per-head attention, batched over the bt sequences of this block; the
        # out-projection is folded into a per-head accumulation (no lane concat).
        attn = jnp.zeros((m_rows, hidden), f32)
        for h in range(num_heads):
            lo = h * head_dim
            hi = lo + head_dim
            q = (qkv3[:, :, lo:hi] * scale).astype(bf16)              # (bt, S, dh)
            k = qkv3[:, :, hidden + lo:hidden + hi].astype(bf16)
            v = qkv3[:, :, 2 * hidden + lo:2 * hidden + hi].astype(bf16)
            s = jnp.einsum('bqd,bkd->bqk', q, k,
                           preferred_element_type=f32)                # (bt, S, S)
            s = s + mask_b
            s = s - jnp.max(s, axis=-1, keepdims=True)
            p = jnp.exp(s)
            p = p * pl.reciprocal(jnp.sum(p, axis=-1, keepdims=True), approx=True)
            ctx = jnp.einsum('bqk,bkd->bqd', p.astype(bf16), v,
                             preferred_element_type=f32)              # (bt, S, dh)
            attn = attn + mm(ctx.reshape(m_rows, head_dim), wo_l[lo:hi, :])
        attn = attn + bo_ref[layer]

        # residual + LayerNorm
        x = layer_norm(attn + x, ln1_g_ref[layer], ln1_b_ref[layer])

        # FFN (intermediate never leaves VMEM) + residual + LayerNorm
        inter = gelu(mm(x, wi_ref[layer]) + bi_ref[layer])            # (M, I)
        ffn = mm(inter, wo2_ref[layer]) + bo2_ref[layer]
        x = layer_norm(ffn + x, ln2_g_ref[layer], ln2_b_ref[layer])

    # ---- res_mode: Linear(cat(x - emb, x)) as two dots (no lane concat) ----
    x = mm(x - emb, tw_res_ref[...]) + mm(x, tw_seq_ref[...]) + tb_ref[...]

    # ---- BertOnlyMLMHead: dense + gelu -> LayerNorm -> decoder(+bias) ----
    h1 = gelu(mm(x, pdw_ref[...]) + pdb_ref[...])
    h1 = layer_norm(h1, pg_ref[...], pb_ref[...])
    logits = mm(h1, dw_ref[...]) + db_ref[...]                        # (M, V=128) lane-dense
    out_ref[...] = logits.reshape(bt, seq_len, vocab).astype(out_ref.dtype)


# ----------------------------- parameters ------------------------------------
def init_params(key, cfg):
    H = cfg["hidden_size"]
    I = cfg["intermediate_size"]
    V = cfg["vocab_size"]
    L = cfg["num_layers"]
    bf16 = jnp.bfloat16

    def nrm(k, shape, dtype=jnp.float32):
        return (jax.random.normal(k, shape, jnp.float32) * 0.02).astype(dtype)

    ks = iter(jax.random.split(key, 16))
    return dict(
        # embedding tables stay f32 (summed + LayerNorm'd in f32)
        word_emb=nrm(next(ks), (V, H)),
        pos_emb=nrm(next(ks), (cfg["max_position"], H)),
        tok_emb=nrm(next(ks), (cfg["type_vocab_size"], H)),
        emb_ln_g=jnp.ones((1, H), jnp.float32),
        emb_ln_b=jnp.zeros((1, H), jnp.float32),
        # per-layer weights stacked on a leading layer axis; Linear weights are
        # (in, out) (transposed vs torch), QKV concatenated on the output axis,
        # matmul weights bf16 at rest (cast once here, never per-use in-kernel).
        wqkv=nrm(next(ks), (L, H, 3 * H), bf16),
        bqkv=jnp.zeros((L, 1, 3 * H), jnp.float32),
        wo=nrm(next(ks), (L, H, H), bf16),
        bo=jnp.zeros((L, 1, H), jnp.float32),
        ln1_g=jnp.ones((L, 1, H), jnp.float32),
        ln1_b=jnp.zeros((L, 1, H), jnp.float32),
        wi=nrm(next(ks), (L, H, I), bf16),
        bi=jnp.zeros((L, 1, I), jnp.float32),
        wo2=nrm(next(ks), (L, I, H), bf16),
        bo2=jnp.zeros((L, 1, H), jnp.float32),
        ln2_g=jnp.ones((L, 1, H), jnp.float32),
        ln2_b=jnp.zeros((L, 1, H), jnp.float32),
        # res_mode transform Linear(2H -> H) stored as two (H, H) halves so the
        # kernel does two dots instead of a (S, 2H) lane concatenation.
        transform_w_res=nrm(next(ks), (H, H), bf16),
        transform_w_seq=nrm(next(ks), (H, H), bf16),
        transform_b=jnp.zeros((1, H), jnp.float32),
        # BertOnlyMLMHead (classifier is separate from base_model in the torch
        # module, so its decoder weight is intentionally NOT tied to word_emb).
        pred_dense_w=nrm(next(ks), (H, H), bf16),
        pred_dense_b=jnp.zeros((1, H), jnp.float32),
        pred_ln_g=jnp.ones((1, H), jnp.float32),
        pred_ln_b=jnp.zeros((1, H), jnp.float32),
        decoder_w=nrm(next(ks), (H, V), bf16),
        decoder_b=jnp.zeros((1, V), jnp.float32),
    )


# ----------------------------- forward ---------------------------------------
def masked_lm_forward(params, input_ids, attention_mask=None, token_type_ids=None,
                      cfg=CFG):
    B, S = input_ids.shape
    H = cfg["hidden_size"]
    nH = cfg["num_heads"]
    dh = H // nH
    V = cfg["vocab_size"]
    L = cfg["num_layers"]
    I = cfg["intermediate_size"]
    eps = cfg["layer_norm_eps"]

    if attention_mask is None:
        attention_mask = jnp.ones((B, S), jnp.float32)
    if token_type_ids is None:
        token_type_ids = jnp.zeros((B, S), jnp.int32)

    # Glue: embedding gathers stay in JAX (no cheap Pallas gather at this scale).
    we = params["word_emb"][input_ids]            # (B, S, H)
    pe = params["pos_emb"][:S]                    # (S, H) — grid-invariant
    te = params["tok_emb"][token_type_ids]        # (B, S, H)
    # (B, 1, S) additive row mask; the (S, S) broadcast is hoisted in-kernel.
    add_mask = ((1.0 - attention_mask.astype(jnp.float32)) * -10000.0)[:, None, :]

    # Batch tile: stack bt sequences per program to fatten the matmul M dimension
    # (bt*S rows), while keeping the grid >= 2 programs so both v7x TCs get work.
    bt_cap = max(1, 256 // S)
    bt = 1
    for cand in range(min(bt_cap, max(1, B // 2)), 0, -1):
        if B % cand == 0:
            bt = cand
            break
    grid = (B // bt,)

    def per_batch(a):
        blk = (bt,) + tuple(a.shape[1:])
        zeros = (0,) * (a.ndim - 1)
        return pl.BlockSpec(blk, lambda b, _z=zeros: (b,) + _z)

    def whole(a):
        # Grid-invariant block (weights, pe, LN params): same index every program.
        # TODO(synk): add pipeline_mode=pl.Buffered(1) to single-buffer these once
        # verified on the deployed jax version (bf16-at-rest already halves them).
        idx = (0,) * a.ndim
        return pl.BlockSpec(tuple(a.shape), lambda b, _i=idx: _i)

    arrays = [
        we, pe, te, add_mask,
        params["emb_ln_g"], params["emb_ln_b"],
        params["wqkv"], params["bqkv"], params["wo"], params["bo"],
        params["ln1_g"], params["ln1_b"],
        params["wi"], params["bi"], params["wo2"], params["bo2"],
        params["ln2_g"], params["ln2_b"],
        params["transform_w_res"], params["transform_w_seq"], params["transform_b"],
        params["pred_dense_w"], params["pred_dense_b"],
        params["pred_ln_g"], params["pred_ln_b"],
        params["decoder_w"], params["decoder_b"],
    ]
    in_specs = [per_batch(we), whole(pe), per_batch(te), per_batch(add_mask)]
    in_specs += [whole(a) for a in arrays[4:]]

    # Advisory cost estimate so XLA schedules sensibly around the fused call.
    M_total = B * S
    flops = 2 * M_total * H * (3 * H) * L                 # QKV
    flops += 2 * B * nH * S * S * dh * 2 * L              # scores + PV
    flops += 2 * M_total * H * H * L                      # out-proj (folded per head)
    flops += 2 * M_total * H * I * 2 * L                  # FFN
    flops += 2 * M_total * H * H * 2                      # res transform (two dots)
    flops += 2 * M_total * H * H                          # pred dense
    flops += 2 * M_total * H * V                          # decoder
    transcendentals = L * B * nH * S * S + L * M_total * I + M_total * H
    bytes_accessed = sum(int(a.size) * a.dtype.itemsize for a in arrays) + M_total * V * 4
    cost = pl.CostEstimate(flops=int(flops),
                           transcendentals=int(transcendentals),
                           bytes_accessed=int(bytes_accessed))

    # TODO(synk): torch.cuda.amp.autocast (fp16) approximated with bf16 MXU operands.
    logits = pl.pallas_call(
        functools.partial(mlm_forward_kernel, num_layers=L, num_heads=nH,
                          head_dim=dh, eps=eps, bt=bt, seq_len=S),
        out_shape=jax.ShapeDtypeStruct((B, S, V), jnp.float32),
        grid=grid,
        in_specs=in_specs,
        out_specs=pl.BlockSpec((bt, S, V), lambda b: (b, 0, 0)),
        compiler_params=pltpu.CompilerParams(
            dimension_semantics=("parallel",),
            vmem_limit_bytes=32 * 1024 * 1024),
        cost_estimate=cost,
    )(*arrays)
    return logits


# ----------------------------- main ------------------------------------------
if __name__ == "__main__":
    key = jax.random.PRNGKey(0)
    pkey, dkey = jax.random.split(key)

    params = init_params(pkey, CFG)

    B, S = 2, 8
    input_ids = jax.random.randint(dkey, (B, S), 0, CFG["vocab_size"], dtype=jnp.int32)
    attention_mask = jnp.ones((B, S), jnp.float32)
    token_type_ids = jnp.zeros((B, S), jnp.int32)

    fwd = jax.jit(functools.partial(masked_lm_forward, cfg=CFG))
    logits = fwd(params, input_ids, attention_mask, token_type_ids)
    jax.block_until_ready(logits)

    assert logits.shape == (B, S, CFG["vocab_size"])
    assert bool(jnp.all(jnp.isfinite(logits)))
    print("KERNEL_OK")
</pallas_src>

<mosaic_0001>
module attributes {stable_mosaic.version = 11 : i64} {
  func.func @mlm_forward_kernel(%arg0: i32, %arg1: memref<1x8x32xf32, #tpu.memory_space<vmem>>, %arg2: memref<8x32xf32, #tpu.memory_space<vmem>>, %arg3: memref<1x8x32xf32, #tpu.memory_space<vmem>>, %arg4: memref<1x1x8xf32, #tpu.memory_space<vmem>>, %arg5: memref<1x32xf32, #tpu.memory_space<vmem>>, %arg6: memref<1x32xf32, #tpu.memory_space<vmem>>, %arg7: memref<2x32x96xbf16, #tpu.memory_space<vmem>>, %arg8: memref<2x1x96xf32, #tpu.memory_space<vmem>>, %arg9: memref<2x32x32xbf16, #tpu.memory_space<vmem>>, %arg10: memref<2x1x32xf32, #tpu.memory_space<vmem>>, %arg11: memref<2x1x32xf32, #tpu.memory_space<vmem>>, %arg12: memref<2x1x32xf32, #tpu.memory_space<vmem>>, %arg13: memref<2x32x64xbf16, #tpu.memory_space<vmem>>, %arg14: memref<2x1x64xf32, #tpu.memory_space<vmem>>, %arg15: memref<2x64x32xbf16, #tpu.memory_space<vmem>>, %arg16: memref<2x1x32xf32, #tpu.memory_space<vmem>>, %arg17: memref<2x1x32xf32, #tpu.memory_space<vmem>>, %arg18: memref<2x1x32xf32, #tpu.memory_space<vmem>>, %arg19: memref<32x32xbf16, #tpu.memory_space<vmem>>, %arg20: memref<32x32xbf16, #tpu.memory_space<vmem>>, %arg21: memref<1x32xf32, #tpu.memory_space<vmem>>, %arg22: memref<32x32xbf16, #tpu.memory_space<vmem>>, %arg23: memref<1x32xf32, #tpu.memory_space<vmem>>, %arg24: memref<1x32xf32, #tpu.memory_space<vmem>>, %arg25: memref<1x32xf32, #tpu.memory_space<vmem>>, %arg26: memref<32x128xbf16, #tpu.memory_space<vmem>>, %arg27: memref<1x128xf32, #tpu.memory_space<vmem>>, %arg28: memref<1x8x128xf32, #tpu.memory_space<vmem>>) attributes {dimension_semantics = [#tpu.dimension_semantics<parallel>], iteration_bounds = array<i64: 2>, scalar_prefetch = 0 : i64, scratch_operands = 0 : i64, tpu.core_type = #tpu.core_type<tc>, window_params = [{transform_indices = @transform_0, window_bounds = array<i64: 1, 8, 32>}, {pipeline_mode = #tpu.pipeline_mode<synchronous>, transform_indices = @transform_1, window_bounds = array<i64: 8, 32>}, {transform_indices = @transform_2, window_bounds = array<i64: 1, 8, 32>}, {transform_indices = @transform_3, window_bounds = array<i64: 1, 1, 8>}, {pipeline_mode = #tpu.pipeline_mode<synchronous>, transform_indices = @transform_4, window_bounds = array<i64: 1, 32>}, {pipeline_mode = #tpu.pipeline_mode<synchronous>, transform_indices = @transform_5, window_bounds = array<i64: 1, 32>}, {pipeline_mode = #tpu.pipeline_mode<synchronous>, transform_indices = @transform_6, window_bounds = array<i64: 2, 32, 96>}, {pipeline_mode = #tpu.pipeline_mode<synchronous>, transform_indices = @transform_7, window_bounds = array<i64: 2, 1, 96>}, {pipeline_mode = #tpu.pipeline_mode<synchronous>, transform_indices = @transform_8, window_bounds = array<i64: 2, 32, 32>}, {pipeline_mode = #tpu.pipeline_mode<synchronous>, transform_indices = @transform_9, window_bounds = array<i64: 2, 1, 32>}, {pipeline_mode = #tpu.pipeline_mode<synchronous>, transform_indices = @transform_10, window_bounds = array<i64: 2, 1, 32>}, {pipeline_mode = #tpu.pipeline_mode<synchronous>, transform_indices = @transform_11, window_bounds = array<i64: 2, 1, 32>}, {pipeline_mode = #tpu.pipeline_mode<synchronous>, transform_indices = @transform_12, window_bounds = array<i64: 2, 32, 64>}, {pipeline_mode = #tpu.pipeline_mode<synchronous>, transform_indices = @transform_13, window_bounds = array<i64: 2, 1, 64>}, {pipeline_mode = #tpu.pipeline_mode<synchronous>, transform_indices = @transform_14, window_bounds = array<i64: 2, 64, 32>}, {pipeline_mode = #tpu.pipeline_mode<synchronous>, transform_indices = @transform_15, window_bounds = array<i64: 2, 1, 32>}, {pipeline_mode = #tpu.pipeline_mode<synchronous>, transform_indices = @transform_16, window_bounds = array<i64: 2, 1, 32>}, {pipeline_mode = #tpu.pipeline_mode<synchronous>, transform_indices = @transform_17, window_bounds = array<i64: 2, 1, 32>}, {pipeline_mode = #tpu.pipeline_mode<synchronous>, transform_indices = @transform_18, window_bounds = array<i64: 32, 32>}, {pipeline_mode = #tpu.pipeline_mode<synchronous>, transform_indices = @transform_19, window_bounds = array<i64: 32, 32>}, {pipeline_mode = #tpu.pipeline_mode<synchronous>, transform_indices = @transform_20, window_bounds = array<i64: 1, 32>}, {pipeline_mode = #tpu.pipeline_mode<synchronous>, transform_indices = @transform_21, window_bounds = array<i64: 32, 32>}, {pipeline_mode = #tpu.pipeline_mode<synchronous>, transform_indices = @transform_22, window_bounds = array<i64: 1, 32>}, {pipeline_mode = #tpu.pipeline_mode<synchronous>, transform_indices = @transform_23, window_bounds = array<i64: 1, 32>}, {pipeline_mode = #tpu.pipeline_mode<synchronous>, transform_indices = @transform_24, window_bounds = array<i64: 1, 32>}, {pipeline_mode = #tpu.pipeline_mode<synchronous>, transform_indices = @transform_25, window_bounds = array<i64: 32, 128>}, {pipeline_mode = #tpu.pipeline_mode<synchronous>, transform_indices = @transform_26, window_bounds = array<i64: 1, 128>}, {transform_indices = @transform_27, window_bounds = array<i64: 1, 8, 128>}]} {
    %c0 = arith.constant 0 : index
    %c0_0 = arith.constant 0 : index
    %c0_1 = arith.constant 0 : index
    %0 = vector.load %arg1[%c0, %c0_0, %c0_1] : memref<1x8x32xf32, #tpu.memory_space<vmem>>, vector<1x8x32xf32>
    %c0_2 = arith.constant 0 : index
    %c0_3 = arith.constant 0 : index
    %c0_4 = arith.constant 0 : index
    %1 = vector.load %arg3[%c0_2, %c0_3, %c0_4] : memref<1x8x32xf32, #tpu.memory_space<vmem>>, vector<1x8x32xf32>
    %2 = arith.addf %0, %1 : vector<1x8x32xf32>
    %c0_5 = arith.constant 0 : index
    %c0_6 = arith.constant 0 : index
    %3 = vector.load %arg2[%c0_5, %c0_6] : memref<8x32xf32, #tpu.memory_space<vmem>>, vector<8x32xf32>
    %4 = vector.shape_cast %3 : vector<8x32xf32> to vector<1x8x32xf32>
    %5 = arith.addf %2, %4 : vector<1x8x32xf32>
    %6 = vector.shape_cast %5 : vector<1x8x32xf32> to vector<8x32xf32>
    %c0_7 = arith.constant 0 : index
    %c0_8 = arith.constant 0 : index
    %7 = vector.load %arg5[%c0_7, %c0_8] : memref<1x32xf32, #tpu.memory_space<vmem>>, vector<1x32xf32>
    %c0_9 = arith.constant 0 : index
    %c0_10 = arith.constant 0 : index
    %8 = vector.load %arg6[%c0_9, %c0_10] : memref<1x32xf32, #tpu.memory_space<vmem>>, vector<1x32xf32>
    %cst = arith.constant dense<0.000000e+00> : vector<8xf32>
    %9 = vector.multi_reduction <add>, %6, %cst [1] : vector<8x32xf32> to vector<8xf32>
    %10 = vector.shape_cast %9 : vector<8xf32> to vector<8x1xf32>
    %cst_11 = arith.constant 3.200000e+01 : f32
    %11 = vector.broadcast %cst_11 : f32 to vector<8x1xf32>
    %12 = arith.divf %10, %11 : vector<8x1xf32>
    %13 = vector.broadcast %12 : vector<8x1xf32> to vector<8x32xf32>
    %14 = arith.subf %6, %13 : vector<8x32xf32>
    %15 = arith.mulf %14, %14 : vector<8x32xf32>
    %cst_12 = arith.constant dense<0.000000e+00> : vector<8xf32>
    %16 = vector.multi_reduction <add>, %15, %cst_12 [1] : vector<8x32xf32> to vector<8xf32>
    %17 = vector.shape_cast %16 : vector<8xf32> to vector<8x1xf32>
    %cst_13 = arith.constant 3.200000e+01 : f32
    %18 = vector.broadcast %cst_13 : f32 to vector<8x1xf32>
    %19 = arith.divf %17, %18 : vector<8x1xf32>
    %cst_14 = arith.constant 9.99999996E-13 : f32
    %20 = vector.broadcast %cst_14 : f32 to vector<8x1xf32>
    %21 = arith.addf %19, %20 : vector<8x1xf32>
    %22 = math.rsqrt %21 : vector<8x1xf32>
    %23 = vector.broadcast %22 : vector<8x1xf32> to vector<8x32xf32>
    %24 = arith.mulf %14, %23 : vector<8x32xf32>
    %25 = vector.broadcast %7 : vector<1x32xf32> to vector<8x32xf32>
    %26 = arith.mulf %24, %25 : vector<8x32xf32>
    %27 = vector.broadcast %8 : vector<1x32xf32> to vector<8x32xf32>
    %28 = arith.addf %26, %27 : vector<8x32xf32>
    %c0_15 = arith.constant 0 : index
    %c0_16 = arith.constant 0 : index
    %c0_17 = arith.constant 0 : index
    %29 = vector.load %arg4[%c0_15, %c0_16, %c0_17] : memref<1x1x8xf32, #tpu.memory_space<vmem>>, vector<1x1x8xf32>
    %30 = vector.shape_cast %29 : vector<1x1x8xf32> to vector<1x1x8xf32>
    %31 = vector.broadcast %30 : vector<1x1x8xf32> to vector<1x8x8xf32>
    %c0_18 = arith.constant 0 : index
    %c0_19 = arith.constant 0 : index
    %c0_20 = arith.constant 0 : index
    %32 = vector.load %arg7[%c0_18, %c0_19, %c0_20] : memref<2x32x96xbf16, #tpu.memory_space<vmem>>, vector<1x32x96xbf16>
    %33 = vector.shape_cast %32 : vector<1x32x96xbf16> to vector<32x96xbf16>
    %34 = arith.truncf %28 : vector<8x32xf32> to vector<8x32xbf16>
    %cst_21 = arith.constant dense<0.000000e+00> : vector<8x96xf32>
    %35 = tpu.matmul %34, %33, %cst_21 {dimension_numbers = #tpu.dot_dimension_numbers<[1], [0], [0], [1], [0, 0, 1, 1], [], []>} : vector<8x32xbf16>, vector<32x96xbf16>, vector<8x96xf32> -> vector<8x96xf32>
    %c0_22 = arith.constant 0 : index
    %c0_23 = arith.constant 0 : index
    %c0_24 = arith.constant 0 : index
    %36 = vector.load %arg8[%c0_22, %c0_23, %c0_24] : memref<2x1x96xf32, #tpu.memory_space<vmem>>, vector<1x1x96xf32>
    %37 = vector.shape_cast %36 : vector<1x1x96xf32> to vector<1x96xf32>
    %38 = vector.broadcast %37 : vector<1x96xf32> to vector<8x96xf32>
    %39 = arith.addf %35, %38 : vector<8x96xf32>
    %40 = vector.shape_cast %39 : vector<8x96xf32> to vector<1x8x96xf32>
    %c0_25 = arith.constant 0 : index
    %c0_26 = arith.constant 0 : index
    %c0_27 = arith.constant 0 : index
    %41 = vector.load %arg9[%c0_25, %c0_26, %c0_27] : memref<2x32x32xbf16, #tpu.memory_space<vmem>>, vector<1x32x32xbf16>
    %42 = vector.shape_cast %41 : vector<1x32x32xbf16> to vector<32x32xbf16>
    %cst_28 = arith.constant 0.000000e+00 : f32
    %43 = vector.broadcast %cst_28 : f32 to vector<8x32xf32>
    %44 = vector.extract_strided_slice %40 {offsets = [0, 0, 0], sizes = [1, 8, 8], strides = [1, 1, 1]} : vector<1x8x96xf32> to vector<1x8x8xf32>
    %cst_29 = arith.constant 0.353553385 : f32
    %45 = vector.broadcast %cst_29 : f32 to vector<1x8x8xf32>
    %46 = arith.mulf %44, %45 : vector<1x8x8xf32>
    %47 = arith.truncf %46 : vector<1x8x8xf32> to vector<1x8x8xbf16>
    %48 = vector.extract_strided_slice %40 {offsets = [0, 0, 32], sizes = [1, 8, 8], strides = [1, 1, 1]} : vector<1x8x96xf32> to vector<1x8x8xf32>
    %49 = arith.truncf %48 : vector<1x8x8xf32> to vector<1x8x8xbf16>
    %50 = vector.extract_strided_slice %40 {offsets = [0, 0, 64], sizes = [1, 8, 8], strides = [1, 1, 1]} : vector<1x8x96xf32> to vector<1x8x8xf32>
    %51 = arith.truncf %50 : vector<1x8x8xf32> to vector<1x8x8xbf16>
    "tpu.trace_start"() <{level = 10 : i32, message = "bqd,bkd->bqk"}> : () -> ()
    %cst_30 = arith.constant dense<0.000000e+00> : vector<1x8x8xf32>
    %52 = tpu.matmul %47, %49, %cst_30 {dimension_numbers = #tpu.dot_dimension_numbers<[2], [2], [1], [1], [0, 0, 0, 1, 1, 1], [0], [0]>} : vector<1x8x8xbf16>, vector<1x8x8xbf16>, vector<1x8x8xf32> -> vector<1x8x8xf32>
    "tpu.trace_stop"() : () -> ()
    %53 = arith.addf %52, %31 : vector<1x8x8xf32>
    %cst_31 = arith.constant dense<0xFF800000> : vector<1x8xf32>
    %54 = vector.multi_reduction <maximumf>, %53, %cst_31 [2] : vector<1x8x8xf32> to vector<1x8xf32>
    %55 = vector.shape_cast %54 : vector<1x8xf32> to vector<1x8x1xf32>
    %56 = vector.broadcast %55 : vector<1x8x1xf32> to vector<1x8x8xf32>
    %57 = arith.subf %53, %56 : vector<1x8x8xf32>
    %58 = math.exp %57 : vector<1x8x8xf32>
    %cst_32 = arith.constant dense<0.000000e+00> : vector<1x8xf32>
    %59 = vector.multi_reduction <add>, %58, %cst_32 [2] : vector<1x8x8xf32> to vector<1x8xf32>
    %60 = vector.shape_cast %59 : vector<1x8xf32> to vector<1x8x1xf32>
    %61 = tpu.reciprocal %60 {approx = true} : vector<1x8x1xf32> -> vector<1x8x1xf32>
    %62 = vector.broadcast %61 : vector<1x8x1xf32> to vector<1x8x8xf32>
    %63 = arith.mulf %58, %62 : vector<1x8x8xf32>
    %64 = arith.truncf %63 : vector<1x8x8xf32> to vector<1x8x8xbf16>
    "tpu.trace_start"() <{level = 10 : i32, message = "bqk,bkd->bqd"}> : () -> ()
    %cst_33 = arith.constant dense<0.000000e+00> : vector<1x8x8xf32>
    %65 = tpu.matmul %64, %51, %cst_33 {dimension_numbers = #tpu.dot_dimension_numbers<[2], [1], [1], [2], [0, 0, 0, 1, 1, 2], [0], [0]>} : vector<1x8x8xbf16>, vector<1x8x8xbf16>, vector<1x8x8xf32> -> vector<1x8x8xf32>
    "tpu.trace_stop"() : () -> ()
    %66 = vector.shape_cast %65 : vector<1x8x8xf32> to vector<8x8xf32>
    %67 = vector.extract_strided_slice %42 {offsets = [0, 0], sizes = [8, 32], strides = [1, 1]} : vector<32x32xbf16> to vector<8x32xbf16>
    %68 = arith.truncf %66 : vector<8x8xf32> to vector<8x8xbf16>
    %cst_34 = arith.constant dense<0.000000e+00> : vector<8x32xf32>
    %69 = tpu.matmul %68, %67, %cst_34 {dimension_numbers = #tpu.dot_dimension_numbers<[1], [0], [0], [1], [0, 0, 1, 1], [], []>} : vector<8x8xbf16>, vector<8x32xbf16>, vector<8x32xf32> -> vector<8x32xf32>
    %70 = arith.addf %43, %69 : vector<8x32xf32>
    %71 = vector.extract_strided_slice %40 {offsets = [0, 0, 8], sizes = [1, 8, 8], strides = [1, 1, 1]} : vector<1x8x96xf32> to vector<1x8x8xf32>
    %cst_35 = arith.constant 0.353553385 : f32
    %72 = vector.broadcast %cst_35 : f32 to vector<1x8x8xf32>
    %73 = arith.mulf %71, %72 : vector<1x8x8xf32>
    %74 = arith.truncf %73 : vector<1x8x8xf32> to vector<1x8x8xbf16>
    %75 = vector.extract_strided_slice %40 {offsets = [0, 0, 40], sizes = [1, 8, 8], strides = [1, 1, 1]} : vector<1x8x96xf32> to vector<1x8x8xf32>
    %76 = arith.truncf %75 : vector<1x8x8xf32> to vector<1x8x8xbf16>
    %77 = vector.extract_strided_slice %40 {offsets = [0, 0, 72], sizes = [1, 8, 8], strides = [1, 1, 1]} : vector<1x8x96xf32> to vector<1x8x8xf32>
    %78 = arith.truncf %77 : vector<1x8x8xf32> to vector<1x8x8xbf16>
    "tpu.trace_start"() <{level = 10 : i32, message = "bqd,bkd->bqk"}> : () -> ()
    %cst_36 = arith.constant dense<0.000000e+00> : vector<1x8x8xf32>
    %79 = tpu.matmul %74, %76, %cst_36 {dimension_numbers = #tpu.dot_dimension_numbers<[2], [2], [1], [1], [0, 0, 0, 1, 1, 1], [0], [0]>} : vector<1x8x8xbf16>, vector<1x8x8xbf16>, vector<1x8x8xf32> -> vector<1x8x8xf32>
    "tpu.trace_stop"() : () -> ()
    %80 = arith.addf %79, %31 : vector<1x8x8xf32>
    %cst_37 = arith.constant dense<0xFF800000> : vector<1x8xf32>
    %81 = vector.multi_reduction <maximumf>, %80, %cst_37 [2] : vector<1x8x8xf32> to vector<1x8xf32>
    %82 = vector.shape_cast %81 : vector<1x8xf32> to vector<1x8x1xf32>
    %83 = vector.broadcast %82 : vector<1x8x1xf32> to vector<1x8x8xf32>
    %84 = arith.subf %80, %83 : vector<1x8x8xf32>
    %85 = math.exp %84 : vector<1x8x8xf32>
    %cst_38 = arith.constant dense<0.000000e+00> : vector<1x8xf32>
    %86 = vector.multi_reduction <add>, %85, %cst_38 [2] : vector<1x8x8xf32> to vector<1x8xf32>
    %87 = vector.shape_cast %86 : vector<1x8xf32> to vector<1x8x1xf32>
    %88 = tpu.reciprocal %87 {approx = true} : vector<1x8x1xf32> -> vector<1x8x1xf32>
    %89 = vector.broadcast %88 : vector<1x8x1xf32> to vector<1x8x8xf32>
    %90 = arith.mulf %85, %89 : vector<1x8x8xf32>
    %91 = arith.truncf %90 : vector<1x8x8xf32> to vector<1x8x8xbf16>
    "tpu.trace_start"() <{level = 10 : i32, message = "bqk,bkd->bqd"}> : () -> ()
    %cst_39 = arith.constant dense<0.000000e+00> : vector<1x8x8xf32>
    %92 = tpu.matmul %91, %78, %cst_39 {dimension_numbers = #tpu.dot_dimension_numbers<[2], [1], [1], [2], [0, 0, 0, 1, 1, 2], [0], [0]>} : vector<1x8x8xbf16>, vector<1x8x8xbf16>, vector<1x8x8xf32> -> vector<1x8x8xf32>
    "tpu.trace_stop"() : () -> ()
    %93 = vector.shape_cast %92 : vector<1x8x8xf32> to vector<8x8xf32>
    %94 = vector.extract_strided_slice %42 {offsets = [8, 0], sizes = [8, 32], strides = [1, 1]} : vector<32x32xbf16> to vector<8x32xbf16>
    %95 = arith.truncf %93 : vector<8x8xf32> to vector<8x8xbf16>
    %cst_40 = arith.constant dense<0.000000e+00> : vector<8x32xf32>
    %96 = tpu.matmul %95, %94, %cst_40 {dimension_numbers = #tpu.dot_dimension_numbers<[1], [0], [0], [1], [0, 0, 1, 1], [], []>} : vector<8x8xbf16>, vector<8x32xbf16>, vector<8x32xf32> -> vector<8x32xf32>
    %97 = arith.addf %70, %96 : vector<8x32xf32>
    %98 = vector.extract_strided_slice %40 {offsets = [0, 0, 16], sizes = [1, 8, 8], strides = [1, 1, 1]} : vector<1x8x96xf32> to vector<1x8x8xf32>
    %cst_41 = arith.constant 0.353553385 : f32
    %99 = vector.broadcast %cst_41 : f32 to vector<1x8x8xf32>
    %100 = arith.mulf %98, %99 : vector<1x8x8xf32>
    %101 = arith.truncf %100 : vector<1x8x8xf32> to vector<1x8x8xbf16>
    %102 = vector.extract_strided_slice %40 {offsets = [0, 0, 48], sizes = [1, 8, 8], strides = [1, 1, 1]} : vector<1x8x96xf32> to vector<1x8x8xf32>
    %103 = arith.truncf %102 : vector<1x8x8xf32> to vector<1x8x8xbf16>
    %104 = vector.extract_strided_slice %40 {offsets = [0, 0, 80], sizes = [1, 8, 8], strides = [1, 1, 1]} : vector<1x8x96xf32> to vector<1x8x8xf32>
    %105 = arith.truncf %104 : vector<1x8x8xf32> to vector<1x8x8xbf16>
    "tpu.trace_start"() <{level = 10 : i32, message = "bqd,bkd->bqk"}> : () -> ()
    %cst_42 = arith.constant dense<0.000000e+00> : vector<1x8x8xf32>
    %106 = tpu.matmul %101, %103, %cst_42 {dimension_numbers = #tpu.dot_dimension_numbers<[2], [2], [1], [1], [0, 0, 0, 1, 1, 1], [0], [0]>} : vector<1x8x8xbf16>, vector<1x8x8xbf16>, vector<1x8x8xf32> -> vector<1x8x8xf32>
    "tpu.trace_stop"() : () -> ()
    %107 = arith.addf %106, %31 : vector<1x8x8xf32>
    %cst_43 = arith.constant dense<0xFF800000> : vector<1x8xf32>
    %108 = vector.multi_reduction <maximumf>, %107, %cst_43 [2] : vector<1x8x8xf32> to vector<1x8xf32>
    %109 = vector.shape_cast %108 : vector<1x8xf32> to vector<1x8x1xf32>
    %110 = vector.broadcast %109 : vector<1x8x1xf32> to vector<1x8x8xf32>
    %111 = arith.subf %107, %110 : vector<1x8x8xf32>
    %112 = math.exp %111 : vector<1x8x8xf32>
    %cst_44 = arith.constant dense<0.000000e+00> : vector<1x8xf32>
    %113 = vector.multi_reduction <add>, %112, %cst_44 [2] : vector<1x8x8xf32> to vector<1x8xf32>
    %114 = vector.shape_cast %113 : vector<1x8xf32> to vector<1x8x1xf32>
    %115 = tpu.reciprocal %114 {approx = true} : vector<1x8x1xf32> -> vector<1x8x1xf32>
    %116 = vector.broadcast %115 : vector<1x8x1xf32> to vector<1x8x8xf32>
    %117 = arith.mulf %112, %116 : vector<1x8x8xf32>
    %118 = arith.truncf %117 : vector<1x8x8xf32> to vector<1x8x8xbf16>
    "tpu.trace_start"() <{level = 10 : i32, message = "bqk,bkd->bqd"}> : () -> ()
    %cst_45 = arith.constant dense<0.000000e+00> : vector<1x8x8xf32>
    %119 = tpu.matmul %118, %105, %cst_45 {dimension_numbers = #tpu.dot_dimension_numbers<[2], [1], [1], [2], [0, 0, 0, 1, 1, 2], [0], [0]>} : vector<1x8x8xbf16>, vector<1x8x8xbf16>, vector<1x8x8xf32> -> vector<1x8x8xf32>
    "tpu.trace_stop"() : () -> ()
    %120 = vector.shape_cast %119 : vector<1x8x8xf32> to vector<8x8xf32>
    %121 = vector.extract_strided_slice %42 {offsets = [16, 0], sizes = [8, 32], strides = [1, 1]} : vector<32x32xbf16> to vector<8x32xbf16>
    %122 = arith.truncf %120 : vector<8x8xf32> to vector<8x8xbf16>
    %cst_46 = arith.constant dense<0.000000e+00> : vector<8x32xf32>
    %123 = tpu.matmul %122, %121, %cst_46 {dimension_numbers = #tpu.dot_dimension_numbers<[1], [0], [0], [1], [0, 0, 1, 1], [], []>} : vector<8x8xbf16>, vector<8x32xbf16>, vector<8x32xf32> -> vector<8x32xf32>
    %124 = arith.addf %97, %123 : vector<8x32xf32>
    %125 = vector.extract_strided_slice %40 {offsets = [0, 0, 24], sizes = [1, 8, 8], strides = [1, 1, 1]} : vector<1x8x96xf32> to vector<1x8x8xf32>
    %cst_47 = arith.constant 0.353553385 : f32
    %126 = vector.broadcast %cst_47 : f32 to vector<1x8x8xf32>
    %127 = arith.mulf %125, %126 : vector<1x8x8xf32>
    %128 = arith.truncf %127 : vector<1x8x8xf32> to vector<1x8x8xbf16>
    %129 = vector.extract_strided_slice %40 {offsets = [0, 0, 56], sizes = [1, 8, 8], strides = [1, 1, 1]} : vector<1x8x96xf32> to vector<1x8x8xf32>
    %130 = arith.truncf %129 : vector<1x8x8xf32> to vector<1x8x8xbf16>
    %131 = vector.extract_strided_slice %40 {offsets = [0, 0, 88], sizes = [1, 8, 8], strides = [1, 1, 1]} : vector<1x8x96xf32> to vector<1x8x8xf32>
    %132 = arith.truncf %131 : vector<1x8x8xf32> to vector<1x8x8xbf16>
    "tpu.trace_start"() <{level = 10 : i32, message = "bqd,bkd->bqk"}> : () -> ()
    %cst_48 = arith.constant dense<0.000000e+00> : vector<1x8x8xf32>
    %133 = tpu.matmul %128, %130, %cst_48 {dimension_numbers = #tpu.dot_dimension_numbers<[2], [2], [1], [1], [0, 0, 0, 1, 1, 1], [0], [0]>} : vector<1x8x8xbf16>, vector<1x8x8xbf16>, vector<1x8x8xf32> -> vector<1x8x8xf32>
    "tpu.trace_stop"() : () -> ()
    %134 = arith.addf %133, %31 : vector<1x8x8xf32>
    %cst_49 = arith.constant dense<0xFF800000> : vector<1x8xf32>
    %135 = vector.multi_reduction <maximumf>, %134, %cst_49 [2] : vector<1x8x8xf32> to vector<1x8xf32>
    %136 = vector.shape_cast %135 : vector<1x8xf32> to vector<1x8x1xf32>
    %137 = vector.broadcast %136 : vector<1x8x1xf32> to vector<1x8x8xf32>
    %138 = arith.subf %134, %137 : vector<1x8x8xf32>
    %139 = math.exp %138 : vector<1x8x8xf32>
    %cst_50 = arith.constant dense<0.000000e+00> : vector<1x8xf32>
    %140 = vector.multi_reduction <add>, %139, %cst_50 [2] : vector<1x8x8xf32> to vector<1x8xf32>
    %141 = vector.shape_cast %140 : vector<1x8xf32> to vector<1x8x1xf32>
    %142 = tpu.reciprocal %141 {approx = true} : vector<1x8x1xf32> -> vector<1x8x1xf32>
    %143 = vector.broadcast %142 : vector<1x8x1xf32> to vector<1x8x8xf32>
    %144 = arith.mulf %139, %143 : vector<1x8x8xf32>
    %145 = arith.truncf %144 : vector<1x8x8xf32> to vector<1x8x8xbf16>
    "tpu.trace_start"() <{level = 10 : i32, message = "bqk,bkd->bqd"}> : () -> ()
    %cst_51 = arith.constant dense<0.000000e+00> : vector<1x8x8xf32>
    %146 = tpu.matmul %145, %132, %cst_51 {dimension_numbers = #tpu.dot_dimension_numbers<[2], [1], [1], [2], [0, 0, 0, 1, 1, 2], [0], [0]>} : vector<1x8x8xbf16>, vector<1x8x8xbf16>, vector<1x8x8xf32> -> vector<1x8x8xf32>
    "tpu.trace_stop"() : () -> ()
    %147 = vector.shape_cast %146 : vector<1x8x8xf32> to vector<8x8xf32>
    %148 = vector.extract_strided_slice %42 {offsets = [24, 0], sizes = [8, 32], strides = [1, 1]} : vector<32x32xbf16> to vector<8x32xbf16>
    %149 = arith.truncf %147 : vector<8x8xf32> to vector<8x8xbf16>
    %cst_52 = arith.constant dense<0.000000e+00> : vector<8x32xf32>
    %150 = tpu.matmul %149, %148, %cst_52 {dimension_numbers = #tpu.dot_dimension_numbers<[1], [0], [0], [1], [0, 0, 1, 1], [], []>} : vector<8x8xbf16>, vector<8x32xbf16>, vector<8x32xf32> -> vector<8x32xf32>
    %151 = arith.addf %124, %150 : vector<8x32xf32>
    %c0_53 = arith.constant 0 : index
    %c0_54 = arith.constant 0 : index
    %c0_55 = arith.constant 0 : index
    %152 = vector.load %arg10[%c0_53, %c0_54, %c0_55] : memref<2x1x32xf32, #tpu.memory_space<vmem>>, vector<1x1x32xf32>
    %153 = vector.shape_cast %152 : vector<1x1x32xf32> to vector<1x32xf32>
    %154 = vector.broadcast %153 : vector<1x32xf32> to vector<8x32xf32>
    %155 = arith.addf %151, %154 : vector<8x32xf32>
    %156 = arith.addf %155, %28 : vector<8x32xf32>
    %c0_56 = arith.constant 0 : index
    %c0_57 = arith.constant 0 : index
    %c0_58 = arith.constant 0 : index
    %157 = vector.load %arg11[%c0_56, %c0_57, %c0_58] : memref<2x1x32xf32, #tpu.memory_space<vmem>>, vector<1x1x32xf32>
    %158 = vector.shape_cast %157 : vector<1x1x32xf32> to vector<1x32xf32>
    %c0_59 = arith.constant 0 : index
    %c0_60 = arith.constant 0 : index
    %c0_61 = arith.constant 0 : index
    %159 = vector.load %arg12[%c0_59, %c0_60, %c0_61] : memref<2x1x32xf32, #tpu.memory_space<vmem>>, vector<1x1x32xf32>
    %160 = vector.shape_cast %159 : vector<1x1x32xf32> to vector<1x32xf32>
    %cst_62 = arith.constant dense<0.000000e+00> : vector<8xf32>
    %161 = vector.multi_reduction <add>, %156, %cst_62 [1] : vector<8x32xf32> to vector<8xf32>
    %162 = vector.shape_cast %161 : vector<8xf32> to vector<8x1xf32>
    %cst_63 = arith.constant 3.200000e+01 : f32
    %163 = vector.broadcast %cst_63 : f32 to vector<8x1xf32>
    %164 = arith.divf %162, %163 : vector<8x1xf32>
    %165 = vector.broadcast %164 : vector<8x1xf32> to vector<8x32xf32>
    %166 = arith.subf %156, %165 : vector<8x32xf32>
    %167 = arith.mulf %166, %166 : vector<8x32xf32>
    %cst_64 = arith.constant dense<0.000000e+00> : vector<8xf32>
    %168 = vector.multi_reduction <add>, %167, %cst_64 [1] : vector<8x32xf32> to vector<8xf32>
    %169 = vector.shape_cast %168 : vector<8xf32> to vector<8x1xf32>
    %cst_65 = arith.constant 3.200000e+01 : f32
    %170 = vector.broadcast %cst_65 : f32 to vector<8x1xf32>
    %171 = arith.divf %169, %170 : vector<8x1xf32>
    %cst_66 = arith.constant 9.99999996E-13 : f32
    %172 = vector.broadcast %cst_66 : f32 to vector<8x1xf32>
    %173 = arith.addf %171, %172 : vector<8x1xf32>
    %174 = math.rsqrt %173 : vector<8x1xf32>
    %175 = vector.broadcast %174 : vector<8x1xf32> to vector<8x32xf32>
    %176 = arith.mulf %166, %175 : vector<8x32xf32>
    %177 = vector.broadcast %158 : vector<1x32xf32> to vector<8x32xf32>
    %178 = arith.mulf %176, %177 : vector<8x32xf32>
    %179 = vector.broadcast %160 : vector<1x32xf32> to vector<8x32xf32>
    %180 = arith.addf %178, %179 : vector<8x32xf32>
    %c0_67 = arith.constant 0 : index
    %c0_68 = arith.constant 0 : index
    %c0_69 = arith.constant 0 : index
    %181 = vector.load %arg13[%c0_67, %c0_68, %c0_69] : memref<2x32x64xbf16, #tpu.memory_space<vmem>>, vector<1x32x64xbf16>
    %182 = vector.shape_cast %181 : vector<1x32x64xbf16> to vector<32x64xbf16>
    %183 = arith.truncf %180 : vector<8x32xf32> to vector<8x32xbf16>
    %cst_70 = arith.constant dense<0.000000e+00> : vector<8x64xf32>
    %184 = tpu.matmul %183, %182, %cst_70 {dimension_numbers = #tpu.dot_dimension_numbers<[1], [0], [0], [1], [0, 0, 1, 1], [], []>} : vector<8x32xbf16>, vector<32x64xbf16>, vector<8x64xf32> -> vector<8x64xf32>
    %c0_71 = arith.constant 0 : index
    %c0_72 = arith.constant 0 : index
    %c0_73 = arith.constant 0 : index
    %185 = vector.load %arg14[%c0_71, %c0_72, %c0_73] : memref<2x1x64xf32, #tpu.memory_space<vmem>>, vector<1x1x64xf32>
    %186 = vector.shape_cast %185 : vector<1x1x64xf32> to vector<1x64xf32>
    %187 = vector.broadcast %186 : vector<1x64xf32> to vector<8x64xf32>
    %188 = arith.addf %184, %187 : vector<8x64xf32>
    %cst_74 = arith.constant 5.000000e-01 : f32
    %189 = vector.broadcast %cst_74 : f32 to vector<8x64xf32>
    %190 = arith.mulf %189, %188 : vector<8x64xf32>
    %cst_75 = arith.constant 4.471500e-02 : f32
    %191 = vector.broadcast %cst_75 : f32 to vector<8x64xf32>
    %192 = arith.mulf %191, %188 : vector<8x64xf32>
    %193 = arith.mulf %192, %188 : vector<8x64xf32>
    %194 = arith.mulf %193, %188 : vector<8x64xf32>
    %195 = arith.addf %188, %194 : vector<8x64xf32>
    %cst_76 = arith.constant 0.797884583 : f32
    %196 = vector.broadcast %cst_76 : f32 to vector<8x64xf32>
    %197 = arith.mulf %196, %195 : vector<8x64xf32>
    %198 = math.tanh %197 : vector<8x64xf32>
    %cst_77 = arith.constant 1.000000e+00 : f32
    %199 = vector.broadcast %cst_77 : f32 to vector<8x64xf32>
    %200 = arith.addf %199, %198 : vector<8x64xf32>
    %201 = arith.mulf %190, %200 : vector<8x64xf32>
    %c0_78 = arith.constant 0 : index
    %c0_79 = arith.constant 0 : index
    %c0_80 = arith.constant 0 : index
    %202 = vector.load %arg15[%c0_78, %c0_79, %c0_80] : memref<2x64x32xbf16, #tpu.memory_space<vmem>>, vector<1x64x32xbf16>
    %203 = vector.shape_cast %202 : vector<1x64x32xbf16> to vector<64x32xbf16>
    %204 = arith.truncf %201 : vector<8x64xf32> to vector<8x64xbf16>
    %cst_81 = arith.constant dense<0.000000e+00> : vector<8x32xf32>
    %205 = tpu.matmul %204, %203, %cst_81 {dimension_numbers = #tpu.dot_dimension_numbers<[1], [0], [0], [1], [0, 0, 1, 1], [], []>} : vector<8x64xbf16>, vector<64x32xbf16>, vector<8x32xf32> -> vector<8x32xf32>
    %c0_82 = arith.constant 0 : index
    %c0_83 = arith.constant 0 : index
    %c0_84 = arith.constant 0 : index
    %206 = vector.load %arg16[%c0_82, %c0_83, %c0_84] : memref<2x1x32xf32, #tpu.memory_space<vmem>>, vector<1x1x32xf32>
    %207 = vector.shape_cast %206 : vector<1x1x32xf32> to vector<1x32xf32>
    %208 = vector.broadcast %207 : vector<1x32xf32> to vector<8x32xf32>
    %209 = arith.addf %205, %208 : vector<8x32xf32>
    %210 = arith.addf %209, %180 : vector<8x32xf32>
    %c0_85 = arith.constant 0 : index
    %c0_86 = arith.constant 0 : index
    %c0_87 = arith.constant 0 : index
    %211 = vector.load %arg17[%c0_85, %c0_86, %c0_87] : memref<2x1x32xf32, #tpu.memory_space<vmem>>, vector<1x1x32xf32>
    %212 = vector.shape_cast %211 : vector<1x1x32xf32> to vector<1x32xf32>
    %c0_88 = arith.constant 0 : index
    %c0_89 = arith.constant 0 : index
    %c0_90 = arith.constant 0 : index
    %213 = vector.load %arg18[%c0_88, %c0_89, %c0_90] : memref<2x1x32xf32, #tpu.memory_space<vmem>>, vector<1x1x32xf32>
    %214 = vector.shape_cast %213 : vector<1x1x32xf32> to vector<1x32xf32>
    %cst_91 = arith.constant dense<0.000000e+00> : vector<8xf32>
    %215 = vector.multi_reduction <add>, %210, %cst_91 [1] : vector<8x32xf32> to vector<8xf32>
    %216 = vector.shape_cast %215 : vector<8xf32> to vector<8x1xf32>
    %cst_92 = arith.constant 3.200000e+01 : f32
    %217 = vector.broadcast %cst_92 : f32 to vector<8x1xf32>
    %218 = arith.divf %216, %217 : vector<8x1xf32>
    %219 = vector.broadcast %218 : vector<8x1xf32> to vector<8x32xf32>
    %220 = arith.subf %210, %219 : vector<8x32xf32>
    %221 = arith.mulf %220, %220 : vector<8x32xf32>
    %cst_93 = arith.constant dense<0.000000e+00> : vector<8xf32>
    %222 = vector.multi_reduction <add>, %221, %cst_93 [1] : vector<8x32xf32> to vector<8xf32>
    %223 = vector.shape_cast %222 : vector<8xf32> to vector<8x1xf32>
    %cst_94 = arith.constant 3.200000e+01 : f32
    %224 = vector.broadcast %cst_94 : f32 to vector<8x1xf32>
    %225 = arith.divf %223, %224 : vector<8x1xf32>
    %cst_95 = arith.constant 9.99999996E-13 : f32
    %226 = vector.broadcast %cst_95 : f32 to vector<8x1xf32>
    %227 = arith.addf %225, %226 : vector<8x1xf32>
    %228 = math.rsqrt %227 : vector<8x1xf32>
    %229 = vector.broadcast %228 : vector<8x1xf32> to vector<8x32xf32>
    %230 = arith.mulf %220, %229 : vector<8x32xf32>
    %231 = vector.broadcast %212 : vector<1x32xf32> to vector<8x32xf32>
    %232 = arith.mulf %230, %231 : vector<8x32xf32>
    %233 = vector.broadcast %214 : vector<1x32xf32> to vector<8x32xf32>
    %234 = arith.addf %232, %233 : vector<8x32xf32>
    %c1 = arith.constant 1 : index
    %c0_96 = arith.constant 0 : index
    %c0_97 = arith.constant 0 : index
    %235 = vector.load %arg7[%c1, %c0_96, %c0_97] : memref<2x32x96xbf16, #tpu.memory_space<vmem>>, vector<1x32x96xbf16>
    %236 = vector.shape_cast %235 : vector<1x32x96xbf16> to vector<32x96xbf16>
    %237 = arith.truncf %234 : vector<8x32xf32> to vector<8x32xbf16>
    %cst_98 = arith.constant dense<0.000000e+00> : vector<8x96xf32>
    %238 = tpu.matmul %237, %236, %cst_98 {dimension_numbers = #tpu.dot_dimension_numbers<[1], [0], [0], [1], [0, 0, 1, 1], [], []>} : vector<8x32xbf16>, vector<32x96xbf16>, vector<8x96xf32> -> vector<8x96xf32>
    %c1_99 = arith.constant 1 : index
    %c0_100 = arith.constant 0 : index
    %c0_101 = arith.constant 0 : index
    %239 = vector.load %arg8[%c1_99, %c0_100, %c0_101] : memref<2x1x96xf32, #tpu.memory_space<vmem>>, vector<1x1x96xf32>
    %240 = vector.shape_cast %239 : vector<1x1x96xf32> to vector<1x96xf32>
    %241 = vector.broadcast %240 : vector<1x96xf32> to vector<8x96xf32>
    %242 = arith.addf %238, %241 : vector<8x96xf32>
    %243 = vector.shape_cast %242 : vector<8x96xf32> to vector<1x8x96xf32>
    %c1_102 = arith.constant 1 : index
    %c0_103 = arith.constant 0 : index
    %c0_104 = arith.constant 0 : index
    %244 = vector.load %arg9[%c1_102, %c0_103, %c0_104] : memref<2x32x32xbf16, #tpu.memory_space<vmem>>, vector<1x32x32xbf16>
    %245 = vector.shape_cast %244 : vector<1x32x32xbf16> to vector<32x32xbf16>
    %cst_105 = arith.constant 0.000000e+00 : f32
    %246 = vector.broadcast %cst_105 : f32 to vector<8x32xf32>
    %247 = vector.extract_strided_slice %243 {offsets = [0, 0, 0], sizes = [1, 8, 8], strides = [1, 1, 1]} : vector<1x8x96xf32> to vector<1x8x8xf32>
    %cst_106 = arith.constant 0.353553385 : f32
    %248 = vector.broadcast %cst_106 : f32 to vector<1x8x8xf32>
    %249 = arith.mulf %247, %248 : vector<1x8x8xf32>
    %250 = arith.truncf %249 : vector<1x8x8xf32> to vector<1x8x8xbf16>
    %251 = vector.extract_strided_slice %243 {offsets = [0, 0, 32], sizes = [1, 8, 8], strides = [1, 1, 1]} : vector<1x8x96xf32> to vector<1x8x8xf32>
    %252 = arith.truncf %251 : vector<1x8x8xf32> to vector<1x8x8xbf16>
    %253 = vector.extract_strided_slice %243 {offsets = [0, 0, 64], sizes = [1, 8, 8], strides = [1, 1, 1]} : vector<1x8x96xf32> to vector<1x8x8xf32>
    %254 = arith.truncf %253 : vector<1x8x8xf32> to vector<1x8x8xbf16>
    "tpu.trace_start"() <{level = 10 : i32, message = "bqd,bkd->bqk"}> : () -> ()
    %cst_107 = arith.constant dense<0.000000e+00> : vector<1x8x8xf32>
    %255 = tpu.matmul %250, %252, %cst_107 {dimension_numbers = #tpu.dot_dimension_numbers<[2], [2], [1], [1], [0, 0, 0, 1, 1, 1], [0], [0]>} : vector<1x8x8xbf16>, vector<1x8x8xbf16>, vector<1x8x8xf32> -> vector<1x8x8xf32>
    "tpu.trace_stop"() : () -> ()
    %256 = arith.addf %255, %31 : vector<1x8x8xf32>
    %cst_108 = arith.constant dense<0xFF800000> : vector<1x8xf32>
    %257 = vector.multi_reduction <maximumf>, %256, %cst_108 [2] : vector<1x8x8xf32> to vector<1x8xf32>
    %258 = vector.shape_cast %257 : vector<1x8xf32> to vector<1x8x1xf32>
    %259 = vector.broadcast %258 : vector<1x8x1xf32> to vector<1x8x8xf32>
    %260 = arith.subf %256, %259 : vector<1x8x8xf32>
    %261 = math.exp %260 : vector<1x8x8xf32>
    %cst_109 = arith.constant dense<0.000000e+00> : vector<1x8xf32>
    %262 = vector.multi_reduction <add>, %261, %cst_109 [2] : vector<1x8x8xf32> to vector<1x8xf32>
    %263 = vector.shape_cast %262 : vector<1x8xf32> to vector<1x8x1xf32>
    %264 = tpu.reciprocal %263 {approx = true} : vector<1x8x1xf32> -> vector<1x8x1xf32>
    %265 = vector.broadcast %264 : vector<1x8x1xf32> to vector<1x8x8xf32>
    %266 = arith.mulf %261, %265 : vector<1x8x8xf32>
    %267 = arith.truncf %266 : vector<1x8x8xf32> to vector<1x8x8xbf16>
    "tpu.trace_start"() <{level = 10 : i32, message = "bqk,bkd->bqd"}> : () -> ()
    %cst_110 = arith.constant dense<0.000000e+00> : vector<1x8x8xf32>
    %268 = tpu.matmul %267, %254, %cst_110 {dimension_numbers = #tpu.dot_dimension_numbers<[2], [1], [1], [2], [0, 0, 0, 1, 1, 2], [0], [0]>} : vector<1x8x8xbf16>, vector<1x8x8xbf16>, vector<1x8x8xf32> -> vector<1x8x8xf32>
    "tpu.trace_stop"() : () -> ()
    %269 = vector.shape_cast %268 : vector<1x8x8xf32> to vector<8x8xf32>
    %270 = vector.extract_strided_slice %245 {offsets = [0, 0], sizes = [8, 32], strides = [1, 1]} : vector<32x32xbf16> to vector<8x32xbf16>
    %271 = arith.truncf %269 : vector<8x8xf32> to vector<8x8xbf16>
    %cst_111 = arith.constant dense<0.000000e+00> : vector<8x32xf32>
    %272 = tpu.matmul %271, %270, %cst_111 {dimension_numbers = #tpu.dot_dimension_numbers<[1], [0], [0], [1], [0, 0, 1, 1], [], []>} : vector<8x8xbf16>, vector<8x32xbf16>, vector<8x32xf32> -> vector<8x32xf32>
    %273 = arith.addf %246, %272 : vector<8x32xf32>
    %274 = vector.extract_strided_slice %243 {offsets = [0, 0, 8], sizes = [1, 8, 8], strides = [1, 1, 1]} : vector<1x8x96xf32> to vector<1x8x8xf32>
    %cst_112 = arith.constant 0.353553385 : f32
    %275 = vector.broadcast %cst_112 : f32 to vector<1x8x8xf32>
    %276 = arith.mulf %274, %275 : vector<1x8x8xf32>
    %277 = arith.truncf %276 : vector<1x8x8xf32> to vector<1x8x8xbf16>
    %278 = vector.extract_strided_slice %243 {offsets = [0, 0, 40], sizes = [1, 8, 8], strides = [1, 1, 1]} : vector<1x8x96xf32> to vector<1x8x8xf32>
    %279 = arith.truncf %278 : vector<1x8x8xf32> to vector<1x8x8xbf16>
    %280 = vector.extract_strided_slice %243 {offsets = [0, 0, 72], sizes = [1, 8, 8], strides = [1, 1, 1]} : vector<1x8x96xf32> to vector<1x8x8xf32>
    %281 = arith.truncf %280 : vector<1x8x8xf32> to vector<1x8x8xbf16>
    "tpu.trace_start"() <{level = 10 : i32, message = "bqd,bkd->bqk"}> : () -> ()
    %cst_113 = arith.constant dense<0.000000e+00> : vector<1x8x8xf32>
    %282 = tpu.matmul %277, %279, %cst_113 {dimension_numbers = #tpu.dot_dimension_numbers<[2], [2], [1], [1], [0, 0, 0, 1, 1, 1], [0], [0]>} : vector<1x8x8xbf16>, vector<1x8x8xbf16>, vector<1x8x8xf32> -> vector<1x8x8xf32>
    "tpu.trace_stop"() : () -> ()
    %283 = arith.addf %282, %31 : vector<1x8x8xf32>
    %cst_114 = arith.constant dense<0xFF800000> : vector<1x8xf32>
    %284 = vector.multi_reduction <maximumf>, %283, %cst_114 [2] : vector<1x8x8xf32> to vector<1x8xf32>
    %285 = vector.shape_cast %284 : vector<1x8xf32> to vector<1x8x1xf32>
    %286 = vector.broadcast %285 : vector<1x8x1xf32> to vector<1x8x8xf32>
    %287 = arith.subf %283, %286 : vector<1x8x8xf32>
    %288 = math.exp %287 : vector<1x8x8xf32>
    %cst_115 = arith.constant dense<0.000000e+00> : vector<1x8xf32>
    %289 = vector.multi_reduction <add>, %288, %cst_115 [2] : vector<1x8x8xf32> to vector<1x8xf32>
    %290 = vector.shape_cast %289 : vector<1x8xf32> to vector<1x8x1xf32>
    %291 = tpu.reciprocal %290 {approx = true} : vector<1x8x1xf32> -> vector<1x8x1xf32>
    %292 = vector.broadcast %291 : vector<1x8x1xf32> to vector<1x8x8xf32>
    %293 = arith.mulf %288, %292 : vector<1x8x8xf32>
    %294 = arith.truncf %293 : vector<1x8x8xf32> to vector<1x8x8xbf16>
    "tpu.trace_start"() <{level = 10 : i32, message = "bqk,bkd->bqd"}> : () -> ()
    %cst_116 = arith.constant dense<0.000000e+00> : vector<1x8x8xf32>
    %295 = tpu.matmul %294, %281, %cst_116 {dimension_numbers = #tpu.dot_dimension_numbers<[2], [1], [1], [2], [0, 0, 0, 1, 1, 2], [0], [0]>} : vector<1x8x8xbf16>, vector<1x8x8xbf16>, vector<1x8x8xf32> -> vector<1x8x8xf32>
    "tpu.trace_stop"() : () -> ()
    %296 = vector.shape_cast %295 : vector<1x8x8xf32> to vector<8x8xf32>
    %297 = vector.extract_strided_slice %245 {offsets = [8, 0], sizes = [8, 32], strides = [1, 1]} : vector<32x32xbf16> to vector<8x32xbf16>
    %298 = arith.truncf %296 : vector<8x8xf32> to vector<8x8xbf16>
    %cst_117 = arith.constant dense<0.000000e+00> : vector<8x32xf32>
    %299 = tpu.matmul %298, %297, %cst_117 {dimension_numbers = #tpu.dot_dimension_numbers<[1], [0], [0], [1], [0, 0, 1, 1], [], []>} : vector<8x8xbf16>, vector<8x32xbf16>, vector<8x32xf32> -> vector<8x32xf32>
    %300 = arith.addf %273, %299 : vector<8x32xf32>
    %301 = vector.extract_strided_slice %243 {offsets = [0, 0, 16], sizes = [1, 8, 8], strides = [1, 1, 1]} : vector<1x8x96xf32> to vector<1x8x8xf32>
    %cst_118 = arith.constant 0.353553385 : f32
    %302 = vector.broadcast %cst_118 : f32 to vector<1x8x8xf32>
    %303 = arith.mulf %301, %302 : vector<1x8x8xf32>
    %304 = arith.truncf %303 : vector<1x8x8xf32> to vector<1x8x8xbf16>
    %305 = vector.extract_strided_slice %243 {offsets = [0, 0, 48], sizes = [1, 8, 8], strides = [1, 1, 1]} : vector<1x8x96xf32> to vector<1x8x8xf32>
    %306 = arith.truncf %305 : vector<1x8x8xf32> to vector<1x8x8xbf16>
    %307 = vector.extract_strided_slice %243 {offsets = [0, 0, 80], sizes = [1, 8, 8], strides = [1, 1, 1]} : vector<1x8x96xf32> to vector<1x8x8xf32>
    %308 = arith.truncf %307 : vector<1x8x8xf32> to vector<1x8x8xbf16>
    "tpu.trace_start"() <{level = 10 : i32, message = "bqd,bkd->bqk"}> : () -> ()
    %cst_119 = arith.constant dense<0.000000e+00> : vector<1x8x8xf32>
    %309 = tpu.matmul %304, %306, %cst_119 {dimension_numbers = #tpu.dot_dimension_numbers<[2], [2], [1], [1], [0, 0, 0, 1, 1, 1], [0], [0]>} : vector<1x8x8xbf16>, vector<1x8x8xbf16>, vector<1x8x8xf32> -> vector<1x8x8xf32>
    "tpu.trace_stop"() : () -> ()
    %310 = arith.addf %309, %31 : vector<1x8x8xf32>
    %cst_120 = arith.constant dense<0xFF800000> : vector<1x8xf32>
    %311 = vector.multi_reduction <maximumf>, %310, %cst_120 [2] : vector<1x8x8xf32> to vector<1x8xf32>
    %312 = vector.shape_cast %311 : vector<1x8xf32> to vector<1x8x1xf32>
    %313 = vector.broadcast %312 : vector<1x8x1xf32> to vector<1x8x8xf32>
    %314 = arith.subf %310, %313 : vector<1x8x8xf32>
    %315 = math.exp %314 : vector<1x8x8xf32>
    %cst_121 = arith.constant dense<0.000000e+00> : vector<1x8xf32>
    %316 = vector.multi_reduction <add>, %315, %cst_121 [2] : vector<1x8x8xf32> to vector<1x8xf32>
    %317 = vector.shape_cast %316 : vector<1x8xf32> to vector<1x8x1xf32>
    %318 = tpu.reciprocal %317 {approx = true} : vector<1x8x1xf32> -> vector<1x8x1xf32>
    %319 = vector.broadcast %318 : vector<1x8x1xf32> to vector<1x8x8xf32>
    %320 = arith.mulf %315, %319 : vector<1x8x8xf32>
    %321 = arith.truncf %320 : vector<1x8x8xf32> to vector<1x8x8xbf16>
    "tpu.trace_start"() <{level = 10 : i32, message = "bqk,bkd->bqd"}> : () -> ()
    %cst_122 = arith.constant dense<0.000000e+00> : vector<1x8x8xf32>
    %322 = tpu.matmul %321, %308, %cst_122 {dimension_numbers = #tpu.dot_dimension_numbers<[2], [1], [1], [2], [0, 0, 0, 1, 1, 2], [0], [0]>} : vector<1x8x8xbf16>, vector<1x8x8xbf16>, vector<1x8x8xf32> -> vector<1x8x8xf32>
    "tpu.trace_stop"() : () -> ()
    %323 = vector.shape_cast %322 : vector<1x8x8xf32> to vector<8x8xf32>
    %324 = vector.extract_strided_slice %245 {offsets = [16, 0], sizes = [8, 32], strides = [1, 1]} : vector<32x32xbf16> to vector<8x32xbf16>
    %325 = arith.truncf %323 : vector<8x8xf32> to vector<8x8xbf16>
    %cst_123 = arith.constant dense<0.000000e+00> : vector<8x32xf32>
    %326 = tpu.matmul %325, %324, %cst_123 {dimension_numbers = #tpu.dot_dimension_numbers<[1], [0], [0], [1], [0, 0, 1, 1], [], []>} : vector<8x8xbf16>, vector<8x32xbf16>, vector<8x32xf32> -> vector<8x32xf32>
    %327 = arith.addf %300, %326 : vector<8x32xf32>
    %328 = vector.extract_strided_slice %243 {offsets = [0, 0, 24], sizes = [1, 8, 8], strides = [1, 1, 1]} : vector<1x8x96xf32> to vector<1x8x8xf32>
    %cst_124 = arith.constant 0.353553385 : f32
    %329 = vector.broadcast %cst_124 : f32 to vector<1x8x8xf32>
    %330 = arith.mulf %328, %329 : vector<1x8x8xf32>
    %331 = arith.truncf %330 : vector<1x8x8xf32> to vector<1x8x8xbf16>
    %332 = vector.extract_strided_slice %243 {offsets = [0, 0, 56], sizes = [1, 8, 8], strides = [1, 1, 1]} : vector<1x8x96xf32> to vector<1x8x8xf32>
    %333 = arith.truncf %332 : vector<1x8x8xf32> to vector<1x8x8xbf16>
    %334 = vector.extract_strided_slice %243 {offsets = [0, 0, 88], sizes = [1, 8, 8], strides = [1, 1, 1]} : vector<1x8x96xf32> to vector<1x8x8xf32>
    %335 = arith.truncf %334 : vector<1x8x8xf32> to vector<1x8x8xbf16>
    "tpu.trace_start"() <{level = 10 : i32, message = "bqd,bkd->bqk"}> : () -> ()
    %cst_125 = arith.constant dense<0.000000e+00> : vector<1x8x8xf32>
    %336 = tpu.matmul %331, %333, %cst_125 {dimension_numbers = #tpu.dot_dimension_numbers<[2], [2], [1], [1], [0, 0, 0, 1, 1, 1], [0], [0]>} : vector<1x8x8xbf16>, vector<1x8x8xbf16>, vector<1x8x8xf32> -> vector<1x8x8xf32>
    "tpu.trace_stop"() : () -> ()
    %337 = arith.addf %336, %31 : vector<1x8x8xf32>
    %cst_126 = arith.constant dense<0xFF800000> : vector<1x8xf32>
    %338 = vector.multi_reduction <maximumf>, %337, %cst_126 [2] : vector<1x8x8xf32> to vector<1x8xf32>
    %339 = vector.shape_cast %338 : vector<1x8xf32> to vector<1x8x1xf32>
    %340 = vector.broadcast %339 : vector<1x8x1xf32> to vector<1x8x8xf32>
    %341 = arith.subf %337, %340 : vector<1x8x8xf32>
    %342 = math.exp %341 : vector<1x8x8xf32>
    %cst_127 = arith.constant dense<0.000000e+00> : vector<1x8xf32>
    %343 = vector.multi_reduction <add>, %342, %cst_127 [2] : vector<1x8x8xf32> to vector<1x8xf32>
    %344 = vector.shape_cast %343 : vector<1x8xf32> to vector<1x8x1xf32>
    %345 = tpu.reciprocal %344 {approx = true} : vector<1x8x1xf32> -> vector<1x8x1xf32>
    %346 = vector.broadcast %345 : vector<1x8x1xf32> to vector<1x8x8xf32>
    %347 = arith.mulf %342, %346 : vector<1x8x8xf32>
    %348 = arith.truncf %347 : vector<1x8x8xf32> to vector<1x8x8xbf16>
    "tpu.trace_start"() <{level = 10 : i32, message = "bqk,bkd->bqd"}> : () -> ()
    %cst_128 = arith.constant dense<0.000000e+00> : vector<1x8x8xf32>
    %349 = tpu.matmul %348, %335, %cst_128 {dimension_numbers = #tpu.dot_dimension_numbers<[2], [1], [1], [2], [0, 0, 0, 1, 1, 2], [0], [0]>} : vector<1x8x8xbf16>, vector<1x8x8xbf16>, vector<1x8x8xf32> -> vector<1x8x8xf32>
    "tpu.trace_stop"() : () -> ()
    %350 = vector.shape_cast %349 : vector<1x8x8xf32> to vector<8x8xf32>
    %351 = vector.extract_strided_slice %245 {offsets = [24, 0], sizes = [8, 32], strides = [1, 1]} : vector<32x32xbf16> to vector<8x32xbf16>
    %352 = arith.truncf %350 : vector<8x8xf32> to vector<8x8xbf16>
    %cst_129 = arith.constant dense<0.000000e+00> : vector<8x32xf32>
    %353 = tpu.matmul %352, %351, %cst_129 {dimension_numbers = #tpu.dot_dimension_numbers<[1], [0], [0], [1], [0, 0, 1, 1], [], []>} : vector<8x8xbf16>, vector<8x32xbf16>, vector<8x32xf32> -> vector<8x32xf32>
    %354 = arith.addf %327, %353 : vector<8x32xf32>
    %c1_130 = arith.constant 1 : index
    %c0_131 = arith.constant 0 : index
    %c0_132 = arith.constant 0 : index
    %355 = vector.load %arg10[%c1_130, %c0_131, %c0_132] : memref<2x1x32xf32, #tpu.memory_space<vmem>>, vector<1x1x32xf32>
    %356 = vector.shape_cast %355 : vector<1x1x32xf32> to vector<1x32xf32>
    %357 = vector.broadcast %356 : vector<1x32xf32> to vector<8x32xf32>
    %358 = arith.addf %354, %357 : vector<8x32xf32>
    %359 = arith.addf %358, %234 : vector<8x32xf32>
    %c1_133 = arith.constant 1 : index
    %c0_134 = arith.constant 0 : index
    %c0_135 = arith.constant 0 : index
    %360 = vector.load %arg11[%c1_133, %c0_134, %c0_135] : memref<2x1x32xf32, #tpu.memory_space<vmem>>, vector<1x1x32xf32>
    %361 = vector.shape_cast %360 : vector<1x1x32xf32> to vector<1x32xf32>
    %c1_136 = arith.constant 1 : index
    %c0_137 = arith.constant 0 : index
    %c0_138 = arith.constant 0 : index
    %362 = vector.load %arg12[%c1_136, %c0_137, %c0_138] : memref<2x1x32xf32, #tpu.memory_space<vmem>>, vector<1x1x32xf32>
    %363 = vector.shape_cast %362 : vector<1x1x32xf32> to vector<1x32xf32>
    %cst_139 = arith.constant dense<0.000000e+00> : vector<8xf32>
    %364 = vector.multi_reduction <add>, %359, %cst_139 [1] : vector<8x32xf32> to vector<8xf32>
    %365 = vector.shape_cast %364 : vector<8xf32> to vector<8x1xf32>
    %cst_140 = arith.constant 3.200000e+01 : f32
    %366 = vector.broadcast %cst_140 : f32 to vector<8x1xf32>
    %367 = arith.divf %365, %366 : vector<8x1xf32>
    %368 = vector.broadcast %367 : vector<8x1xf32> to vector<8x32xf32>
    %369 = arith.subf %359, %368 : vector<8x32xf32>
    %370 = arith.mulf %369, %369 : vector<8x32xf32>
    %cst_141 = arith.constant dense<0.000000e+00> : vector<8xf32>
    %371 = vector.multi_reduction <add>, %370, %cst_141 [1] : vector<8x32xf32> to vector<8xf32>
    %372 = vector.shape_cast %371 : vector<8xf32> to vector<8x1xf32>
    %cst_142 = arith.constant 3.200000e+01 : f32
    %373 = vector.broadcast %cst_142 : f32 to vector<8x1xf32>
    %374 = arith.divf %372, %373 : vector<8x1xf32>
    %cst_143 = arith.constant 9.99999996E-13 : f32
    %375 = vector.broadcast %cst_143 : f32 to vector<8x1xf32>
    %376 = arith.addf %374, %375 : vector<8x1xf32>
    %377 = math.rsqrt %376 : vector<8x1xf32>
    %378 = vector.broadcast %377 : vector<8x1xf32> to vector<8x32xf32>
    %379 = arith.mulf %369, %378 : vector<8x32xf32>
    %380 = vector.broadcast %361 : vector<1x32xf32> to vector<8x32xf32>
    %381 = arith.mulf %379, %380 : vector<8x32xf32>
    %382 = vector.broadcast %363 : vector<1x32xf32> to vector<8x32xf32>
    %383 = arith.addf %381, %382 : vector<8x32xf32>
    %c1_144 = arith.constant 1 : index
    %c0_145 = arith.constant 0 : index
    %c0_146 = arith.constant 0 : index
    %384 = vector.load %arg13[%c1_144, %c0_145, %c0_146] : memref<2x32x64xbf16, #tpu.memory_space<vmem>>, vector<1x32x64xbf16>
    %385 = vector.shape_cast %384 : vector<1x32x64xbf16> to vector<32x64xbf16>
    %386 = arith.truncf %383 : vector<8x32xf32> to vector<8x32xbf16>
    %cst_147 = arith.constant dense<0.000000e+00> : vector<8x64xf32>
    %387 = tpu.matmul %386, %385, %cst_147 {dimension_numbers = #tpu.dot_dimension_numbers<[1], [0], [0], [1], [0, 0, 1, 1], [], []>} : vector<8x32xbf16>, vector<32x64xbf16>, vector<8x64xf32> -> vector<8x64xf32>
    %c1_148 = arith.constant 1 : index
    %c0_149 = arith.constant 0 : index
    %c0_150 = arith.constant 0 : index
    %388 = vector.load %arg14[%c1_148, %c0_149, %c0_150] : memref<2x1x64xf32, #tpu.memory_space<vmem>>, vector<1x1x64xf32>
    %389 = vector.shape_cast %388 : vector<1x1x64xf32> to vector<1x64xf32>
    %390 = vector.broadcast %389 : vector<1x64xf32> to vector<8x64xf32>
    %391 = arith.addf %387, %390 : vector<8x64xf32>
    %cst_151 = arith.constant 5.000000e-01 : f32
    %392 = vector.broadcast %cst_151 : f32 to vector<8x64xf32>
    %393 = arith.mulf %392, %391 : vector<8x64xf32>
    %cst_152 = arith.constant 4.471500e-02 : f32
    %394 = vector.broadcast %cst_152 : f32 to vector<8x64xf32>
    %395 = arith.mulf %394, %391 : vector<8x64xf32>
    %396 = arith.mulf %395, %391 : vector<8x64xf32>
    %397 = arith.mulf %396, %391 : vector<8x64xf32>
    %398 = arith.addf %391, %397 : vector<8x64xf32>
    %cst_153 = arith.constant 0.797884583 : f32
    %399 = vector.broadcast %cst_153 : f32 to vector<8x64xf32>
    %400 = arith.mulf %399, %398 : vector<8x64xf32>
    %401 = math.tanh %400 : vector<8x64xf32>
    %cst_154 = arith.constant 1.000000e+00 : f32
    %402 = vector.broadcast %cst_154 : f32 to vector<8x64xf32>
    %403 = arith.addf %402, %401 : vector<8x64xf32>
    %404 = arith.mulf %393, %403 : vector<8x64xf32>
    %c1_155 = arith.constant 1 : index
    %c0_156 = arith.constant 0 : index
    %c0_157 = arith.constant 0 : index
    %405 = vector.load %arg15[%c1_155, %c0_156, %c0_157] : memref<2x64x32xbf16, #tpu.memory_space<vmem>>, vector<1x64x32xbf16>
    %406 = vector.shape_cast %405 : vector<1x64x32xbf16> to vector<64x32xbf16>
    %407 = arith.truncf %404 : vector<8x64xf32> to vector<8x64xbf16>
    %cst_158 = arith.constant dense<0.000000e+00> : vector<8x32xf32>
    %408 = tpu.matmul %407, %406, %cst_158 {dimension_numbers = #tpu.dot_dimension_numbers<[1], [0], [0], [1], [0, 0, 1, 1], [], []>} : vector<8x64xbf16>, vector<64x32xbf16>, vector<8x32xf32> -> vector<8x32xf32>
    %c1_159 = arith.constant 1 : index
    %c0_160 = arith.constant 0 : index
    %c0_161 = arith.constant 0 : index
    %409 = vector.load %arg16[%c1_159, %c0_160, %c0_161] : memref<2x1x32xf32, #tpu.memory_space<vmem>>, vector<1x1x32xf32>
    %410 = vector.shape_cast %409 : vector<1x1x32xf32> to vector<1x32xf32>
    %411 = vector.broadcast %410 : vector<1x32xf32> to vector<8x32xf32>
    %412 = arith.addf %408, %411 : vector<8x32xf32>
    %413 = arith.addf %412, %383 : vector<8x32xf32>
    %c1_162 = arith.constant 1 : index
    %c0_163 = arith.constant 0 : index
    %c0_164 = arith.constant 0 : index
    %414 = vector.load %arg17[%c1_162, %c0_163, %c0_164] : memref<2x1x32xf32, #tpu.memory_space<vmem>>, vector<1x1x32xf32>
    %415 = vector.shape_cast %414 : vector<1x1x32xf32> to vector<1x32xf32>
    %c1_165 = arith.constant 1 : index
    %c0_166 = arith.constant 0 : index
    %c0_167 = arith.constant 0 : index
    %416 = vector.load %arg18[%c1_165, %c0_166, %c0_167] : memref<2x1x32xf32, #tpu.memory_space<vmem>>, vector<1x1x32xf32>
    %417 = vector.shape_cast %416 : vector<1x1x32xf32> to vector<1x32xf32>
    %cst_168 = arith.constant dense<0.000000e+00> : vector<8xf32>
    %418 = vector.multi_reduction <add>, %413, %cst_168 [1] : vector<8x32xf32> to vector<8xf32>
    %419 = vector.shape_cast %418 : vector<8xf32> to vector<8x1xf32>
    %cst_169 = arith.constant 3.200000e+01 : f32
    %420 = vector.broadcast %cst_169 : f32 to vector<8x1xf32>
    %421 = arith.divf %419, %420 : vector<8x1xf32>
    %422 = vector.broadcast %421 : vector<8x1xf32> to vector<8x32xf32>
    %423 = arith.subf %413, %422 : vector<8x32xf32>
    %424 = arith.mulf %423, %423 : vector<8x32xf32>
    %cst_170 = arith.constant dense<0.000000e+00> : vector<8xf32>
    %425 = vector.multi_reduction <add>, %424, %cst_170 [1] : vector<8x32xf32> to vector<8xf32>
    %426 = vector.shape_cast %425 : vector<8xf32> to vector<8x1xf32>
    %cst_171 = arith.constant 3.200000e+01 : f32
    %427 = vector.broadcast %cst_171 : f32 to vector<8x1xf32>
    %428 = arith.divf %426, %427 : vector<8x1xf32>
    %cst_172 = arith.constant 9.99999996E-13 : f32
    %429 = vector.broadcast %cst_172 : f32 to vector<8x1xf32>
    %430 = arith.addf %428, %429 : vector<8x1xf32>
    %431 = math.rsqrt %430 : vector<8x1xf32>
    %432 = vector.broadcast %431 : vector<8x1xf32> to vector<8x32xf32>
    %433 = arith.mulf %423, %432 : vector<8x32xf32>
    %434 = vector.broadcast %415 : vector<1x32xf32> to vector<8x32xf32>
    %435 = arith.mulf %433, %434 : vector<8x32xf32>
    %436 = vector.broadcast %417 : vector<1x32xf32> to vector<8x32xf32>
    %437 = arith.addf %435, %436 : vector<8x32xf32>
    %438 = arith.subf %437, %28 : vector<8x32xf32>
    %c0_173 = arith.constant 0 : index
    %c0_174 = arith.constant 0 : index
    %439 = vector.load %arg19[%c0_173, %c0_174] : memref<32x32xbf16, #tpu.memory_space<vmem>>, vector<32x32xbf16>
    %440 = arith.truncf %438 : vector<8x32xf32> to vector<8x32xbf16>
    %cst_175 = arith.constant dense<0.000000e+00> : vector<8x32xf32>
    %441 = tpu.matmul %440, %439, %cst_175 {dimension_numbers = #tpu.dot_dimension_numbers<[1], [0], [0], [1], [0, 0, 1, 1], [], []>} : vector<8x32xbf16>, vector<32x32xbf16>, vector<8x32xf32> -> vector<8x32xf32>
    %c0_176 = arith.constant 0 : index
    %c0_177 = arith.constant 0 : index
    %442 = vector.load %arg20[%c0_176, %c0_177] : memref<32x32xbf16, #tpu.memory_space<vmem>>, vector<32x32xbf16>
    %443 = arith.truncf %437 : vector<8x32xf32> to vector<8x32xbf16>
    %cst_178 = arith.constant dense<0.000000e+00> : vector<8x32xf32>
    %444 = tpu.matmul %443, %442, %cst_178 {dimension_numbers = #tpu.dot_dimension_numbers<[1], [0], [0], [1], [0, 0, 1, 1], [], []>} : vector<8x32xbf16>, vector<32x32xbf16>, vector<8x32xf32> -> vector<8x32xf32>
    %445 = arith.addf %441, %444 : vector<8x32xf32>
    %c0_179 = arith.constant 0 : index
    %c0_180 = arith.constant 0 : index
    %446 = vector.load %arg21[%c0_179, %c0_180] : memref<1x32xf32, #tpu.memory_space<vmem>>, vector<1x32xf32>
    %447 = vector.broadcast %446 : vector<1x32xf32> to vector<8x32xf32>
    %448 = arith.addf %445, %447 : vector<8x32xf32>
    %c0_181 = arith.constant 0 : index
    %c0_182 = arith.constant 0 : index
    %449 = vector.load %arg22[%c0_181, %c0_182] : memref<32x32xbf16, #tpu.memory_space<vmem>>, vector<32x32xbf16>
    %450 = arith.truncf %448 : vector<8x32xf32> to vector<8x32xbf16>
    %cst_183 = arith.constant dense<0.000000e+00> : vector<8x32xf32>
    %451 = tpu.matmul %450, %449, %cst_183 {dimension_numbers = #tpu.dot_dimension_numbers<[1], [0], [0], [1], [0, 0, 1, 1], [], []>} : vector<8x32xbf16>, vector<32x32xbf16>, vector<8x32xf32> -> vector<8x32xf32>
    %c0_184 = arith.constant 0 : index
    %c0_185 = arith.constant 0 : index
    %452 = vector.load %arg23[%c0_184, %c0_185] : memref<1x32xf32, #tpu.memory_space<vmem>>, vector<1x32xf32>
    %453 = vector.broadcast %452 : vector<1x32xf32> to vector<8x32xf32>
    %454 = arith.addf %451, %453 : vector<8x32xf32>
    %cst_186 = arith.constant 5.000000e-01 : f32
    %455 = vector.broadcast %cst_186 : f32 to vector<8x32xf32>
    %456 = arith.mulf %455, %454 : vector<8x32xf32>
    %cst_187 = arith.constant 4.471500e-02 : f32
    %457 = vector.broadcast %cst_187 : f32 to vector<8x32xf32>
    %458 = arith.mulf %457, %454 : vector<8x32xf32>
    %459 = arith.mulf %458, %454 : vector<8x32xf32>
    %460 = arith.mulf %459, %454 : vector<8x32xf32>
    %461 = arith.addf %454, %460 : vector<8x32xf32>
    %cst_188 = arith.constant 0.797884583 : f32
    %462 = vector.broadcast %cst_188 : f32 to vector<8x32xf32>
    %463 = arith.mulf %462, %461 : vector<8x32xf32>
    %464 = math.tanh %463 : vector<8x32xf32>
    %cst_189 = arith.constant 1.000000e+00 : f32
    %465 = vector.broadcast %cst_189 : f32 to vector<8x32xf32>
    %466 = arith.addf %465, %464 : vector<8x32xf32>
    %467 = arith.mulf %456, %466 : vector<8x32xf32>
    %c0_190 = arith.constant 0 : index
    %c0_191 = arith.constant 0 : index
    %468 = vector.load %arg24[%c0_190, %c0_191] : memref<1x32xf32, #tpu.memory_space<vmem>>, vector<1x32xf32>
    %c0_192 = arith.constant 0 : index
    %c0_193 = arith.constant 0 : index
    %469 = vector.load %arg25[%c0_192, %c0_193] : memref<1x32xf32, #tpu.memory_space<vmem>>, vector<1x32xf32>
    %cst_194 = arith.constant dense<0.000000e+00> : vector<8xf32>
    %470 = vector.multi_reduction <add>, %467, %cst_194 [1] : vector<8x32xf32> to vector<8xf32>
    %471 = vector.shape_cast %470 : vector<8xf32> to vector<8x1xf32>
    %cst_195 = arith.constant 3.200000e+01 : f32
    %472 = vector.broadcast %cst_195 : f32 to vector<8x1xf32>
    %473 = arith.divf %471, %472 : vector<8x1xf32>
    %474 = vector.broadcast %473 : vector<8x1xf32> to vector<8x32xf32>
    %475 = arith.subf %467, %474 : vector<8x32xf32>
    %476 = arith.mulf %475, %475 : vector<8x32xf32>
    %cst_196 = arith.constant dense<0.000000e+00> : vector<8xf32>
    %477 = vector.multi_reduction <add>, %476, %cst_196 [1] : vector<8x32xf32> to vector<8xf32>
    %478 = vector.shape_cast %477 : vector<8xf32> to vector<8x1xf32>
    %cst_197 = arith.constant 3.200000e+01 : f32
    %479 = vector.broadcast %cst_197 : f32 to vector<8x1xf32>
    %480 = arith.divf %478, %479 : vector<8x1xf32>
    %cst_198 = arith.constant 9.99999996E-13 : f32
    %481 = vector.broadcast %cst_198 : f32 to vector<8x1xf32>
    %482 = arith.addf %480, %481 : vector<8x1xf32>
    %483 = math.rsqrt %482 : vector<8x1xf32>
    %484 = vector.broadcast %483 : vector<8x1xf32> to vector<8x32xf32>
    %485 = arith.mulf %475, %484 : vector<8x32xf32>
    %486 = vector.broadcast %468 : vector<1x32xf32> to vector<8x32xf32>
    %487 = arith.mulf %485, %486 : vector<8x32xf32>
    %488 = vector.broadcast %469 : vector<1x32xf32> to vector<8x32xf32>
    %489 = arith.addf %487, %488 : vector<8x32xf32>
    %c0_199 = arith.constant 0 : index
    %c0_200 = arith.constant 0 : index
    %490 = vector.load %arg26[%c0_199, %c0_200] : memref<32x128xbf16, #tpu.memory_space<vmem>>, vector<32x128xbf16>
    %491 = arith.truncf %489 : vector<8x32xf32> to vector<8x32xbf16>
    %cst_201 = arith.constant dense<0.000000e+00> : vector<8x128xf32>
    %492 = tpu.matmul %491, %490, %cst_201 {dimension_numbers = #tpu.dot_dimension_numbers<[1], [0], [0], [1], [0, 0, 1, 1], [], []>} : vector<8x32xbf16>, vector<32x128xbf16>, vector<8x128xf32> -> vector<8x128xf32>
    %c0_202 = arith.constant 0 : index
    %c0_203 = arith.constant 0 : index
    %493 = vector.load %arg27[%c0_202, %c0_203] : memref<1x128xf32, #tpu.memory_space<vmem>>, vector<1x128xf32>
    %494 = vector.broadcast %493 : vector<1x128xf32> to vector<8x128xf32>
    %495 = arith.addf %492, %494 : vector<8x128xf32>
    %496 = vector.shape_cast %495 : vector<8x128xf32> to vector<1x8x128xf32>
    %c0_204 = arith.constant 0 : index
    %c0_205 = arith.constant 0 : index
    %c0_206 = arith.constant 0 : index
    %497 = vector.load %arg28[%c0_204, %c0_205, %c0_206] : memref<1x8x128xf32, #tpu.memory_space<vmem>>, vector<1x8x128xf32>
    tpu.vector_store %arg28[%c0_204, %c0_205, %c0_206], %496 {strides = array<i32>} : memref<1x8x128xf32, #tpu.memory_space<vmem>>, vector<1x8x128xf32>,
    return
  }
  func.func @transform_0(%arg0: i32) -> (i32, i32, i32) {
    %c0_i32 = arith.constant 0 : i32
    %c0_i32_0 = arith.constant 0 : i32
    %c0_i32_1 = arith.constant 0 : i32
    return %arg0, %c0_i32, %c0_i32_0 : i32, i32, i32
  }
  func.func @transform_1(%arg0: i32) -> (i32, i32) {
    %c0_i32 = arith.constant 0 : i32
    %c0_i32_0 = arith.constant 0 : i32
    %c0_i32_1 = arith.constant 0 : i32
    return %c0_i32, %c0_i32_0 : i32, i32
  }
  func.func @transform_2(%arg0: i32) -> (i32, i32, i32) {
    %c0_i32 = arith.constant 0 : i32
    %c0_i32_0 = arith.constant 0 : i32
    %c0_i32_1 = arith.constant 0 : i32
    return %arg0, %c0_i32, %c0_i32_0 : i32, i32, i32
  }
  func.func @transform_3(%arg0: i32) -> (i32, i32, i32) {
    %c0_i32 = arith.constant 0 : i32
    %c0_i32_0 = arith.constant 0 : i32
    %c0_i32_1 = arith.constant 0 : i32
    return %arg0, %c0_i32, %c0_i32_0 : i32, i32, i32
  }
  func.func @transform_4(%arg0: i32) -> (i32, i32) {
    %c0_i32 = arith.constant 0 : i32
    %c0_i32_0 = arith.constant 0 : i32
    %c0_i32_1 = arith.constant 0 : i32
    return %c0_i32, %c0_i32_0 : i32, i32
  }
  func.func @transform_5(%arg0: i32) -> (i32, i32) {
    %c0_i32 = arith.constant 0 : i32
    %c0_i32_0 = arith.constant 0 : i32
    %c0_i32_1 = arith.constant 0 : i32
    return %c0_i32, %c0_i32_0 : i32, i32
  }
  func.func @transform_6(%arg0: i32) -> (i32, i32, i32) {
    %c0_i32 = arith.constant 0 : i32
    %c0_i32_0 = arith.constant 0 : i32
    %c0_i32_1 = arith.constant 0 : i32
    %c0_i32_2 = arith.constant 0 : i32
    return %c0_i32, %c0_i32_0, %c0_i32_1 : i32, i32, i32
  }
  func.func @transform_7(%arg0: i32) -> (i32, i32, i32) {
    %c0_i32 = arith.constant 0 : i32
    %c0_i32_0 = arith.constant 0 : i32
    %c0_i32_1 = arith.constant 0 : i32
    %c0_i32_2 = arith.constant 0 : i32
    return %c0_i32, %c0_i32_0, %c0_i32_1 : i32, i32, i32
  }
  func.func @transform_8(%arg0: i32) -> (i32, i32, i32) {
    %c0_i32 = arith.constant 0 : i32
    %c0_i32_0 = arith.constant 0 : i32
    %c0_i32_1 = arith.constant 0 : i32
    %c0_i32_2 = arith.constant 0 : i32
    return %c0_i32, %c0_i32_0, %c0_i32_1 : i32, i32, i32
  }
  func.func @transform_9(%arg0: i32) -> (i32, i32, i32) {
    %c0_i32 = arith.constant 0 : i32
    %c0_i32_0 = arith.constant 0 : i32
    %c0_i32_1 = arith.constant 0 : i32
    %c0_i32_2 = arith.constant 0 : i32
    return %c0_i32, %c0_i32_0, %c0_i32_1 : i32, i32, i32
  }
  func.func @transform_10(%arg0: i32) -> (i32, i32, i32) {
    %c0_i32 = arith.constant 0 : i32
    %c0_i32_0 = arith.constant 0 : i32
    %c0_i32_1 = arith.constant 0 : i32
    %c0_i32_2 = arith.constant 0 : i32
    return %c0_i32, %c0_i32_0, %c0_i32_1 : i32, i32, i32
  }
  func.func @transform_11(%arg0: i32) -> (i32, i32, i32) {
    %c0_i32 = arith.constant 0 : i32
    %c0_i32_0 = arith.constant 0 : i32
    %c0_i32_1 = arith.constant 0 : i32
    %c0_i32_2 = arith.constant 0 : i32
    return %c0_i32, %c0_i32_0, %c0_i32_1 : i32, i32, i32
  }
  func.func @transform_12(%arg0: i32) -> (i32, i32, i32) {
    %c0_i32 = arith.constant 0 : i32
    %c0_i32_0 = arith.constant 0 : i32
    %c0_i32_1 = arith.constant 0 : i32
    %c0_i32_2 = arith.constant 0 : i32
    return %c0_i32, %c0_i32_0, %c0_i32_1 : i32, i32, i32
  }
  func.func @transform_13(%arg0: i32) -> (i32, i32, i32) {
    %c0_i32 = arith.constant 0 : i32
    %c0_i32_0 = arith.constant 0 : i32
    %c0_i32_1 = arith.constant 0 : i32
    %c0_i32_2 = arith.constant 0 : i32
    return %c0_i32, %c0_i32_0, %c0_i32_1 : i32, i32, i32
  }
  func.func @transform_14(%arg0: i32) -> (i32, i32, i32) {
    %c0_i32 = arith.constant 0 : i32
    %c0_i32_0 = arith.constant 0 : i32
    %c0_i32_1 = arith.constant 0 : i32
    %c0_i32_2 = arith.constant 0 : i32
    return %c0_i32, %c0_i32_0, %c0_i32_1 : i32, i32, i32
  }
  func.func @transform_15(%arg0: i32) -> (i32, i32, i32) {
    %c0_i32 = arith.constant 0 : i32
    %c0_i32_0 = arith.constant 0 : i32
    %c0_i32_1 = arith.constant 0 : i32
    %c0_i32_2 = arith.constant 0 : i32
    return %c0_i32, %c0_i32_0, %c0_i32_1 : i32, i32, i32
  }
  func.func @transform_16(%arg0: i32) -> (i32, i32, i32) {
    %c0_i32 = arith.constant 0 : i32
    %c0_i32_0 = arith.constant 0 : i32
    %c0_i32_1 = arith.constant 0 : i32
    %c0_i32_2 = arith.constant 0 : i32
    return %c0_i32, %c0_i32_0, %c0_i32_1 : i32, i32, i32
  }
  func.func @transform_17(%arg0: i32) -> (i32, i32, i32) {
    %c0_i32 = arith.constant 0 : i32
    %c0_i32_0 = arith.constant 0 : i32
    %c0_i32_1 = arith.constant 0 : i32
    %c0_i32_2 = arith.constant 0 : i32
    return %c0_i32, %c0_i32_0, %c0_i32_1 : i32, i32, i32
  }
  func.func @transform_18(%arg0: i32) -> (i32, i32) {
    %c0_i32 = arith.constant 0 : i32
    %c0_i32_0 = arith.constant 0 : i32
    %c0_i32_1 = arith.constant 0 : i32
    return %c0_i32, %c0_i32_0 : i32, i32
  }
  func.func @transform_19(%arg0: i32) -> (i32, i32) {
    %c0_i32 = arith.constant 0 : i32
    %c0_i32_0 = arith.constant 0 : i32
    %c0_i32_1 = arith.constant 0 : i32
    return %c0_i32, %c0_i32_0 : i32, i32
  }
  func.func @transform_20(%arg0: i32) -> (i32, i32) {
    %c0_i32 = arith.constant 0 : i32
    %c0_i32_0 = arith.constant 0 : i32
    %c0_i32_1 = arith.constant 0 : i32
    return %c0_i32, %c0_i32_0 : i32, i32
  }
  func.func @transform_21(%arg0: i32) -> (i32, i32) {
    %c0_i32 = arith.constant 0 : i32
    %c0_i32_0 = arith.constant 0 : i32
    %c0_i32_1 = arith.constant 0 : i32
    return %c0_i32, %c0_i32_0 : i32, i32
  }
  func.func @transform_22(%arg0: i32) -> (i32, i32) {
    %c0_i32 = arith.constant 0 : i32
    %c0_i32_0 = arith.constant 0 : i32
    %c0_i32_1 = arith.constant 0 : i32
    return %c0_i32, %c0_i32_0 : i32, i32
  }
  func.func @transform_23(%arg0: i32) -> (i32, i32) {
    %c0_i32 = arith.constant 0 : i32
    %c0_i32_0 = arith.constant 0 : i32
    %c0_i32_1 = arith.constant 0 : i32
    return %c0_i32, %c0_i32_0 : i32, i32
  }
  func.func @transform_24(%arg0: i32) -> (i32, i32) {
    %c0_i32 = arith.constant 0 : i32
    %c0_i32_0 = arith.constant 0 : i32
    %c0_i32_1 = arith.constant 0 : i32
    return %c0_i32, %c0_i32_0 : i32, i32
  }
  func.func @transform_25(%arg0: i32) -> (i32, i32) {
    %c0_i32 = arith.constant 0 : i32
    %c0_i32_0 = arith.constant 0 : i32
    %c0_i32_1 = arith.constant 0 : i32
    return %c0_i32, %c0_i32_0 : i32, i32
  }
  func.func @transform_26(%arg0: i32) -> (i32, i32) {
    %c0_i32 = arith.constant 0 : i32
    %c0_i32_0 = arith.constant 0 : i32
    %c0_i32_1 = arith.constant 0 : i32
    return %c0_i32, %c0_i32_0 : i32, i32
  }
  func.func @transform_27(%arg0: i32) -> (i32, i32, i32) {
    %c0_i32 = arith.constant 0 : i32
    %c0_i32_0 = arith.constant 0 : i32
    %c0_i32_1 = arith.constant 0 : i32
    return %arg0, %c0_i32, %c0_i32_0 : i32, i32, i32
  }
}

</mosaic_0001>

<llo_original>
// kernel: masked_lm_forward.1
$region0: #{masked_lm_forward.1}
  #allocation0 [shape = 'u32[]', space=smem, size = 0x4, offset = 0x4, fixed_abs, tag = 'smem constant byte address 0x4 - core index']
  #allocation1 [shape = 'u32[144,128]{1,0:T(1,128)}', space=vmem, size = 0x12000, scoped, tag = 'internal scratch']
  %s0 = inlined_call_operand.vmem [shape: f32[2,8,32], index: 0, kind: input, shape index: {}]
  %s1 = inlined_call_operand.vmem [shape: f32[8,32], index: 1, kind: input, shape index: {}]
  %s2 = inlined_call_operand.vmem [shape: f32[2,8,32], index: 2, kind: input, shape index: {}]
  %s3 = inlined_call_operand.vmem [shape: f32[2,1,8], index: 3, kind: input, shape index: {}]
  %s4 = inlined_call_operand.vmem [shape: f32[1,32], index: 4, kind: input, shape index: {}]
  %s5 = inlined_call_operand.vmem [shape: f32[1,32], index: 5, kind: input, shape index: {}]
  %s6 = inlined_call_operand.vmem [shape: bf16[2,32,96], index: 6, kind: input, shape index: {}]
  %s7 = inlined_call_operand.vmem [shape: f32[2,1,96], index: 7, kind: input, shape index: {}]
  %s8 = inlined_call_operand.vmem [shape: bf16[2,32,32], index: 8, kind: input, shape index: {}]
  %s9 = inlined_call_operand.vmem [shape: f32[2,1,32], index: 9, kind: input, shape index: {}]
  %s10 = inlined_call_operand.vmem [shape: f32[2,1,32], index: 10, kind: input, shape index: {}]
  %s11 = inlined_call_operand.vmem [shape: f32[2,1,32], index: 11, kind: input, shape index: {}]
  %s12 = inlined_call_operand.vmem [shape: bf16[2,32,64], index: 12, kind: input, shape index: {}]
  %s13 = inlined_call_operand.vmem [shape: f32[2,1,64], index: 13, kind: input, shape index: {}]
  %s14 = inlined_call_operand.vmem [shape: bf16[2,64,32], index: 14, kind: input, shape index: {}]
  %s15 = inlined_call_operand.vmem [shape: f32[2,1,32], index: 15, kind: input, shape index: {}]
  %s16 = inlined_call_operand.vmem [shape: f32[2,1,32], index: 16, kind: input, shape index: {}]
  %s17 = inlined_call_operand.vmem [shape: f32[2,1,32], index: 17, kind: input, shape index: {}]
  %s18 = inlined_call_operand.vmem [shape: bf16[32,32], index: 18, kind: input, shape index: {}]
  %s19 = inlined_call_operand.vmem [shape: bf16[32,32], index: 19, kind: input, shape index: {}]
  %s20 = inlined_call_operand.vmem [shape: f32[1,32], index: 20, kind: input, shape index: {}]
  %s21 = inlined_call_operand.vmem [shape: bf16[32,32], index: 21, kind: input, shape index: {}]
  %s22 = inlined_call_operand.vmem [shape: f32[1,32], index: 22, kind: input, shape index: {}]
  %s23 = inlined_call_operand.vmem [shape: f32[1,32], index: 23, kind: input, shape index: {}]
  %s24 = inlined_call_operand.vmem [shape: f32[1,32], index: 24, kind: input, shape index: {}]
  %s25 = inlined_call_operand.vmem [shape: bf16[32,128], index: 25, kind: input, shape index: {}]
  %s26 = inlined_call_operand.vmem [shape: f32[1,128], index: 26, kind: input, shape index: {}]
  %s27 = inlined_call_operand.hbm [shape: f32[2,8,128], index: 27, kind: output, shape index: {}]
  %s28 = sld [smem:[#allocation0]]
  $region141: #{masked_lm_forward.1} parent=0
    _
  %s30 = ssub.s32 1, %s28
  %s31 = scalar_select 0, %s30, %s28
  $region1: #{masked_lm_forward.1} parent=0
    #allocation2 [shape = 'u8[8192]{0}', space=vmem, size = 0x2000, scoped, tag = 'output window, operand 0']
    #allocation3 [shape = 's32[2]{0}', space=sflag, size = 0x8, scoped, tag = 'scoped memory for masked_lm_forward.1']
    %32 = vsyncpa [#allocation3], 0
    %s33 = scalar_lea.sflag [#allocation3], 1
    %34 = vsyncpa %s33, 0
    loop: start=0, step=1, limit=4
    $region2: #{masked_lm_forward.1} parent=1 // loop_pre_header
      _
    $region3: #{masked_lm_forward.1} parent=1 // loop_header
      %s36 = sphi 0, %s40
      %p37 = scmp.ge.s32.totalorder %s36, 4
      %s46 = sphi 0, %s48
      %s49 = sphi 0, %s46
      %s50 = sphi 0, %s49
      %s66 = sphi 0, %s50
      %s70 = sphi 0, %s70
      %s72 = sphi 0, %s70
      %s73 = sphi 0, %s72
      %s87 = sphi 0, %s73
      %s93 = sphi 0, %s95
      %s96 = sphi 0, %s93
      %s97 = sphi 0, %s96
      %s113 = sphi 0, %s97
      %s119 = sphi 0, %s121
      %s122 = sphi 0, %s119
      %s123 = sphi 0, %s122
      %s139 = sphi 0, %s123
      %s143 = sphi 0, %s143
      %s145 = sphi 0, %s143
      %s146 = sphi 0, %s145
      %s160 = sphi 0, %s146
      %s164 = sphi 0, %s164
      %s166 = sphi 0, %s164
      %s167 = sphi 0, %s166
      %s181 = sphi 0, %s167
      %s185 = sphi 0, %s185
      %s187 = sphi 0, %s185
      %s188 = sphi 0, %s187
      %s202 = sphi 0, %s188
      %s206 = sphi 0, %s206
      %s208 = sphi 0, %s206
      %s209 = sphi 0, %s208
      %s223 = sphi 0, %s209
      %s227 = sphi 0, %s227
      %s229 = sphi 0, %s227
      %s230 = sphi 0, %s229
      %s244 = sphi 0, %s230
      %s248 = sphi 0, %s248
      %s250 = sphi 0, %s248
      %s251 = sphi 0, %s250
      %s265 = sphi 0, %s251
      %s269 = sphi 0, %s269
      %s271 = sphi 0, %s269
      %s272 = sphi 0, %s271
      %s286 = sphi 0, %s272
      %s290 = sphi 0, %s290
      %s292 = sphi 0, %s290
      %s293 = sphi 0, %s292
      %s307 = sphi 0, %s293
      %s311 = sphi 0, %s311
      %s313 = sphi 0, %s311
      %s314 = sphi 0, %s313
      %s328 = sphi 0, %s314
      %s332 = sphi 0, %s332
      %s334 = sphi 0, %s332
      %s335 = sphi 0, %s334
      %s349 = sphi 0, %s335
      %s353 = sphi 0, %s353
      %s355 = sphi 0, %s353
      %s356 = sphi 0, %s355
      %s370 = sphi 0, %s356
      %s374 = sphi 0, %s374
      %s376 = sphi 0, %s374
      %s377 = sphi 0, %s376
      %s391 = sphi 0, %s377
      %s395 = sphi 0, %s395
      %s397 = sphi 0, %s395
      %s398 = sphi 0, %s397
      %s412 = sphi 0, %s398
      %s416 = sphi 0, %s416
      %s418 = sphi 0, %s416
      %s419 = sphi 0, %s418
      %s433 = sphi 0, %s419
      %s437 = sphi 0, %s437
      %s439 = sphi 0, %s437
      %s440 = sphi 0, %s439
      %s454 = sphi 0, %s440
      %s458 = sphi 0, %s458
      %s460 = sphi 0, %s458
      %s461 = sphi 0, %s460
      %s475 = sphi 0, %s461
      %s479 = sphi 0, %s479
      %s481 = sphi 0, %s479
      %s482 = sphi 0, %s481
      %s496 = sphi 0, %s482
      %s500 = sphi 0, %s500
      %s502 = sphi 0, %s500
      %s503 = sphi 0, %s502
      %s517 = sphi 0, %s503
      %s521 = sphi 0, %s521
      %s523 = sphi 0, %s521
      %s524 = sphi 0, %s523
      %s538 = sphi 0, %s524
      %s542 = sphi 0, %s542
      %s544 = sphi 0, %s542
      %s545 = sphi 0, %s544
      %s559 = sphi 0, %s545
      %s563 = sphi 0, %s563
      %s565 = sphi 0, %s563
      %s566 = sphi 0, %s565
      %s580 = sphi 0, %s566
      %s584 = sphi 0, %s584
      %s586 = sphi 0, %s584
      %s587 = sphi 0, %s586
      %s601 = sphi 0, %s587
      %s605 = sphi 0, %s605
      %s607 = sphi 0, %s605
      %s608 = sphi 0, %s607
      %s622 = sphi 0, %s608
      %s628 = sphi 0, %s630
      %s631 = sphi 0, %s628
      %s632 = sphi 0, %s631
      %s648 = sphi 0, %s632
    $region4: #{masked_lm_forward.1} parent=1 // loop_header_branch
      %39 = sbr.rel (%p37) target = $region8
    $region5: #{masked_lm_forward.1} parent=1 // loop_body
      %s41 = ssub.s32 %s36, 1
      %s42 = ssub.s32 %s36, 2
      %s43 = sadd.s32 %s36, 1
      %s44 = ssub.s32 %s36, %s43
      %p45 = scmp.eq.s32.totalorder %s44, 0
      %s47 = sadd.s32 %s46, 1
      %s48 = scalar_select %p45, %s46, %s47
      %p51 = pneg %p45
      %p52 = scmp.eq.s32.totalorder %s36, 1
      %p53 = por %p51, %p52
      %p54 = scmp.ne.s32.totalorder %s46, %s49
      %p55 = scmp.eq.s32.totalorder %s36, 0
      %p56 = por %p54, %p55
      %p57 = scmp.ne.s32.totalorder %s46, %s49
      %p58 = scmp.eq.s32.totalorder %s41, 1
      %p59 = por %p57, %p58
      %p60 = scmp.ne.s32.totalorder %s49, %s50
      %p61 = scmp.eq.s32.totalorder %s41, 0
      %p62 = por %p60, %p61
      %p63 = scmp.ne.s32.totalorder %s49, %s50
      %p64 = scmp.eq.s32.totalorder %s42, 1
      %p65 = por %p63, %p64
      %p67 = scmp.ne.s32.totalorder %s50, %s66
      %p68 = scmp.eq.s32.totalorder %s42, 0
      %p69 = por %p67, %p68
      %s71 = sadd.s32 %s70, 1
      %p74 = scmp.eq.s32.totalorder %s36, 1
      %p75 = scmp.ne.s32.totalorder %s70, %s72
      %p76 = scmp.eq.s32.totalorder %s36, 0
      %p77 = por %p75, %p76
      %p78 = scmp.ne.s32.totalorder %s70, %s72
      %p79 = scmp.eq.s32.totalorder %s41, 1
      %p80 = por %p78, %p79
      %p81 = scmp.ne.s32.totalorder %s72, %s73
      %p82 = scmp.eq.s32.totalorder %s41, 0
      %p83 = por %p81, %p82
      %p84 = scmp.ne.s32.totalorder %s72, %s73
      %p85 = scmp.eq.s32.totalorder %s42, 1
      %p86 = por %p84, %p85
      %p88 = scmp.ne.s32.totalorder %s73, %s87
      %p89 = scmp.eq.s32.totalorder %s42, 0
      %p90 = por %p88, %p89
      %s91 = ssub.s32 %s36, %s43
      %p92 = scmp.eq.s32.totalorder %s91, 0
      %s94 = sadd.s32 %s93, 1
      %s95 = scalar_select %p92, %s93, %s94
      %p98 = pneg %p92
      %p99 = scmp.eq.s32.totalorder %s36, 1
      %p100 = por %p98, %p99
      %p101 = scmp.ne.s32.totalorder %s93, %s96
      %p102 = scmp.eq.s32.totalorder %s36, 0
      %p103 = por %p101, %p102
      %p104 = scmp.ne.s32.totalorder %s93, %s96
      %p105 = scmp.eq.s32.totalorder %s41, 1
      %p106 = por %p104, %p105
      %p107 = scmp.ne.s32.totalorder %s96, %s97
      %p108 = scmp.eq.s32.totalorder %s41, 0
      %p109 = por %p107, %p108
      %p110 = scmp.ne.s32.totalorder %s96, %s97
      %p111 = scmp.eq.s32.totalorder %s42, 1
      %p112 = por %p110, %p111
      %p114 = scmp.ne.s32.totalorder %s97, %s113
      %p115 = scmp.eq.s32.totalorder %s42, 0
      %p116 = por %p114, %p115
      %s117 = ssub.s32 %s36, %s43
      %p118 = scmp.eq.s32.totalorder %s117, 0
      %s120 = sadd.s32 %s119, 1
      %s121 = scalar_select %p118, %s119, %s120
      %p124 = pneg %p118
      %p125 = scmp.eq.s32.totalorder %s36, 1
      %p126 = por %p124, %p125
      %p127 = scmp.ne.s32.totalorder %s119, %s122
      %p128 = scmp.eq.s32.totalorder %s36, 0
      %p129 = por %p127, %p128
      %p130 = scmp.ne.s32.totalorder %s119, %s122
      %p131 = scmp.eq.s32.totalorder %s41, 1
      %p132 = por %p130, %p131
      %p133 = scmp.ne.s32.totalorder %s122, %s123
      %p134 = scmp.eq.s32.totalorder %s41, 0
      %p135 = por %p133, %p134
      %p136 = scmp.ne.s32.totalorder %s122, %s123
      %p137 = scmp.eq.s32.totalorder %s42, 1
      %p138 = por %p136, %p137
      %p140 = scmp.ne.s32.totalorder %s123, %s139
      %p141 = scmp.eq.s32.totalorder %s42, 0
      %p142 = por %p140, %p141
      %s144 = sadd.s32 %s143, 1
      %p147 = scmp.eq.s32.totalorder %s36, 1
      %p148 = scmp.ne.s32.totalorder %s143, %s145
      %p149 = scmp.eq.s32.totalorder %s36, 0
      %p150 = por %p148, %p149
      %p151 = scmp.ne.s32.totalorder %s143, %s145
      %p152 = scmp.eq.s32.totalorder %s41, 1
      %p153 = por %p151, %p152
      %p154 = scmp.ne.s32.totalorder %s145, %s146
      %p155 = scmp.eq.s32.totalorder %s41, 0
      %p156 = por %p154, %p155
      %p157 = scmp.ne.s32.totalorder %s145, %s146
      %p158 = scmp.eq.s32.totalorder %s42, 1
      %p159 = por %p157, %p158
      %p161 = scmp.ne.s32.totalorder %s146, %s160
      %p162 = scmp.eq.s32.totalorder %s42, 0
      %p163 = por %p161, %p162
      %s165 = sadd.s32 %s164, 1
      %p168 = scmp.eq.s32.totalorder %s36, 1
      %p169 = scmp.ne.s32.totalorder %s164, %s166
      %p170 = scmp.eq.s32.totalorder %s36, 0
      %p171 = por %p169, %p170
      %p172 = scmp.ne.s32.totalorder %s164, %s166
      %p173 = scmp.eq.s32.totalorder %s41, 1
      %p174 = por %p172, %p173
      %p175 = scmp.ne.s32.totalorder %s166, %s167
      %p176 = scmp.eq.s32.totalorder %s41, 0
      %p177 = por %p175, %p176
      %p178 = scmp.ne.s32.totalorder %s166, %s167
      %p179 = scmp.eq.s32.totalorder %s42, 1
      %p180 = por %p178, %p179
      %p182 = scmp.ne.s32.totalorder %s167, %s181
      %p183 = scmp.eq.s32.totalorder %s42, 0
      %p184 = por %p182, %p183
      %s186 = sadd.s32 %s185, 1
      %p189 = scmp.eq.s32.totalorder %s36, 1
      %p190 = scmp.ne.s32.totalorder %s185, %s187
      %p191 = scmp.eq.s32.totalorder %s36, 0
      %p192 = por %p190, %p191
      %p193 = scmp.ne.s32.totalorder %s185, %s187
      %p194 = scmp.eq.s32.totalorder %s41, 1
      %p195 = por %p193, %p194
      %p196 = scmp.ne.s32.totalorder %s187, %s188
      %p197 = scmp.eq.s32.totalorder %s41, 0
      %p198 = por %p196, %p197
      %p199 = scmp.ne.s32.totalorder %s187, %s188
      %p200 = scmp.eq.s32.totalorder %s42, 1
      %p201 = por %p199, %p200
      %p203 = scmp.ne.s32.totalorder %s188, %s202
      %p204 = scmp.eq.s32.totalorder %s42, 0
      %p205 = por %p203, %p204
      %s207 = sadd.s32 %s206, 1
      %p210 = scmp.eq.s32.totalorder %s36, 1
      %p211 = scmp.ne.s32.totalorder %s206, %s208
      %p212 = scmp.eq.s32.totalorder %s36, 0
      %p213 = por %p211, %p212
      %p214 = scmp.ne.s32.totalorder %s206, %s208
      %p215 = scmp.eq.s32.totalorder %s41, 1
      %p216 = por %p214, %p215
      %p217 = scmp.ne.s32.totalorder %s208, %s209
      %p218 = scmp.eq.s32.totalorder %s41, 0
      %p219 = por %p217, %p218
      %p220 = scmp.ne.s32.totalorder %s208, %s209
      %p221 = scmp.eq.s32.totalorder %s42, 1
      %p222 = por %p220, %p221
      %p224 = scmp.ne.s32.totalorder %s209, %s223
      %p225 = scmp.eq.s32.totalorder %s42, 0
      %p226 = por %p224, %p225
      %s228 = sadd.s32 %s227, 1
      %p231 = scmp.eq.s32.totalorder %s36, 1
      %p232 = scmp.ne.s32.totalorder %s227, %s229
      %p233 = scmp.eq.s32.totalorder %s36, 0
      %p234 = por %p232, %p233
      %p235 = scmp.ne.s32.totalorder %s227, %s229
      %p236 = scmp.eq.s32.totalorder %s41, 1
      %p237 = por %p235, %p236
      %p238 = scmp.ne.s32.totalorder %s229, %s230
      %p239 = scmp.eq.s32.totalorder %s41, 0
      %p240 = por %p238, %p239
      %p241 = scmp.ne.s32.totalorder %s229, %s230
      %p242 = scmp.eq.s32.totalorder %s42, 1
      %p243 = por %p241, %p242
      %p245 = scmp.ne.s32.totalorder %s230, %s244
      %p246 = scmp.eq.s32.totalorder %s42, 0
      %p247 = por %p245, %p246
      %s249 = sadd.s32 %s248, 1
      %p252 = scmp.eq.s32.totalorder %s36, 1
      %p253 = scmp.ne.s32.totalorder %s248, %s250
      %p254 = scmp.eq.s32.totalorder %s36, 0
      %p255 = por %p253, %p254
      %p256 = scmp.ne.s32.totalorder %s248, %s250
      %p257 = scmp.eq.s32.totalorder %s41, 1
      %p258 = por %p256, %p257
      %p259 = scmp.ne.s32.totalorder %s250, %s251
      %p260 = scmp.eq.s32.totalorder %s41, 0
      %p261 = por %p259, %p260
      %p262 = scmp.ne.s32.totalorder %s250, %s251
      %p263 = scmp.eq.s32.totalorder %s42, 1
      %p264 = por %p262, %p263
      %p266 = scmp.ne.s32.totalorder %s251, %s265
      %p267 = scmp.eq.s32.totalorder %s42, 0
      %p268 = por %p266, %p267
      %s270 = sadd.s32 %s269, 1
      %p273 = scmp.eq.s32.totalorder %s36, 1
      %p274 = scmp.ne.s32.totalorder %s269, %s271
      %p275 = scmp.eq.s32.totalorder %s36, 0
      %p276 = por %p274, %p275
      %p277 = scmp.ne.s32.totalorder %s269, %s271
      %p278 = scmp.eq.s32.totalorder %s41, 1
      %p279 = por %p277, %p278
      %p280 = scmp.ne.s32.totalorder %s271, %s272
      %p281 = scmp.eq.s32.totalorder %s41, 0
      %p282 = por %p280, %p281
      %p283 = scmp.ne.s32.totalorder %s271, %s272
      %p284 = scmp.eq.s32.totalorder %s42, 1
      %p285 = por %p283, %p284
      %p287 = scmp.ne.s32.totalorder %s272, %s286
      %p288 = scmp.eq.s32.totalorder %s42, 0
      %p289 = por %p287, %p288
      %s291 = sadd.s32 %s290, 1
      %p294 = scmp.eq.s32.totalorder %s36, 1
      %p295 = scmp.ne.s32.totalorder %s290, %s292
      %p296 = scmp.eq.s32.totalorder %s36, 0
      %p297 = por %p295, %p296
      %p298 = scmp.ne.s32.totalorder %s290, %s292
      %p299 = scmp.eq.s32.totalorder %s41, 1
      %p300 = por %p298, %p299
      %p301 = scmp.ne.s32.totalorder %s292, %s293
      %p302 = scmp.eq.s32.totalorder %s41, 0
      %p303 = por %p301, %p302
      %p304 = scmp.ne.s32.totalorder %s292, %s293
      %p305 = scmp.eq.s32.totalorder %s42, 1
      %p306 = por %p304, %p305
      %p308 = scmp.ne.s32.totalorder %s293, %s307
      %p309 = scmp.eq.s32.totalorder %s42, 0
      %p310 = por %p308, %p309
      %s312 = sadd.s32 %s311, 1
      %p315 = scmp.eq.s32.totalorder %s36, 1
      %p316 = scmp.ne.s32.totalorder %s311, %s313
      %p317 = scmp.eq.s32.totalorder %s36, 0
      %p318 = por %p316, %p317
      %p319 = scmp.ne.s32.totalorder %s311, %s313
      %p320 = scmp.eq.s32.totalorder %s41, 1
      %p321 = por %p319, %p320
      %p322 = scmp.ne.s32.totalorder %s313, %s314
      %p323 = scmp.eq.s32.totalorder %s41, 0
      %p324 = por %p322, %p323
      %p325 = scmp.ne.s32.totalorder %s313, %s314
      %p326 = scmp.eq.s32.totalorder %s42, 1
      %p327 = por %p325, %p326
      %p329 = scmp.ne.s32.totalorder %s314, %s328
      %p330 = scmp.eq.s32.totalorder %s42, 0
      %p331 = por %p329, %p330
      %s333 = sadd.s32 %s332, 1
      %p336 = scmp.eq.s32.totalorder %s36, 1
      %p337 = scmp.ne.s32.totalorder %s332, %s334
      %p338 = scmp.eq.s32.totalorder %s36, 0
      %p339 = por %p337, %p338
      %p340 = scmp.ne.s32.totalorder %s332, %s334
      %p341 = scmp.eq.s32.totalorder %s41, 1
      %p342 = por %p340, %p341
      %p343 = scmp.ne.s32.totalorder %s334, %s335
      %p344 = scmp.eq.s32.totalorder %s41, 0
      %p345 = por %p343, %p344
      %p346 = scmp.ne.s32.totalorder %s334, %s335
      %p347 = scmp.eq.s32.totalorder %s42, 1
      %p348 = por %p346, %p347
      %p350 = scmp.ne.s32.totalorder %s335, %s349
      %p351 = scmp.eq.s32.totalorder %s42, 0
      %p352 = por %p350, %p351
      %s354 = sadd.s32 %s353, 1
      %p357 = scmp.eq.s32.totalorder %s36, 1
      %p358 = scmp.ne.s32.totalorder %s353, %s355
      %p359 = scmp.eq.s32.totalorder %s36, 0
      %p360 = por %p358, %p359
      %p361 = scmp.ne.s32.totalorder %s353, %s355
      %p362 = scmp.eq.s32.totalorder %s41, 1
      %p363 = por %p361, %p362
      %p364 = scmp.ne.s32.totalorder %s355, %s356
      %p365 = scmp.eq.s32.totalorder %s41, 0
      %p366 = por %p364, %p365
      %p367 = scmp.ne.s32.totalorder %s355, %s356
      %p368 = scmp.eq.s32.totalorder %s42, 1
      %p369 = por %p367, %p368
      %p371 = scmp.ne.s32.totalorder %s356, %s370
      %p372 = scmp.eq.s32.totalorder %s42, 0
      %p373 = por %p371, %p372
      %s375 = sadd.s32 %s374, 1
      %p378 = scmp.eq.s32.totalorder %s36, 1
      %p379 = scmp.ne.s32.totalorder %s374, %s376
      %p380 = scmp.eq.s32.totalorder %s36, 0
      %p381 = por %p379, %p380
      %p382 = scmp.ne.s32.totalorder %s374, %s376
      %p383 = scmp.eq.s32.totalorder %s41, 1
      %p384 = por %p382, %p383
      %p385 = scmp.ne.s32.totalorder %s376, %s377
      %p386 = scmp.eq.s32.totalorder %s41, 0
      %p387 = por %p385, %p386
      %p388 = scmp.ne.s32.totalorder %s376, %s377
      %p389 = scmp.eq.s32.totalorder %s42, 1
      %p390 = por %p388, %p389
      %p392 = scmp.ne.s32.totalorder %s377, %s391
      %p393 = scmp.eq.s32.totalorder %s42, 0
      %p394 = por %p392, %p393
      %s396 = sadd.s32 %s395, 1
      %p399 = scmp.eq.s32.totalorder %s36, 1
      %p400 = scmp.ne.s32.totalorder %s395, %s397
      %p401 = scmp.eq.s32.totalorder %s36, 0
      %p402 = por %p400, %p401
      %p403 = scmp.ne.s32.totalorder %s395, %s397
      %p404 = scmp.eq.s32.totalorder %s41, 1
      %p405 = por %p403, %p404
      %p406 = scmp.ne.s32.totalorder %s397, %s398
      %p407 = scmp.eq.s32.totalorder %s41, 0
      %p408 = por %p406, %p407
      %p409 = scmp.ne.s32.totalorder %s397, %s398
      %p410 = scmp.eq.s32.totalorder %s42, 1
      %p411 = por %p409, %p410
      %p413 = scmp.ne.s32.totalorder %s398, %s412
      %p414 = scmp.eq.s32.totalorder %s42, 0
      %p415 = por %p413, %p414
      %s417 = sadd.s32 %s416, 1
      %p420 = scmp.eq.s32.totalorder %s36, 1
      %p421 = scmp.ne.s32.totalorder %s416, %s418
      %p422 = scmp.eq.s32.totalorder %s36, 0
      %p423 = por %p421, %p422
      %p424 = scmp.ne.s32.totalorder %s416, %s418
      %p425 = scmp.eq.s32.totalorder %s41, 1
      %p426 = por %p424, %p425
      %p427 = scmp.ne.s32.totalorder %s418, %s419
      %p428 = scmp.eq.s32.totalorder %s41, 0
      %p429 = por %p427, %p428
      %p430 = scmp.ne.s32.totalorder %s418, %s419
      %p431 = scmp.eq.s32.totalorder %s42, 1
      %p432 = por %p430, %p431
      %p434 = scmp.ne.s32.totalorder %s419, %s433
      %p435 = scmp.eq.s32.totalorder %s42, 0
      %p436 = por %p434, %p435
      %s438 = sadd.s32 %s437, 1
      %p441 = scmp.eq.s32.totalorder %s36, 1
      %p442 = scmp.ne.s32.totalorder %s437, %s439
      %p443 = scmp.eq.s32.totalorder %s36, 0
      %p444 = por %p442, %p443
      %p445 = scmp.ne.s32.totalorder %s437, %s439
      %p446 = scmp.eq.s32.totalorder %s41, 1
      %p447 = por %p445, %p446
      %p448 = scmp.ne.s32.totalorder %s439, %s440
      %p449 = scmp.eq.s32.totalorder %s41, 0
      %p450 = por %p448, %p449
      %p451 = scmp.ne.s32.totalorder %s439, %s440
      %p452 = scmp.eq.s32.totalorder %s42, 1
      %p453 = por %p451, %p452
      %p455 = scmp.ne.s32.totalorder %s440, %s454
      %p456 = scmp.eq.s32.totalorder %s42, 0
      %p457 = por %p455, %p456
      %s459 = sadd.s32 %s458, 1
      %p462 = scmp.eq.s32.totalorder %s36, 1
      %p463 = scmp.ne.s32.totalorder %s458, %s460
      %p464 = scmp.eq.s32.totalorder %s36, 0
      %p465 = por %p463, %p464
      %p466 = scmp.ne.s32.totalorder %s458, %s460
      %p467 = scmp.eq.s32.totalorder %s41, 1
      %p468 = por %p466, %p467
      %p469 = scmp.ne.s32.totalorder %s460, %s461
      %p470 = scmp.eq.s32.totalorder %s41, 0
      %p471 = por %p469, %p470
      %p472 = scmp.ne.s32.totalorder %s460, %s461
      %p473 = scmp.eq.s32.totalorder %s42, 1
      %p474 = por %p472, %p473
      %p476 = scmp.ne.s32.totalorder %s461, %s475
      %p477 = scmp.eq.s32.totalorder %s42, 0
      %p478 = por %p476, %p477
      %s480 = sadd.s32 %s479, 1
      %p483 = scmp.eq.s32.totalorder %s36, 1
      %p484 = scmp.ne.s32.totalorder %s479, %s481
      %p485 = scmp.eq.s32.totalorder %s36, 0
      %p486 = por %p484, %p485
      %p487 = scmp.ne.s32.totalorder %s479, %s481
      %p488 = scmp.eq.s32.totalorder %s41, 1
      %p489 = por %p487, %p488
      %p490 = scmp.ne.s32.totalorder %s481, %s482
      %p491 = scmp.eq.s32.totalorder %s41, 0
      %p492 = por %p490, %p491
      %p493 = scmp.ne.s32.totalorder %s481, %s482
      %p494 = scmp.eq.s32.totalorder %s42, 1
      %p495 = por %p493, %p494
      %p497 = scmp.ne.s32.totalorder %s482, %s496
      %p498 = scmp.eq.s32.totalorder %s42, 0
      %p499 = por %p497, %p498
      %s501 = sadd.s32 %s500, 1
      %p504 = scmp.eq.s32.totalorder %s36, 1
      %p505 = scmp.ne.s32.totalorder %s500, %s502
      %p506 = scmp.eq.s32.totalorder %s36, 0
      %p507 = por %p505, %p506
      %p508 = scmp.ne.s32.totalorder %s500, %s502
      %p509 = scmp.eq.s32.totalorder %s41, 1
      %p510 = por %p508, %p509
      %p511 = scmp.ne.s32.totalorder %s502, %s503
      %p512 = scmp.eq.s32.totalorder %s41, 0
      %p513 = por %p511, %p512
      %p514 = scmp.ne.s32.totalorder %s502, %s503
      %p515 = scmp.eq.s32.totalorder %s42, 1
      %p516 = por %p514, %p515
      %p518 = scmp.ne.s32.totalorder %s503, %s517
      %p519 = scmp.eq.s32.totalorder %s42, 0
      %p520 = por %p518, %p519
      %s522 = sadd.s32 %s521, 1
      %p525 = scmp.eq.s32.totalorder %s36, 1
      %p526 = scmp.ne.s32.totalorder %s521, %s523
      %p527 = scmp.eq.s32.totalorder %s36, 0
      %p528 = por %p526, %p527
      %p529 = scmp.ne.s32.totalorder %s521, %s523
      %p530 = scmp.eq.s32.totalorder %s41, 1
      %p531 = por %p529, %p530
      %p532 = scmp.ne.s32.totalorder %s523, %s524
      %p533 = scmp.eq.s32.totalorder %s41, 0
      %p534 = por %p532, %p533
      %p535 = scmp.ne.s32.totalorder %s523, %s524
      %p536 = scmp.eq.s32.totalorder %s42, 1
      %p537 = por %p535, %p536
      %p539 = scmp.ne.s32.totalorder %s524, %s538
      %p540 = scmp.eq.s32.totalorder %s42, 0
      %p541 = por %p539, %p540
      %s543 = sadd.s32 %s542, 1
      %p546 = scmp.eq.s32.totalorder %s36, 1
      %p547 = scmp.ne.s32.totalorder %s542, %s544
      %p548 = scmp.eq.s32.totalorder %s36, 0
      %p549 = por %p547, %p548
      %p550 = scmp.ne.s32.totalorder %s542, %s544
      %p551 = scmp.eq.s32.totalorder %s41, 1
      %p552 = por %p550, %p551
      %p553 = scmp.ne.s32.totalorder %s544, %s545
      %p554 = scmp.eq.s32.totalorder %s41, 0
      %p555 = por %p553, %p554
      %p556 = scmp.ne.s32.totalorder %s544, %s545
      %p557 = scmp.eq.s32.totalorder %s42, 1
      %p558 = por %p556, %p557
      %p560 = scmp.ne.s32.totalorder %s545, %s559
      %p561 = scmp.eq.s32.totalorder %s42, 0
      %p562 = por %p560, %p561
      %s564 = sadd.s32 %s563, 1
      %p567 = scmp.eq.s32.totalorder %s36, 1
      %p568 = scmp.ne.s32.totalorder %s563, %s565
      %p569 = scmp.eq.s32.totalorder %s36, 0
      %p570 = por %p568, %p569
      %p571 = scmp.ne.s32.totalorder %s563, %s565
      %p572 = scmp.eq.s32.totalorder %s41, 1
      %p573 = por %p571, %p572
      %p574 = scmp.ne.s32.totalorder %s565, %s566
      %p575 = scmp.eq.s32.totalorder %s41, 0
      %p576 = por %p574, %p575
      %p577 = scmp.ne.s32.totalorder %s565, %s566
      %p578 = scmp.eq.s32.totalorder %s42, 1
      %p579 = por %p577, %p578
      %p581 = scmp.ne.s32.totalorder %s566, %s580
      %p582 = scmp.eq.s32.totalorder %s42, 0
      %p583 = por %p581, %p582
      %s585 = sadd.s32 %s584, 1
      %p588 = scmp.eq.s32.totalorder %s36, 1
      %p589 = scmp.ne.s32.totalorder %s584, %s586
      %p590 = scmp.eq.s32.totalorder %s36, 0
      %p591 = por %p589, %p590
      %p592 = scmp.ne.s32.totalorder %s584, %s586
      %p593 = scmp.eq.s32.totalorder %s41, 1
      %p594 = por %p592, %p593
      %p595 = scmp.ne.s32.totalorder %s586, %s587
      %p596 = scmp.eq.s32.totalorder %s41, 0
      %p597 = por %p595, %p596
      %p598 = scmp.ne.s32.totalorder %s586, %s587
      %p599 = scmp.eq.s32.totalorder %s42, 1
      %p600 = por %p598, %p599
      %p602 = scmp.ne.s32.totalorder %s587, %s601
      %p603 = scmp.eq.s32.totalorder %s42, 0
      %p604 = por %p602, %p603
      %s606 = sadd.s32 %s605, 1
      %p609 = scmp.eq.s32.totalorder %s36, 1
      %p610 = scmp.ne.s32.totalorder %s605, %s607
      %p611 = scmp.eq.s32.totalorder %s36, 0
      %p612 = por %p610, %p611
      %p613 = scmp.ne.s32.totalorder %s605, %s607
      %p614 = scmp.eq.s32.totalorder %s41, 1
      %p615 = por %p613, %p614
      %p616 = scmp.ne.s32.totalorder %s607, %s608
      %p617 = scmp.eq.s32.totalorder %s41, 0
      %p618 = por %p616, %p617
      %p619 = scmp.ne.s32.totalorder %s607, %s608
      %p620 = scmp.eq.s32.totalorder %s42, 1
      %p621 = por %p619, %p620
      %p623 = scmp.ne.s32.totalorder %s608, %s622
      %p624 = scmp.eq.s32.totalorder %s42, 0
      %p625 = por %p623, %p624
      %s626 = ssub.s32 %s36, %s43
      %p627 = scmp.eq.s32.totalorder %s626, 0
      %s629 = sadd.s32 %s628, 1
      %s630 = scalar_select %p627, %s628, %s629
      %p633 = pneg %p627
      %p634 = scmp.eq.s32.totalorder %s36, 1
      %p635 = por %p633, %p634
      %p636 = scmp.ne.s32.totalorder %s628, %s631
      %p637 = scmp.eq.s32.totalorder %s36, 0
      %p638 = por %p636, %p637
      %p639 = scmp.ne.s32.totalorder %s628, %s631
      %p640 = scmp.eq.s32.totalorder %s41, 1
      %p641 = por %p639, %p640
      %p642 = scmp.ne.s32.totalorder %s631, %s632
      %p643 = scmp.eq.s32.totalorder %s41, 0
      %p644 = por %p642, %p643
      %p645 = scmp.ne.s32.totalorder %s631, %s632
      %p646 = scmp.eq.s32.totalorder %s42, 1
      %p647 = por %p645, %p646
      %p649 = scmp.ne.s32.totalorder %s632, %s648
      %p650 = scmp.eq.s32.totalorder %s42, 0
      %p651 = por %p649, %p650
      %p652 = scmp.le.s32.totalorder 1, %s36
      %p653 = scmp.lt.s32.totalorder %s36, 3
      %p654 = pnand %p652, %p653
      %p655 = pneg %p654
      // Predicated region
      $region9: #{masked_lm_forward.1} parent=5 // pred_check
        _
      $region10: #{masked_lm_forward.1} parent=5 // pred_check_branch
        %657 = sbr.rel (%p654) target = $region12
      $region11: #{masked_lm_forward.1} parent=5 // pred_region
        %s658 = ssub.s32 %s36, 1
        // Predicated region
        $region13: #{masked_lm_forward.1} parent=11 // pred_check
          %p659 = pneg %p83
        $region14: #{masked_lm_forward.1} parent=11 // pred_check_branch
          %661 = sbr.rel (%p659) target = $region16
        $region15: #{masked_lm_forward.1} parent=11 // pred_region
          _
        $region16: #{masked_lm_forward.1} parent=11 // pred_fallthru
          _
        // Predicated region
        $region17: #{masked_lm_forward.1} parent=11 // pred_check
          %p662 = pneg %p156
        $region18: #{masked_lm_forward.1} parent=11 // pred_check_branch
          %664 = sbr.rel (%p662) target = $region20
        $region19: #{masked_lm_forward.1} parent=11 // pred_region
          _
        $region20: #{masked_lm_forward.1} parent=11 // pred_fallthru
          _
        // Predicated region
        $region21: #{masked_lm_forward.1} parent=11 // pred_check
          %p665 = pneg %p177
        $region22: #{masked_lm_forward.1} parent=11 // pred_check_branch
          %667 = sbr.rel (%p665) target = $region24
        $region23: #{masked_lm_forward.1} parent=11 // pred_region
          _
        $region24: #{masked_lm_forward.1} parent=11 // pred_fallthru
          _
        // Predicated region
        $region25: #{masked_lm_forward.1} parent=11 // pred_check
          %p668 = pneg %p198
        $region26: #{masked_lm_forward.1} parent=11 // pred_check_branch
          %670 = sbr.rel (%p668) target = $region28
        $region27: #{masked_lm_forward.1} parent=11 // pred_region
          _
        $region28: #{masked_lm_forward.1} parent=11 // pred_fallthru
          _
        // Predicated region
        $region29: #{masked_lm_forward.1} parent=11 // pred_check
          %p671 = pneg %p219
        $region30: #{masked_lm_forward.1} parent=11 // pred_check_branch
          %673 = sbr.rel (%p671) target = $region32
        $region31: #{masked_lm_forward.1} parent=11 // pred_region
          _
        $region32: #{masked_lm_forward.1} parent=11 // pred_fallthru
          _
        // Predicated region
        $region33: #{masked_lm_forward.1} parent=11 // pred_check
          %p674 = pneg %p240
        $region34: #{masked_lm_forward.1} parent=11 // pred_check_branch
          %676 = sbr.rel (%p674) target = $region36
        $region35: #{masked_lm_forward.1} parent=11 // pred_region
          _
        $region36: #{masked_lm_forward.1} parent=11 // pred_fallthru
          _
        // Predicated region
        $region37: #{masked_lm_forward.1} parent=11 // pred_check
          %p677 = pneg %p261
        $region38: #{masked_lm_forward.1} parent=11 // pred_check_branch
          %679 = sbr.rel (%p677) target = $region40
        $region39: #{masked_lm_forward.1} parent=11 // pred_region
          _
        $region40: #{masked_lm_forward.1} parent=11 // pred_fallthru
          _
        // Predicated region
        $region41: #{masked_lm_forward.1} parent=11 // pred_check
          %p680 = pneg %p282
        $region42: #{masked_lm_forward.1} parent=11 // pred_check_branch
          %682 = sbr.rel (%p680) target = $region44
        $region43: #{masked_lm_forward.1} parent=11 // pred_region
          _
        $region44: #{masked_lm_forward.1} parent=11 // pred_fallthru
          _
        // Predicated region
        $region45: #{masked_lm_forward.1} parent=11 // pred_check
          %p683 = pneg %p303
        $region46: #{masked_lm_forward.1} parent=11 // pred_check_branch
          %685 = sbr.rel (%p683) target = $region48
        $region47: #{masked_lm_forward.1} parent=11 // pred_region
          _
        $region48: #{masked_lm_forward.1} parent=11 // pred_fallthru
          _
        // Predicated region
        $region49: #{masked_lm_forward.1} parent=11 // pred_check
          %p686 = pneg %p324
        $region50: #{masked_lm_forward.1} parent=11 // pred_check_branch
          %688 = sbr.rel (%p686) target = $region52
        $region51: #{masked_lm_forward.1} parent=11 // pred_region
          _
        $region52: #{masked_lm_forward.1} parent=11 // pred_fallthru
          _
        // Predicated region
        $region53: #{masked_lm_forward.1} parent=11 // pred_check
          %p689 = pneg %p345
        $region54: #{masked_lm_forward.1} parent=11 // pred_check_branch
          %691 = sbr.rel (%p689) target = $region56
        $region55: #{masked_lm_forward.1} parent=11 // pred_region
          _
        $region56: #{masked_lm_forward.1} parent=11 // pred_fallthru
          _
        // Predicated region
        $region57: #{masked_lm_forward.1} parent=11 // pred_check
          %p692 = pneg %p366
        $region58: #{masked_lm_forward.1} parent=11 // pred_check_branch
          %694 = sbr.rel (%p692) target = $region60
        $region59: #{masked_lm_forward.1} parent=11 // pred_region
          _
        $region60: #{masked_lm_forward.1} parent=11 // pred_fallthru
          _
        // Predicated region
        $region61: #{masked_lm_forward.1} parent=11 // pred_check
          %p695 = pneg %p387
        $region62: #{masked_lm_forward.1} parent=11 // pred_check_branch
          %697 = sbr.rel (%p695) target = $region64
        $region63: #{masked_lm_forward.1} parent=11 // pred_region
          _
        $region64: #{masked_lm_forward.1} parent=11 // pred_fallthru
          _
        // Predicated region
        $region65: #{masked_lm_forward.1} parent=11 // pred_check
          %p698 = pneg %p408
        $region66: #{masked_lm_forward.1} parent=11 // pred_check_branch
          %700 = sbr.rel (%p698) target = $region68
        $region67: #{masked_lm_forward.1} parent=11 // pred_region
          _
        $region68: #{masked_lm_forward.1} parent=11 // pred_fallthru
          _
        // Predicated region
        $region69: #{masked_lm_forward.1} parent=11 // pred_check
          %p701 = pneg %p429
        $region70: #{masked_lm_forward.1} parent=11 // pred_check_branch
          %703 = sbr.rel (%p701) target = $region72
        $region71: #{masked_lm_forward.1} parent=11 // pred_region
          _
        $region72: #{masked_lm_forward.1} parent=11 // pred_fallthru
          _
        // Predicated region
        $region73: #{masked_lm_forward.1} parent=11 // pred_check
          %p704 = pneg %p450
        $region74: #{masked_lm_forward.1} parent=11 // pred_check_branch
          %706 = sbr.rel (%p704) target = $region76
        $region75: #{masked_lm_forward.1} parent=11 // pred_region
          _
        $region76: #{masked_lm_forward.1} parent=11 // pred_fallthru
          _
        // Predicated region
        $region77: #{masked_lm_forward.1} parent=11 // pred_check
          %p707 = pneg %p471
        $region78: #{masked_lm_forward.1} parent=11 // pred_check_branch
          %709 = sbr.rel (%p707) target = $region80
        $region79: #{masked_lm_forward.1} parent=11 // pred_region
          _
        $region80: #{masked_lm_forward.1} parent=11 // pred_fallthru
          _
        // Predicated region
        $region81: #{masked_lm_forward.1} parent=11 // pred_check
          %p710 = pneg %p492
        $region82: #{masked_lm_forward.1} parent=11 // pred_check_branch
          %712 = sbr.rel (%p710) target = $region84
        $region83: #{masked_lm_forward.1} parent=11 // pred_region
          _
        $region84: #{masked_lm_forward.1} parent=11 // pred_fallthru
          _
        // Predicated region
        $region85: #{masked_lm_forward.1} parent=11 // pred_check
          %p713 = pneg %p513
        $region86: #{masked_lm_forward.1} parent=11 // pred_check_branch
          %715 = sbr.rel (%p713) target = $region88
        $region87: #{masked_lm_forward.1} parent=11 // pred_region
          _
        $region88: #{masked_lm_forward.1} parent=11 // pred_fallthru
          _
        // Predicated region
        $region89: #{masked_lm_forward.1} parent=11 // pred_check
          %p716 = pneg %p534
        $region90: #{masked_lm_forward.1} parent=11 // pred_check_branch
          %718 = sbr.rel (%p716) target = $region92
        $region91: #{masked_lm_forward.1} parent=11 // pred_region
          _
        $region92: #{masked_lm_forward.1} parent=11 // pred_fallthru
          _
        // Predicated region
        $region93: #{masked_lm_forward.1} parent=11 // pred_check
          %p719 = pneg %p555
        $region94: #{masked_lm_forward.1} parent=11 // pred_check_branch
          %721 = sbr.rel (%p719) target = $region96
        $region95: #{masked_lm_forward.1} parent=11 // pred_region
          _
        $region96: #{masked_lm_forward.1} parent=11 // pred_fallthru
          _
        // Predicated region
        $region97: #{masked_lm_forward.1} parent=11 // pred_check
          %p722 = pneg %p576
        $region98: #{masked_lm_forward.1} parent=11 // pred_check_branch
          %724 = sbr.rel (%p722) target = $region100
        $region99: #{masked_lm_forward.1} parent=11 // pred_region
          _
        $region100: #{masked_lm_forward.1} parent=11 // pred_fallthru
          _
        // Predicated region
        $region101: #{masked_lm_forward.1} parent=11 // pred_check
          %p725 = pneg %p597
        $region102: #{masked_lm_forward.1} parent=11 // pred_check_branch
          %727 = sbr.rel (%p725) target = $region104
        $region103: #{masked_lm_forward.1} parent=11 // pred_region
          _
        $region104: #{masked_lm_forward.1} parent=11 // pred_fallthru
          _
        // Predicated region
        $region105: #{masked_lm_forward.1} parent=11 // pred_check
          %p728 = pneg %p618
        $region106: #{masked_lm_forward.1} parent=11 // pred_check_branch
          %730 = sbr.rel (%p728) target = $region108
        $region107: #{masked_lm_forward.1} parent=11 // pred_region
          _
        $region108: #{masked_lm_forward.1} parent=11 // pred_fallthru
          _
      $region12: #{masked_lm_forward.1} parent=5 // pred_fallthru
        _
      %p731 = scmp.lt.s32.totalorder %s36, 2
      // Predicated region
      $region109: #{masked_lm_forward.1} parent=5 // pred_check
        %p732 = pneg %p731
      $region110: #{masked_lm_forward.1} parent=5 // pred_check_branch
        %734 = sbr.rel (%p732) target = $region112
      $region111: #{masked_lm_forward.1} parent=5 // pred_region
        // Predicated region
        $region113: #{masked_lm_forward.1} parent=111 // pred_check
          %p735 = pneg %p56
        $region114: #{masked_lm_forward.1} parent=111 // pred_check_branch
          %737 = sbr.rel (%p735) target = $region116
        $region115: #{masked_lm_forward.1} parent=111 // pred_region
          %p738 = scmp.lt.s32.totalorder %s36, 1
          %s739 = scalar_select %p738, %s36, 1
          %s740 = smul.addr %s739, 8
          %s741 = scalar_lea.vmem %s0, %s740
        $region116: #{masked_lm_forward.1} parent=111 // pred_fallthru
          _
        // Predicated region
        $region117: #{masked_lm_forward.1} parent=111 // pred_check
          %p742 = pneg %p103
        $region118: #{masked_lm_forward.1} parent=111 // pred_check_branch
          %744 = sbr.rel (%p742) target = $region120
        $region119: #{masked_lm_forward.1} parent=111 // pred_region
          %p745 = scmp.lt.s32.totalorder %s36, 1
          %s746 = scalar_select %p745, %s36, 1
          %s747 = smul.addr %s746, 8
          %s748 = scalar_lea.vmem %s2, %s747
        $region120: #{masked_lm_forward.1} parent=111 // pred_fallthru
          _
        // Predicated region
        $region121: #{masked_lm_forward.1} parent=111 // pred_check
          %p749 = pneg %p129
        $region122: #{masked_lm_forward.1} parent=111 // pred_check_branch
          %751 = sbr.rel (%p749) target = $region124
        $region123: #{masked_lm_forward.1} parent=111 // pred_region
          %p752 = scmp.lt.s32.totalorder %s36, 1
          %s753 = scalar_select %p752, %s36, 1
          %s754 = scalar_lea.vmem %s3, %s753
        $region124: #{masked_lm_forward.1} parent=111 // pred_fallthru
          _
      $region112: #{masked_lm_forward.1} parent=5 // pred_fallthru
        _
      %p755 = scmp.le.s32.totalorder 1, %s36
      %p756 = scmp.lt.s32.totalorder %s36, 3
      %p757 = pnand %p755, %p756
      %p758 = pneg %p757
      // Predicated region
      $region125: #{masked_lm_forward.1} parent=5 // pred_check
        _
      $region126: #{masked_lm_forward.1} parent=5 // pred_check_branch
        %760 = sbr.rel (%p757) target = $region128
      $region127: #{masked_lm_forward.1} parent=5 // pred_region
        %s761 = ssub.s32 %s36, 1
        %p762 = scmp.lt.s32.totalorder %s41, 1
        %s763 = scalar_select %p762, %s41, 1
        %s764 = smul.addr %s763, 8
        %s765 = scalar_lea.vmem %s0, %s764
        %p766 = pneg %p62
        %p767 = pneg %p59
        %p768 = pneg %p83
        %p769 = pneg %p80
        %p770 = scmp.lt.s32.totalorder %s41, 1
        %s771 = scalar_select %p770, %s41, 1
        %s772 = smul.addr %s771, 8
        %s773 = scalar_lea.vmem %s2, %s772
        %p774 = pneg %p109
        %p775 = pneg %p106
        %p776 = scmp.lt.s32.totalorder %s41, 1
        %s777 = scalar_select %p776, %s41, 1
        %s778 = scalar_lea.vmem %s3, %s777
        %p779 = pneg %p135
        %p780 = pneg %p132
        %p781 = pneg %p156
        %p782 = pneg %p153
        %p783 = pneg %p177
        %p784 = pneg %p174
        %p785 = pneg %p198
        %p786 = pneg %p195
        %p787 = pneg %p219
        %p788 = pneg %p216
        %p789 = pneg %p240
        %p790 = pneg %p237
        %p791 = pneg %p261
        %p792 = pneg %p258
        %p793 = pneg %p282
        %p794 = pneg %p279
        %p795 = pneg %p303
        %p796 = pneg %p300
        %p797 = pneg %p324
        %p798 = pneg %p321
        %p799 = pneg %p345
        %p800 = pneg %p342
        %p801 = pneg %p366
        %p802 = pneg %p363
        %p803 = pneg %p387
        %p804 = pneg %p384
        %p805 = pneg %p408
        %p806 = pneg %p405
        %p807 = pneg %p429
        %p808 = pneg %p426
        %p809 = pneg %p450
        %p810 = pneg %p447
        %p811 = pneg %p471
        %p812 = pneg %p468
        %p813 = pneg %p492
        %p814 = pneg %p489
        %p815 = pneg %p513
        %p816 = pneg %p510
        %p817 = pneg %p534
        %p818 = pneg %p531
        %p819 = pneg %p555
        %p820 = pneg %p552
        %p821 = pneg %p576
        %p822 = pneg %p573
        %p823 = pneg %p597
        %p824 = pneg %p594
        %p825 = pneg %p618
        %p826 = pneg %p615
        %p827 = pneg %p644
        %p828 = pneg %p641
        %s829 = sand.u32 %s631, 1
        %s830 = scalar_lea.sflag [#allocation3], %s829
        %s831 = sand.u32 %s631, 1
        %s832 = smul.addr %s831, 8
        %s833 = scalar_lea.vmem [#allocation2], %s832
        %p834 = scmp.lt.s32.totalorder %s41, 1
        %s835 = scalar_select %p834, %s41, 1
        %s836 = smul.addr %s835, 8
        %s837 = scalar_lea.vmem %s0, %s836
        %p838 = scmp.lt.s32.totalorder %s41, 1
        %s839 = scalar_select %p838, %s41, 1
        %s840 = smul.addr %s839, 8
        %s841 = scalar_lea.vmem %s2, %s840
        %p842 = scmp.lt.s32.totalorder %s41, 1
        %s843 = scalar_select %p842, %s41, 1
        %s844 = scalar_lea.vmem %s3, %s843
        %v846 = vld [vmem:[%s837] sm:$0xff]
        %v847 = vld [vmem:[%s841] sm:$0xff]
        %v848 = vadd.f32 %v846, %v847
        %v849 = vld [vmem:[%s1] sm:$0xff]
        %v850 = vadd.f32 %v848, %v849
        %v851 = vld [vmem:[%s4] sm:$0x1]
        %v852 = vld [vmem:[%s5] sm:$0x1]
        %vm853 = vcmask 261120
        %v854 = vsel %vm853, %v850, 0.0
        %855 = vadd.xlane.f32.xlu0 %v854
        %v856 = vpop.xlane.xlu0 %855
        %v857 = vrcp.pop 32.0
        %v858 = vmul.f32 %v856, %v857
        %v859 = vsub.f32 %v850, %v858
        %v860 = vmul.f32 %v859, %v859
        %v861 = vsel %vm853, %v860, 0.0
        %862 = vadd.xlane.f32.xlu0 %v861
        %v863 = vpop.xlane.xlu0 %862
        %v864 = vmul.f32 %v863, %v857
        %v865 = vadd.f32 %v864, 1e-12
        %v866 = vrsqrt.pop %v865
        %v867 = vmul.f32 %v859, %v866
        %v869 = vlaneseq
        %v870 = vshrl.u32 %v869, 7
        %v871 = vsub.s32 0, %v870
        %v872 = vrot.slane %v851, %v871
        %v874 = vmul.f32 %v867, %v872
        %v876 = vlaneseq
        %v877 = vshrl.u32 %v876, 7
        %v878 = vsub.s32 0, %v877
        %v879 = vrot.slane %v852, %v878
        %v881 = vadd.f32 %v874, %v879
        %v882 = vld [vmem:[%s844] sm:$0x1]
        %v884 = vlaneseq
        %v885 = vshrl.u32 %v884, 7
        %v886 = vsub.s32 0, %v885
        %v887 = vrot.slane %v882, %v886
        %v889 = vld [vmem:[%s6] sm:$0xf]
        %v890 = vld [vmem:[%s6 + $0x4] sm:$0xf]
        %v891 = vld [vmem:[%s6 + $0x8] sm:$0xf]
        %v892 = vld [vmem:[%s6 + $0xc] sm:$0xf]
        %v893 = vpack.c.bf16 %v881, %v881
        %v894 = vld [vmem:[%s7] sm:$0x1]
        %v896 = vlaneseq
        %v897 = vshrl.u32 %v896, 7
        %v898 = vsub.s32 0, %v897
        %v899 = vrot.slane %v894, %v898
        %v905 = vunpack.c.l.b16 %v889
        %v906 = vunpack.c.l.b16 %v890
        %v907 = vunpack.c.l.b16 %v891
        %v908 = vunpack.c.l.b16 %v892
        %v909 = vpack.c.b16 %v906, %v905
        %v910 = vpack.c.b16 %v908, %v907
        %v914 = vsel %vm853, %v893, 0
        %916 = vmatprep.subr.bf16.mxu0 0
        %917 = vmatpush1.bf16.msra.mxu0 0
        %918 = vmatprep.subr.bf16.mxu0 0
        %919 = vmatpush1.bf16.msra.mxu0 0
        %920 = vmatprep.subr.bf16.mxu0 0
        %921 = vmatpush1.bf16.msra.mxu0 0
        %922 = vmatprep.subr.bf16.mxu0 0
        %923 = vmatpush1.bf16.msra.mxu0 0
        %924 = vmatprep.subr.bf16.mxu0 0
        %925 = vmatpush1.bf16.msra.mxu0 0
        %926 = vmatprep.subr.bf16.mxu0 0
        %927 = vmatpush1.bf16.msra.mxu0 0
        %928 = vmatprep.subr.bf16.mxu0 0
        %929 = vmatpush1.bf16.msra.mxu0 %v910
        %930 = vmatprep.subr.bf16.mxu0 0
        %931 = vmatpush1.bf16.msra.mxu0 %v909
        %932 = vmatprep.subr.bf16.mxu0 0
        %933 = vmatpush2.bf16.msra.mxu0 0
        %934 = vmatprep.subr.bf16.mxu0 0
        %935 = vmatpush2.bf16.msra.mxu0 0
        %936 = vmatprep.subr.bf16.mxu0 0
        %937 = vmatpush2.bf16.msra.mxu0 0
        %938 = vmatprep.subr.bf16.mxu0 0
        %939 = vmatpush2.bf16.msra.mxu0 0
        %940 = vmatprep.subr.bf16.mxu0 0
        %941 = vmatpush2.bf16.msra.mxu0 0
        %942 = vmatprep.subr.bf16.mxu0 0
        %943 = vmatpush2.bf16.msra.mxu0 0
        %944 = vmatprep.subr.bf16.mxu0 0
        %945 = vmatpush2.bf16.msra.mxu0 0
        %946 = vmatprep.subr.bf16.mxu0 0
        %947 = vmatpush2.bf16.msra.mxu0 0
        %948 = vmatprep.mubr.bf16.mxu0 0
        %949 = vmatmul.mubr.bf16.gmra.mxu0 %v914
        %v950 = vpop.f32.mrf.mxu0
        %v951 = vadd.f32 %v899, %v950
        %v952 = vpop.f32.mrf.mxu0
        %v953 = vpop.f32.mrf.mxu0
        %v954 = vpop.f32.mrf.mxu0
        %955 = vdwg.mxu0
        %v956 = vld [vmem:[%s8] sm:$0xf]
        %v957 = vld [vmem:[%s8 + $0x4] sm:$0xf]
        %v958 = vld [vmem:[%s8 + $0x8] sm:$0xf]
        %v959 = vld [vmem:[%s8 + $0xc] sm:$0xf]
        %v960 = vmul.f32 %v951, 0.35355338
        %v961 = vpack.c.bf16 %v960, %v960
        %v962 = vpack.c.bf16 %v951, %v951
        %964 = vrot.lane.b32.xlu0 %v962, 96
        %v965 = vpop.permute.xlu0 %964
        %vm966 = vcmask 64512
        %v968 = vsel %vm966, %v961, 0
        %v971 = vsel %vm966, %v965, 0
        %973 = vmatprep.subr.bf16.mxu0 0
        %974 = vmatpush1.bf16.xpose.msra.mxu0 0
        %975 = vmatprep.subr.bf16.mxu0 0
        %976 = vmatpush1.bf16.xpose.msra.mxu0 0
        %977 = vmatprep.subr.bf16.mxu0 0
        %978 = vmatpush1.bf16.xpose.msra.mxu0 0
        %979 = vmatprep.subr.bf16.mxu0 0
        %980 = vmatpush1.bf16.xpose.msra.mxu0 0
        %981 = vmatprep.subr.bf16.mxu0 0
        %982 = vmatpush1.bf16.xpose.msra.mxu0 0
        %983 = vmatprep.subr.bf16.mxu0 0
        %984 = vmatpush1.bf16.xpose.msra.mxu0 0
        %985 = vmatprep.subr.bf16.mxu0 0
        %986 = vmatpush1.bf16.xpose.msra.mxu0 0
        %987 = vmatprep.subr.bf16.mxu0 0
        %988 = vmatpush1.bf16.xpose.msra.mxu0 %v971
        %989 = vmatprep.subr.bf16.mxu0 0
        %990 = vmatpush2.bf16.xpose.msra.mxu0 0
        %991 = vmatprep.subr.bf16.mxu0 0
        %992 = vmatpush2.bf16.xpose.msra.mxu0 0
        %993 = vmatprep.subr.bf16.mxu0 0
        %994 = vmatpush2.bf16.xpose.msra.mxu0 0
        %995 = vmatprep.subr.bf16.mxu0 0
        %996 = vmatpush2.bf16.xpose.msra.mxu0 0
        %997 = vmatprep.subr.bf16.mxu0 0
        %998 = vmatpush2.bf16.xpose.msra.mxu0 0
        %999 = vmatprep.subr.bf16.mxu0 0
        %1000 = vmatpush2.bf16.xpose.msra.mxu0 0
        %1001 = vmatprep.subr.bf16.mxu0 0
        %1002 = vmatpush2.bf16.xpose.msra.mxu0 0
        %1003 = vmatprep.subr.bf16.mxu0 0
        %1004 = vmatpush2.bf16.xpose.msra.mxu0 0
        %1005 = vmatprep.mubr.bf16.mxu0 0
        %1006 = vmatmul.mubr.bf16.gmra.mxu0 %v968
        %v1007 = vpop.f32.mrf.mxu0
        %v1008 = vadd.f32 %v887, %v1007
        %v1009 = vpop.f32.mrf.mxu0
        %v1010 = vpop.f32.mrf.mxu0
        %v1011 = vpop.f32.mrf.mxu0
        %1012 = vdwg.mxu0
        %v1013 = vsel %vm966, %v1008, -inf
        %1014 = vmax.xlane.f32.xlu0 %v1013
        %v1015 = vpop.xlane.xlu0 %1014
        %v1016 = vsub.f32 %v1008, %v1015
        %v1017 = vmul.f32 %v1016, 1.442695
        %v1018 = vpow.pop %v1017
        %v1019 = vsel %vm966, %v1018, 0.0
        %1020 = vadd.xlane.f32.xlu0 %v1019
        %v1021 = vpop.xlane.xlu0 %1020
        %v1022 = vrcp.pop %v1021
        %v1023 = vmul.f32 %v1018, %v1022
        %v1024 = vpack.c.bf16 %v1023, %v1023
        %1025 = vrot.lane.b32.xlu0 %v962, 64
        %v1026 = vpop.permute.xlu0 %1025
        %v1028 = vsel %vm966, %v1024, 0
        %vm1030 = vcmask 1043456
        %v1032 = vsel %vm1030, %v1026, 0
        %1034 = vmatprep.subr.bf16.mxu0 0
        %1035 = vmatpush1.bf16.msra.mxu0 0
        %1036 = vmatprep.subr.bf16.mxu0 0
        %1037 = vmatpush1.bf16.msra.mxu0 0
        %1038 = vmatprep.subr.bf16.mxu0 0
        %1039 = vmatpush1.bf16.msra.mxu0 0
        %1040 = vmatprep.subr.bf16.mxu0 0
        %1041 = vmatpush1.bf16.msra.mxu0 0
        %1042 = vmatprep.subr.bf16.mxu0 0
        %1043 = vmatpush1.bf16.msra.mxu0 0
        %1044 = vmatprep.subr.bf16.mxu0 0
        %1045 = vmatpush1.bf16.msra.mxu0 0
        %1046 = vmatprep.subr.bf16.mxu0 0
        %1047 = vmatpush1.bf16.msra.mxu0 0
        %1048 = vmatprep.subr.bf16.mxu0 0
        %1049 = vmatpush1.bf16.msra.mxu0 %v1032
        %1050 = vmatprep.subr.bf16.mxu0 0
        %1051 = vmatpush2.bf16.msra.mxu0 0
        %1052 = vmatprep.subr.bf16.mxu0 0
        %1053 = vmatpush2.bf16.msra.mxu0 0
        %1054 = vmatprep.subr.bf16.mxu0 0
        %1055 = vmatpush2.bf16.msra.mxu0 0
        %1056 = vmatprep.subr.bf16.mxu0 0
        %1057 = vmatpush2.bf16.msra.mxu0 0
        %1058 = vmatprep.subr.bf16.mxu0 0
        %1059 = vmatpush2.bf16.msra.mxu0 0
        %1060 = vmatprep.subr.bf16.mxu0 0
        %1061 = vmatpush2.bf16.msra.mxu0 0
        %1062 = vmatprep.subr.bf16.mxu0 0
        %1063 = vmatpush2.bf16.msra.mxu0 0
        %1064 = vmatprep.subr.bf16.mxu0 0
        %1065 = vmatpush2.bf16.msra.mxu0 0
        %1066 = vmatprep.mubr.bf16.mxu0 0
        %1067 = vmatmul.mubr.bf16.gmra.mxu0 %v1028
        %v1068 = vpop.f32.mrf.mxu0
        %v1069 = vadd.f32 0.0, %v1068
        %v1070 = vpop.f32.mrf.mxu0
        %v1071 = vpop.f32.mrf.mxu0
        %v1072 = vpop.f32.mrf.mxu0
        %1073 = vdwg.mxu0
        %v1074 = vpack.c.bf16 %v1069, %v1069
        %1076 = vrot.lane.b32.xlu0 %v961, 120
        %v1077 = vpop.permute.xlu0 %1076
        %1078 = vrot.lane.b32.xlu0 %v962, 88
        %v1079 = vpop.permute.xlu0 %1078
        %v1081 = vsel %vm966, %v1077, 0
        %v1084 = vsel %vm966, %v1079, 0
        %1086 = vmatprep.subr.bf16.mxu0 0
        %1087 = vmatpush1.bf16.xpose.msra.mxu0 0
        %1088 = vmatprep.subr.bf16.mxu0 0
        %1089 = vmatpush1.bf16.xpose.msra.mxu0 0
        %1090 = vmatprep.subr.bf16.mxu0 0
        %1091 = vmatpush1.bf16.xpose.msra.mxu0 0
        %1092 = vmatprep.subr.bf16.mxu0 0
        %1093 = vmatpush1.bf16.xpose.msra.mxu0 0
        %1094 = vmatprep.subr.bf16.mxu0 0
        %1095 = vmatpush1.bf16.xpose.msra.mxu0 0
        %1096 = vmatprep.subr.bf16.mxu0 0
        %1097 = vmatpush1.bf16.xpose.msra.mxu0 0
        %1098 = vmatprep.subr.bf16.mxu0 0
        %1099 = vmatpush1.bf16.xpose.msra.mxu0 0
        %1100 = vmatprep.subr.bf16.mxu0 0
        %1101 = vmatpush1.bf16.xpose.msra.mxu0 %v1084
        %1102 = vmatprep.subr.bf16.mxu0 0
        %1103 = vmatpush2.bf16.xpose.msra.mxu0 0
        %1104 = vmatprep.subr.bf16.mxu0 0
        %1105 = vmatpush2.bf16.xpose.msra.mxu0 0
        %1106 = vmatprep.subr.bf16.mxu0 0
        %1107 = vmatpush2.bf16.xpose.msra.mxu0 0
        %1108 = vmatprep.subr.bf16.mxu0 0
        %1109 = vmatpush2.bf16.xpose.msra.mxu0 0
        %1110 = vmatprep.subr.bf16.mxu0 0
        %1111 = vmatpush2.bf16.xpose.msra.mxu0 0
        %1112 = vmatprep.subr.bf16.mxu0 0
        %1113 = vmatpush2.bf16.xpose.msra.mxu0 0
        %1114 = vmatprep.subr.bf16.mxu0 0
        %1115 = vmatpush2.bf16.xpose.msra.mxu0 0
        %1116 = vmatprep.subr.bf16.mxu0 0
        %1117 = vmatpush2.bf16.xpose.msra.mxu0 0
        %1118 = vmatprep.mubr.bf16.mxu0 0
        %1119 = vmatmul.mubr.bf16.gmra.mxu0 %v1081
        %v1120 = vpop.f32.mrf.mxu0
        %v1121 = vadd.f32 %v887, %v1120
        %v1122 = vpop.f32.mrf.mxu0
        %v1123 = vpop.f32.mrf.mxu0
        %v1124 = vpop.f32.mrf.mxu0
        %1125 = vdwg.mxu0
        %v1126 = vsel %vm966, %v1121, -inf
        %1127 = vmax.xlane.f32.xlu0 %v1126
        %v1128 = vpop.xlane.xlu0 %1127
        %v1129 = vsub.f32 %v1121, %v1128
        %v1130 = vmul.f32 %v1129, 1.442695
        %v1131 = vpow.pop %v1130
        %v1132 = vsel %vm966, %v1131, 0.0
        %1133 = vadd.xlane.f32.xlu0 %v1132
        %v1134 = vpop.xlane.xlu0 %1133
        %v1135 = vrcp.pop %v1134
        %v1136 = vmul.f32 %v1131, %v1135
        %v1137 = vpack.c.bf16 %v1136, %v1136
        %1138 = vrot.lane.b32.xlu0 %v962, 56
        %v1139 = vpop.permute.xlu0 %1138
        %v1141 = vsel %vm966, %v1137, 0
        %v1144 = vsel %vm1030, %v1139, 0
        %1146 = vmatprep.subr.bf16.mxu0 0
        %1147 = vmatpush1.bf16.msra.mxu0 0
        %1148 = vmatprep.subr.bf16.mxu0 0
        %1149 = vmatpush1.bf16.msra.mxu0 0
        %1150 = vmatprep.subr.bf16.mxu0 0
        %1151 = vmatpush1.bf16.msra.mxu0 0
        %1152 = vmatprep.subr.bf16.mxu0 0
        %1153 = vmatpush1.bf16.msra.mxu0 0
        %1154 = vmatprep.subr.bf16.mxu0 0
        %1155 = vmatpush1.bf16.msra.mxu0 0
        %1156 = vmatprep.subr.bf16.mxu0 0
        %1157 = vmatpush1.bf16.msra.mxu0 0
        %1158 = vmatprep.subr.bf16.mxu0 0
        %1159 = vmatpush1.bf16.msra.mxu0 0
        %1160 = vmatprep.subr.bf16.mxu0 0
        %1161 = vmatpush1.bf16.msra.mxu0 %v1144
        %1162 = vmatprep.subr.bf16.mxu0 0
        %1163 = vmatpush2.bf16.msra.mxu0 0
        %1164 = vmatprep.subr.bf16.mxu0 0
        %1165 = vmatpush2.bf16.msra.mxu0 0
        %1166 = vmatprep.subr.bf16.mxu0 0
        %1167 = vmatpush2.bf16.msra.mxu0 0
        %1168 = vmatprep.subr.bf16.mxu0 0
        %1169 = vmatpush2.bf16.msra.mxu0 0
        %1170 = vmatprep.subr.bf16.mxu0 0
        %1171 = vmatpush2.bf16.msra.mxu0 0
        %1172 = vmatprep.subr.bf16.mxu0 0
        %1173 = vmatpush2.bf16.msra.mxu0 0
        %1174 = vmatprep.subr.bf16.mxu0 0
        %1175 = vmatpush2.bf16.msra.mxu0 0
        %1176 = vmatprep.subr.bf16.mxu0 0
        %1177 = vmatpush2.bf16.msra.mxu0 0
        %1178 = vmatprep.mubr.bf16.mxu0 0
        %1179 = vmatmul.mubr.bf16.gmra.mxu0 %v1141
        %v1180 = vpop.f32.mrf.mxu0
        %v1181 = vadd.f32 0.0, %v1180
        %v1182 = vpop.f32.mrf.mxu0
        %v1183 = vpop.f32.mrf.mxu0
        %v1184 = vpop.f32.mrf.mxu0
        %1185 = vdwg.mxu0
        %v1186 = vpack.c.bf16 %v1181, %v1181
        %v1188 = vsel %vm966, %v1186, 0
        %v1191 = vsel %vm1030, %v957, 0
        %1193 = vmatprep.subr.bf16.mxu0 0
        %1194 = vmatpush1.bf16.msra.mxu0 0
        %1195 = vmatprep.subr.bf16.mxu0 0
        %1196 = vmatpush1.bf16.msra.mxu0 0
        %1197 = vmatprep.subr.bf16.mxu0 0
        %1198 = vmatpush1.bf16.msra.mxu0 0
        %1199 = vmatprep.subr.bf16.mxu0 0
        %1200 = vmatpush1.bf16.msra.mxu0 0
        %1201 = vmatprep.subr.bf16.mxu0 0
        %1202 = vmatpush1.bf16.msra.mxu0 0
        %1203 = vmatprep.subr.bf16.mxu0 0
        %1204 = vmatpush1.bf16.msra.mxu0 0
        %1205 = vmatprep.subr.bf16.mxu0 0
        %1206 = vmatpush1.bf16.msra.mxu0 0
        %1207 = vmatprep.subr.bf16.mxu0 0
        %1208 = vmatpush1.bf16.msra.mxu0 %v1191
        %1209 = vmatprep.subr.bf16.mxu0 0
        %1210 = vmatpush2.bf16.msra.mxu0 0
        %1211 = vmatprep.subr.bf16.mxu0 0
        %1212 = vmatpush2.bf16.msra.mxu0 0
        %1213 = vmatprep.subr.bf16.mxu0 0
        %1214 = vmatpush2.bf16.msra.mxu0 0
        %1215 = vmatprep.subr.bf16.mxu0 0
        %1216 = vmatpush2.bf16.msra.mxu0 0
        %1217 = vmatprep.subr.bf16.mxu0 0
        %1218 = vmatpush2.bf16.msra.mxu0 0
        %1219 = vmatprep.subr.bf16.mxu0 0
        %1220 = vmatpush2.bf16.msra.mxu0 0
        %1221 = vmatprep.subr.bf16.mxu0 0
        %1222 = vmatpush2.bf16.msra.mxu0 0
        %1223 = vmatprep.subr.bf16.mxu0 0
        %1224 = vmatpush2.bf16.msra.mxu0 0
        %1225 = vmatprep.mubr.bf16.mxu0 0
        %1226 = vmatmul.mubr.bf16.gmra.mxu0 %v1188
        %v1227 = vpop.f32.mrf.mxu0
        %v1228 = vadd.f32 0.0, %v1227
        %v1229 = vpop.f32.mrf.mxu0
        %v1230 = vpop.f32.mrf.mxu0
        %v1231 = vpop.f32.mrf.mxu0
        %1232 = vdwg.mxu0
        %v1234 = vsel %vm966, %v1074, 0
        %v1237 = vsel %vm1030, %v956, 0
        %1239 = vmatprep.subr.bf16.mxu0 0
        %1240 = vmatpush1.bf16.msra.mxu0 0
        %1241 = vmatprep.subr.bf16.mxu0 0
        %1242 = vmatpush1.bf16.msra.mxu0 0
        %1243 = vmatprep.subr.bf16.mxu0 0
        %1244 = vmatpush1.bf16.msra.mxu0 0
        %1245 = vmatprep.subr.bf16.mxu0 0
        %1246 = vmatpush1.bf16.msra.mxu0 0
        %1247 = vmatprep.subr.bf16.mxu0 0
        %1248 = vmatpush1.bf16.msra.mxu0 0
        %1249 = vmatprep.subr.bf16.mxu0 0
        %1250 = vmatpush1.bf16.msra.mxu0 0
        %1251 = vmatprep.subr.bf16.mxu0 0
        %1252 = vmatpush1.bf16.msra.mxu0 0
        %1253 = vmatprep.subr.bf16.mxu0 0
        %1254 = vmatpush1.bf16.msra.mxu0 %v1237
        %1255 = vmatprep.subr.bf16.mxu0 0
        %1256 = vmatpush2.bf16.msra.mxu0 0
        %1257 = vmatprep.subr.bf16.mxu0 0
        %1258 = vmatpush2.bf16.msra.mxu0 0
        %1259 = vmatprep.subr.bf16.mxu0 0
        %1260 = vmatpush2.bf16.msra.mxu0 0
        %1261 = vmatprep.subr.bf16.mxu0 0
        %1262 = vmatpush2.bf16.msra.mxu0 0
        %1263 = vmatprep.subr.bf16.mxu0 0
        %1264 = vmatpush2.bf16.msra.mxu0 0
        %1265 = vmatprep.subr.bf16.mxu0 0
        %1266 = vmatpush2.bf16.msra.mxu0 0
        %1267 = vmatprep.subr.bf16.mxu0 0
        %1268 = vmatpush2.bf16.msra.mxu0 0
        %1269 = vmatprep.subr.bf16.mxu0 0
        %1270 = vmatpush2.bf16.msra.mxu0 0
        %1271 = vmatprep.mubr.bf16.mxu0 0
        %1272 = vmatmul.mubr.bf16.gmra.mxu0 %v1234
        %v1273 = vpop.f32.mrf.mxu0
        %v1274 = vadd.f32 %v1228, %v1273
        %v1275 = vpop.f32.mrf.mxu0
        %v1276 = vpop.f32.mrf.mxu0
        %v1277 = vpop.f32.mrf.mxu0
        %1278 = vdwg.mxu0
        %1279 = vrot.lane.b32.xlu0 %v961, 112
        %v1280 = vpop.permute.xlu0 %1279
        %1281 = vrot.lane.b32.xlu0 %v962, 80
        %v1282 = vpop.permute.xlu0 %1281
        %v1284 = vsel %vm966, %v1280, 0
        %v1287 = vsel %vm966, %v1282, 0
        %1289 = vmatprep.subr.bf16.mxu0 0
        %1290 = vmatpush1.bf16.xpose.msra.mxu0 0
        %1291 = vmatprep.subr.bf16.mxu0 0
        %1292 = vmatpush1.bf16.xpose.msra.mxu0 0
        %1293 = vmatprep.subr.bf16.mxu0 0
        %1294 = vmatpush1.bf16.xpose.msra.mxu0 0
        %1295 = vmatprep.subr.bf16.mxu0 0
        %1296 = vmatpush1.bf16.xpose.msra.mxu0 0
        %1297 = vmatprep.subr.bf16.mxu0 0
        %1298 = vmatpush1.bf16.xpose.msra.mxu0 0
        %1299 = vmatprep.subr.bf16.mxu0 0
        %1300 = vmatpush1.bf16.xpose.msra.mxu0 0
        %1301 = vmatprep.subr.bf16.mxu0 0
        %1302 = vmatpush1.bf16.xpose.msra.mxu0 0
        %1303 = vmatprep.subr.bf16.mxu0 0
        %1304 = vmatpush1.bf16.xpose.msra.mxu0 %v1287
        %1305 = vmatprep.subr.bf16.mxu0 0
        %1306 = vmatpush2.bf16.xpose.msra.mxu0 0
        %1307 = vmatprep.subr.bf16.mxu0 0
        %1308 = vmatpush2.bf16.xpose.msra.mxu0 0
        %1309 = vmatprep.subr.bf16.mxu0 0
        %1310 = vmatpush2.bf16.xpose.msra.mxu0 0
        %1311 = vmatprep.subr.bf16.mxu0 0
        %1312 = vmatpush2.bf16.xpose.msra.mxu0 0
        %1313 = vmatprep.subr.bf16.mxu0 0
        %1314 = vmatpush2.bf16.xpose.msra.mxu0 0
        %1315 = vmatprep.subr.bf16.mxu0 0
        %1316 = vmatpush2.bf16.xpose.msra.mxu0 0
        %1317 = vmatprep.subr.bf16.mxu0 0
        %1318 = vmatpush2.bf16.xpose.msra.mxu0 0
        %1319 = vmatprep.subr.bf16.mxu0 0
        %1320 = vmatpush2.bf16.xpose.msra.mxu0 0
        %1321 = vmatprep.mubr.bf16.mxu0 0
        %1322 = vmatmul.mubr.bf16.gmra.mxu0 %v1284
        %v1323 = vpop.f32.mrf.mxu0
        %v1324 = vadd.f32 %v887, %v1323
        %v1325 = vpop.f32.mrf.mxu0
        %v1326 = vpop.f32.mrf.mxu0
        %v1327 = vpop.f32.mrf.mxu0
        %1328 = vdwg.mxu0
        %v1329 = vsel %vm966, %v1324, -inf
        %1330 = vmax.xlane.f32.xlu0 %v1329
        %v1331 = vpop.xlane.xlu0 %1330
        %v1332 = vsub.f32 %v1324, %v1331
        %v1333 = vmul.f32 %v1332, 1.442695
        %v1334 = vpow.pop %v1333
        %v1335 = vsel %vm966, %v1334, 0.0
        %1336 = vadd.xlane.f32.xlu0 %v1335
        %v1337 = vpop.xlane.xlu0 %1336
        %v1338 = vrcp.pop %v1337
        %v1339 = vmul.f32 %v1334, %v1338
        %v1340 = vpack.c.bf16 %v1339, %v1339
        %1341 = vrot.lane.b32.xlu0 %v962, 48
        %v1342 = vpop.permute.xlu0 %1341
        %v1344 = vsel %vm966, %v1340, 0
        %v1347 = vsel %vm1030, %v1342, 0
        %1349 = vmatprep.subr.bf16.mxu0 0
        %1350 = vmatpush1.bf16.msra.mxu0 0
        %1351 = vmatprep.subr.bf16.mxu0 0
        %1352 = vmatpush1.bf16.msra.mxu0 0
        %1353 = vmatprep.subr.bf16.mxu0 0
        %1354 = vmatpush1.bf16.msra.mxu0 0
        %1355 = vmatprep.subr.bf16.mxu0 0
        %1356 = vmatpush1.bf16.msra.mxu0 0
        %1357 = vmatprep.subr.bf16.mxu0 0
        %1358 = vmatpush1.bf16.msra.mxu0 0
        %1359 = vmatprep.subr.bf16.mxu0 0
        %1360 = vmatpush1.bf16.msra.mxu0 0
        %1361 = vmatprep.subr.bf16.mxu0 0
        %1362 = vmatpush1.bf16.msra.mxu0 0
        %1363 = vmatprep.subr.bf16.mxu0 0
        %1364 = vmatpush1.bf16.msra.mxu0 %v1347
        %1365 = vmatprep.subr.bf16.mxu0 0
        %1366 = vmatpush2.bf16.msra.mxu0 0
        %1367 = vmatprep.subr.bf16.mxu0 0
        %1368 = vmatpush2.bf16.msra.mxu0 0
        %1369 = vmatprep.subr.bf16.mxu0 0
        %1370 = vmatpush2.bf16.msra.mxu0 0
        %1371 = vmatprep.subr.bf16.mxu0 0
        %1372 = vmatpush2.bf16.msra.mxu0 0
        %1373 = vmatprep.subr.bf16.mxu0 0
        %1374 = vmatpush2.bf16.msra.mxu0 0
        %1375 = vmatprep.subr.bf16.mxu0 0
        %1376 = vmatpush2.bf16.msra.mxu0 0
        %1377 = vmatprep.subr.bf16.mxu0 0
        %1378 = vmatpush2.bf16.msra.mxu0 0
        %1379 = vmatprep.subr.bf16.mxu0 0
        %1380 = vmatpush2.bf16.msra.mxu0 0
        %1381 = vmatprep.mubr.bf16.mxu0 0
        %1382 = vmatmul.mubr.bf16.gmra.mxu0 %v1344
        %v1383 = vpop.f32.mrf.mxu0
        %v1384 = vadd.f32 0.0, %v1383
        %v1385 = vpop.f32.mrf.mxu0
        %v1386 = vpop.f32.mrf.mxu0
        %v1387 = vpop.f32.mrf.mxu0
        %1388 = vdwg.mxu0
        %v1389 = vpack.c.bf16 %v1384, %v1384
        %v1391 = vsel %vm966, %v1389, 0
        %v1394 = vsel %vm1030, %v958, 0
        %1396 = vmatprep.subr.bf16.mxu0 0
        %1397 = vmatpush1.bf16.msra.mxu0 0
        %1398 = vmatprep.subr.bf16.mxu0 0
        %1399 = vmatpush1.bf16.msra.mxu0 0
        %1400 = vmatprep.subr.bf16.mxu0 0
        %1401 = vmatpush1.bf16.msra.mxu0 0
        %1402 = vmatprep.subr.bf16.mxu0 0
        %1403 = vmatpush1.bf16.msra.mxu0 0
        %1404 = vmatprep.subr.bf16.mxu0 0
        %1405 = vmatpush1.bf16.msra.mxu0 0
        %1406 = vmatprep.subr.bf16.mxu0 0
        %1407 = vmatpush1.bf16.msra.mxu0 0
        %1408 = vmatprep.subr.bf16.mxu0 0
        %1409 = vmatpush1.bf16.msra.mxu0 0
        %1410 = vmatprep.subr.bf16.mxu0 0
        %1411 = vmatpush1.bf16.msra.mxu0 %v1394
        %1412 = vmatprep.subr.bf16.mxu0 0
        %1413 = vmatpush2.bf16.msra.mxu0 0
        %1414 = vmatprep.subr.bf16.mxu0 0
        %1415 = vmatpush2.bf16.msra.mxu0 0
        %1416 = vmatprep.subr.bf16.mxu0 0
        %1417 = vmatpush2.bf16.msra.mxu0 0
        %1418 = vmatprep.subr.bf16.mxu0 0
        %1419 = vmatpush2.bf16.msra.mxu0 0
        %1420 = vmatprep.subr.bf16.mxu0 0
        %1421 = vmatpush2.bf16.msra.mxu0 0
        %1422 = vmatprep.subr.bf16.mxu0 0
        %1423 = vmatpush2.bf16.msra.mxu0 0
        %1424 = vmatprep.subr.bf16.mxu0 0
        %1425 = vmatpush2.bf16.msra.mxu0 0
        %1426 = vmatprep.subr.bf16.mxu0 0
        %1427 = vmatpush2.bf16.msra.mxu0 0
        %1428 = vmatprep.mubr.bf16.mxu0 0
        %1429 = vmatmul.mubr.bf16.gmra.mxu0 %v1391
        %v1430 = vpop.f32.mrf.mxu0
        %v1431 = vadd.f32 0.0, %v1430
        %v1432 = vpop.f32.mrf.mxu0
        %v1433 = vpop.f32.mrf.mxu0
        %v1434 = vpop.f32.mrf.mxu0
        %1435 = vdwg.mxu0
        %v1436 = vadd.f32 %v1274, %v1431
        %1437 = vrot.lane.b32.xlu0 %v961, 104
        %v1438 = vpop.permute.xlu0 %1437
        %1439 = vrot.lane.b32.xlu0 %v962, 72
        %v1440 = vpop.permute.xlu0 %1439
        %v1442 = vsel %vm966, %v1438, 0
        %v1445 = vsel %vm966, %v1440, 0
        %1447 = vmatprep.subr.bf16.mxu0 0
        %1448 = vmatpush1.bf16.xpose.msra.mxu0 0
        %1449 = vmatprep.subr.bf16.mxu0 0
        %1450 = vmatpush1.bf16.xpose.msra.mxu0 0
        %1451 = vmatprep.subr.bf16.mxu0 0
        %1452 = vmatpush1.bf16.xpose.msra.mxu0 0
        %1453 = vmatprep.subr.bf16.mxu0 0
        %1454 = vmatpush1.bf16.xpose.msra.mxu0 0
        %1455 = vmatprep.subr.bf16.mxu0 0
        %1456 = vmatpush1.bf16.xpose.msra.mxu0 0
        %1457 = vmatprep.subr.bf16.mxu0 0
        %1458 = vmatpush1.bf16.xpose.msra.mxu0 0
        %1459 = vmatprep.subr.bf16.mxu0 0
        %1460 = vmatpush1.bf16.xpose.msra.mxu0 0
        %1461 = vmatprep.subr.bf16.mxu0 0
        %1462 = vmatpush1.bf16.xpose.msra.mxu0 %v1445
        %1463 = vmatprep.subr.bf16.mxu0 0
        %1464 = vmatpush2.bf16.xpose.msra.mxu0 0
        %1465 = vmatprep.subr.bf16.mxu0 0
        %1466 = vmatpush2.bf16.xpose.msra.mxu0 0
        %1467 = vmatprep.subr.bf16.mxu0 0
        %1468 = vmatpush2.bf16.xpose.msra.mxu0 0
        %1469 = vmatprep.subr.bf16.mxu0 0
        %1470 = vmatpush2.bf16.xpose.msra.mxu0 0
        %1471 = vmatprep.subr.bf16.mxu0 0
        %1472 = vmatpush2.bf16.xpose.msra.mxu0 0
        %1473 = vmatprep.subr.bf16.mxu0 0
        %1474 = vmatpush2.bf16.xpose.msra.mxu0 0
        %1475 = vmatprep.subr.bf16.mxu0 0
        %1476 = vmatpush2.bf16.xpose.msra.mxu0 0
        %1477 = vmatprep.subr.bf16.mxu0 0
        %1478 = vmatpush2.bf16.xpose.msra.mxu0 0
        %1479 = vmatprep.mubr.bf16.mxu0 0
        %1480 = vmatmul.mubr.bf16.gmra.mxu0 %v1442
        %v1481 = vpop.f32.mrf.mxu0
        %v1482 = vadd.f32 %v887, %v1481
        %v1483 = vpop.f32.mrf.mxu0
        %v1484 = vpop.f32.mrf.mxu0
        %v1485 = vpop.f32.mrf.mxu0
        %1486 = vdwg.mxu0
        %v1487 = vsel %vm966, %v1482, -inf
        %1488 = vmax.xlane.f32.xlu0 %v1487
        %v1489 = vpop.xlane.xlu0 %1488
        %v1490 = vsub.f32 %v1482, %v1489
        %v1491 = vmul.f32 %v1490, 1.442695
        %v1492 = vpow.pop %v1491
        %v1493 = vsel %vm966, %v1492, 0.0
        %1494 = vadd.xlane.f32.xlu0 %v1493
        %v1495 = vpop.xlane.xlu0 %1494
        %v1496 = vrcp.pop %v1495
        %v1497 = vmul.f32 %v1492, %v1496
        %v1498 = vpack.c.bf16 %v1497, %v1497
        %1499 = vrot.lane.b32.xlu0 %v962, 40
        %v1500 = vpop.permute.xlu0 %1499
        %v1502 = vsel %vm966, %v1498, 0
        %v1505 = vsel %vm1030, %v1500, 0
        %1507 = vmatprep.subr.bf16.mxu0 0
        %1508 = vmatpush1.bf16.msra.mxu0 0
        %1509 = vmatprep.subr.bf16.mxu0 0
        %1510 = vmatpush1.bf16.msra.mxu0 0
        %1511 = vmatprep.subr.bf16.mxu0 0
        %1512 = vmatpush1.bf16.msra.mxu0 0
        %1513 = vmatprep.subr.bf16.mxu0 0
        %1514 = vmatpush1.bf16.msra.mxu0 0
        %1515 = vmatprep.subr.bf16.mxu0 0
        %1516 = vmatpush1.bf16.msra.mxu0 0
        %1517 = vmatprep.subr.bf16.mxu0 0
        %1518 = vmatpush1.bf16.msra.mxu0 0
        %1519 = vmatprep.subr.bf16.mxu0 0
        %1520 = vmatpush1.bf16.msra.mxu0 0
        %1521 = vmatprep.subr.bf16.mxu0 0
        %1522 = vmatpush1.bf16.msra.mxu0 %v1505
        %1523 = vmatprep.subr.bf16.mxu0 0
        %1524 = vmatpush2.bf16.msra.mxu0 0
        %1525 = vmatprep.subr.bf16.mxu0 0
        %1526 = vmatpush2.bf16.msra.mxu0 0
        %1527 = vmatprep.subr.bf16.mxu0 0
        %1528 = vmatpush2.bf16.msra.mxu0 0
        %1529 = vmatprep.subr.bf16.mxu0 0
        %1530 = vmatpush2.bf16.msra.mxu0 0
        %1531 = vmatprep.subr.bf16.mxu0 0
        %1532 = vmatpush2.bf16.msra.mxu0 0
        %1533 = vmatprep.subr.bf16.mxu0 0
        %1534 = vmatpush2.bf16.msra.mxu0 0
        %1535 = vmatprep.subr.bf16.mxu0 0
        %1536 = vmatpush2.bf16.msra.mxu0 0
        %1537 = vmatprep.subr.bf16.mxu0 0
        %1538 = vmatpush2.bf16.msra.mxu0 0
        %1539 = vmatprep.mubr.bf16.mxu0 0
        %1540 = vmatmul.mubr.bf16.gmra.mxu0 %v1502
        %v1541 = vpop.f32.mrf.mxu0
        %v1542 = vadd.f32 0.0, %v1541
        %v1543 = vpop.f32.mrf.mxu0
        %v1544 = vpop.f32.mrf.mxu0
        %v1545 = vpop.f32.mrf.mxu0
        %1546 = vdwg.mxu0
        %v1547 = vpack.c.bf16 %v1542, %v1542
        %v1549 = vsel %vm966, %v1547, 0
        %v1552 = vsel %vm1030, %v959, 0
        %1554 = vmatprep.subr.bf16.mxu0 0
        %1555 = vmatpush1.bf16.msra.mxu0 0
        %1556 = vmatprep.subr.bf16.mxu0 0
        %1557 = vmatpush1.bf16.msra.mxu0 0
        %1558 = vmatprep.subr.bf16.mxu0 0
        %1559 = vmatpush1.bf16.msra.mxu0 0
        %1560 = vmatprep.subr.bf16.mxu0 0
        %1561 = vmatpush1.bf16.msra.mxu0 0
        %1562 = vmatprep.subr.bf16.mxu0 0
        %1563 = vmatpush1.bf16.msra.mxu0 0
        %1564 = vmatprep.subr.bf16.mxu0 0
        %1565 = vmatpush1.bf16.msra.mxu0 0
        %1566 = vmatprep.subr.bf16.mxu0 0
        %1567 = vmatpush1.bf16.msra.mxu0 0
        %1568 = vmatprep.subr.bf16.mxu0 0
        %1569 = vmatpush1.bf16.msra.mxu0 %v1552
        %1570 = vmatprep.subr.bf16.mxu0 0
        %1571 = vmatpush2.bf16.msra.mxu0 0
        %1572 = vmatprep.subr.bf16.mxu0 0
        %1573 = vmatpush2.bf16.msra.mxu0 0
        %1574 = vmatprep.subr.bf16.mxu0 0
        %1575 = vmatpush2.bf16.msra.mxu0 0
        %1576 = vmatprep.subr.bf16.mxu0 0
        %1577 = vmatpush2.bf16.msra.mxu0 0
        %1578 = vmatprep.subr.bf16.mxu0 0
        %1579 = vmatpush2.bf16.msra.mxu0 0
        %1580 = vmatprep.subr.bf16.mxu0 0
        %1581 = vmatpush2.bf16.msra.mxu0 0
        %1582 = vmatprep.subr.bf16.mxu0 0
        %1583 = vmatpush2.bf16.msra.mxu0 0
        %1584 = vmatprep.subr.bf16.mxu0 0
        %1585 = vmatpush2.bf16.msra.mxu0 0
        %1586 = vmatprep.mubr.bf16.mxu0 0
        %1587 = vmatmul.mubr.bf16.gmra.mxu0 %v1549
        %v1588 = vpop.f32.mrf.mxu0
        %v1589 = vadd.f32 0.0, %v1588
        %v1590 = vpop.f32.mrf.mxu0
        %v1591 = vpop.f32.mrf.mxu0
        %v1592 = vpop.f32.mrf.mxu0
        %1593 = vdwg.mxu0
        %v1594 = vadd.f32 %v1436, %v1589
        %v1595 = vld [vmem:[%s9] sm:$0x1]
        %v1597 = vlaneseq
        %v1598 = vshrl.u32 %v1597, 7
        %v1599 = vsub.s32 0, %v1598
        %v1600 = vrot.slane %v1595, %v1599
        %v1602 = vadd.f32 %v1594, %v1600
        %v1603 = vadd.f32 %v1602, %v881
        %v1604 = vld [vmem:[%s10] sm:$0x1]
        %v1605 = vld [vmem:[%s11] sm:$0x1]
        %v1606 = vsel %vm853, %v1603, 0.0
        %1607 = vadd.xlane.f32.xlu0 %v1606
        %v1608 = vpop.xlane.xlu0 %1607
        %v1609 = vmul.f32 %v1608, %v857
        %v1610 = vsub.f32 %v1603, %v1609
        %v1611 = vmul.f32 %v1610, %v1610
        %v1612 = vsel %vm853, %v1611, 0.0
        %1613 = vadd.xlane.f32.xlu0 %v1612
        %v1614 = vpop.xlane.xlu0 %1613
        %v1615 = vmul.f32 %v1614, %v857
        %v1616 = vadd.f32 %v1615, 1e-12
        %v1617 = vrsqrt.pop %v1616
        %v1618 = vmul.f32 %v1610, %v1617
        %v1620 = vlaneseq
        %v1621 = vshrl.u32 %v1620, 7
        %v1622 = vsub.s32 0, %v1621
        %v1623 = vrot.slane %v1604, %v1622
        %v1625 = vmul.f32 %v1618, %v1623
        %v1627 = vlaneseq
        %v1628 = vshrl.u32 %v1627, 7
        %v1629 = vsub.s32 0, %v1628
        %v1630 = vrot.slane %v1605, %v1629
        %v1632 = vadd.f32 %v1625, %v1630
        %v1633 = vld [vmem:[%s12] sm:$0xf]
        %v1634 = vld [vmem:[%s12 + $0x4] sm:$0xf]
        %v1635 = vld [vmem:[%s12 + $0x8] sm:$0xf]
        %v1636 = vld [vmem:[%s12 + $0xc] sm:$0xf]
        %v1637 = vpack.c.bf16 %v1632, %v1632
        %v1638 = vld [vmem:[%s13] sm:$0x1]
        %v1640 = vlaneseq
        %v1641 = vshrl.u32 %v1640, 7
        %v1642 = vsub.s32 0, %v1641
        %v1643 = vrot.slane %v1638, %v1642
        %v1649 = vunpack.c.l.b16 %v1633
        %v1650 = vunpack.c.l.b16 %v1634
        %v1651 = vunpack.c.l.b16 %v1635
        %v1652 = vunpack.c.l.b16 %v1636
        %v1653 = vpack.c.b16 %v1650, %v1649
        %v1654 = vpack.c.b16 %v1652, %v1651
        %v1658 = vsel %vm853, %v1637, 0
        %1660 = vmatprep.subr.bf16.mxu0 0
        %1661 = vmatpush1.bf16.msra.mxu0 0
        %1662 = vmatprep.subr.bf16.mxu0 0
        %1663 = vmatpush1.bf16.msra.mxu0 0
        %1664 = vmatprep.subr.bf16.mxu0 0
        %1665 = vmatpush1.bf16.msra.mxu0 0
        %1666 = vmatprep.subr.bf16.mxu0 0
        %1667 = vmatpush1.bf16.msra.mxu0 0
        %1668 = vmatprep.subr.bf16.mxu0 0
        %1669 = vmatpush1.bf16.msra.mxu0 0
        %1670 = vmatprep.subr.bf16.mxu0 0
        %1671 = vmatpush1.bf16.msra.mxu0 0
        %1672 = vmatprep.subr.bf16.mxu0 0
        %1673 = vmatpush1.bf16.msra.mxu0 %v1654
        %1674 = vmatprep.subr.bf16.mxu0 0
        %1675 = vmatpush1.bf16.msra.mxu0 %v1653
        %1676 = vmatprep.subr.bf16.mxu0 0
        %1677 = vmatpush2.bf16.msra.mxu0 0
        %1678 = vmatprep.subr.bf16.mxu0 0
        %1679 = vmatpush2.bf16.msra.mxu0 0
        %1680 = vmatprep.subr.bf16.mxu0 0
        %1681 = vmatpush2.bf16.msra.mxu0 0
        %1682 = vmatprep.subr.bf16.mxu0 0
        %1683 = vmatpush2.bf16.msra.mxu0 0
        %1684 = vmatprep.subr.bf16.mxu0 0
        %1685 = vmatpush2.bf16.msra.mxu0 0
        %1686 = vmatprep.subr.bf16.mxu0 0
        %1687 = vmatpush2.bf16.msra.mxu0 0
        %1688 = vmatprep.subr.bf16.mxu0 0
        %1689 = vmatpush2.bf16.msra.mxu0 0
        %1690 = vmatprep.subr.bf16.mxu0 0
        %1691 = vmatpush2.bf16.msra.mxu0 0
        %1692 = vmatprep.mubr.bf16.mxu0 0
        %1693 = vmatmul.mubr.bf16.gmra.mxu0 %v1658
        %v1694 = vpop.f32.mrf.mxu0
        %v1695 = vadd.f32 %v1643, %v1694
        %v1696 = vpop.f32.mrf.mxu0
        %v1697 = vpop.f32.mrf.mxu0
        %v1698 = vpop.f32.mrf.mxu0
        %1699 = vdwg.mxu0
        %v1700 = vmul.f32 %v1695, 0.5
        %v1701 = vmul.f32 %v1695, 0.044715
        %v1702 = vmul.f32 %v1701, %v1695
        %v1703 = vmul.f32 %v1702, %v1695
        %v1704 = vadd.f32 %v1695, %v1703
        %v1705 = vmul.f32 %v1704, 0.7978846
        %v1706 = vtanh.pop %v1705
        %v1707 = vadd.f32 %v1706, 1.0
        %v1708 = vmul.f32 %v1700, %v1707
        %v1709 = vld [vmem:[%s14] sm:$0xf]
        %v1710 = vld [vmem:[%s14 + $0x4] sm:$0xf]
        %v1711 = vld [vmem:[%s14 + $0x8] sm:$0xf]
        %v1712 = vld [vmem:[%s14 + $0xc] sm:$0xf]
        %v1713 = vld [vmem:[%s14 + $0x10] sm:$0xf]
        %v1714 = vld [vmem:[%s14 + $0x14] sm:$0xf]
        %v1715 = vld [vmem:[%s14 + $0x18] sm:$0xf]
        %v1716 = vld [vmem:[%s14 + $0x1c] sm:$0xf]
        %v1717 = vpack.c.bf16 %v1708, %v1708
        %v1718 = vld [vmem:[%s15] sm:$0x1]
        %v1720 = vlaneseq
        %v1721 = vshrl.u32 %v1720, 7
        %v1722 = vsub.s32 0, %v1721
        %v1723 = vrot.slane %v1718, %v1722
        %v1733 = vunpack.c.l.b16 %v1709
        %v1734 = vunpack.c.l.b16 %v1710
        %v1735 = vunpack.c.l.b16 %v1711
        %v1736 = vunpack.c.l.b16 %v1712
        %v1737 = vunpack.c.l.b16 %v1713
        %v1738 = vunpack.c.l.b16 %v1714
        %v1739 = vunpack.c.l.b16 %v1715
        %v1740 = vunpack.c.l.b16 %v1716
        %v1741 = vpack.c.b16 %v1734, %v1733
        %v1742 = vpack.c.b16 %v1736, %v1735
        %v1743 = vpack.c.b16 %v1738, %v1737
        %v1744 = vpack.c.b16 %v1740, %v1739
        %vm1749 = vcmask 523264
        %v1751 = vsel %vm1749, %v1717, 0
        %1753 = vmatprep.subr.bf16.mxu0 0
        %1754 = vmatpush1.bf16.msra.mxu0 0
        %1755 = vmatprep.subr.bf16.mxu0 0
        %1756 = vmatpush1.bf16.msra.mxu0 0
        %1757 = vmatprep.subr.bf16.mxu0 0
        %1758 = vmatpush1.bf16.msra.mxu0 0
        %1759 = vmatprep.subr.bf16.mxu0 0
        %1760 = vmatpush1.bf16.msra.mxu0 0
        %1761 = vmatprep.subr.bf16.mxu0 0
        %1762 = vmatpush1.bf16.msra.mxu0 %v1744
        %1763 = vmatprep.subr.bf16.mxu0 0
        %1764 = vmatpush1.bf16.msra.mxu0 %v1743
        %1765 = vmatprep.subr.bf16.mxu0 0
        %1766 = vmatpush1.bf16.msra.mxu0 %v1742
        %1767 = vmatprep.subr.bf16.mxu0 0
        %1768 = vmatpush1.bf16.msra.mxu0 %v1741
        %1769 = vmatprep.subr.bf16.mxu0 0
        %1770 = vmatpush2.bf16.msra.mxu0 0
        %1771 = vmatprep.subr.bf16.mxu0 0
        %1772 = vmatpush2.bf16.msra.mxu0 0
        %1773 = vmatprep.subr.bf16.mxu0 0
        %1774 = vmatpush2.bf16.msra.mxu0 0
        %1775 = vmatprep.subr.bf16.mxu0 0
        %1776 = vmatpush2.bf16.msra.mxu0 0
        %1777 = vmatprep.subr.bf16.mxu0 0
        %1778 = vmatpush2.bf16.msra.mxu0 0
        %1779 = vmatprep.subr.bf16.mxu0 0
        %1780 = vmatpush2.bf16.msra.mxu0 0
        %1781 = vmatprep.subr.bf16.mxu0 0
        %1782 = vmatpush2.bf16.msra.mxu0 0
        %1783 = vmatprep.subr.bf16.mxu0 0
        %1784 = vmatpush2.bf16.msra.mxu0 0
        %1785 = vmatprep.mubr.bf16.mxu0 0
        %1786 = vmatmul.mubr.bf16.gmra.mxu0 %v1751
        %v1787 = vpop.f32.mrf.mxu0
        %v1788 = vadd.f32 %v1723, %v1787
        %v1789 = vpop.f32.mrf.mxu0
        %v1790 = vpop.f32.mrf.mxu0
        %v1791 = vpop.f32.mrf.mxu0
        %1792 = vdwg.mxu0
        %v1793 = vadd.f32 %v1788, %v1632
        %v1794 = vld [vmem:[%s16] sm:$0x1]
        %v1795 = vld [vmem:[%s17] sm:$0x1]
        %v1796 = vsel %vm853, %v1793, 0.0
        %1797 = vadd.xlane.f32.xlu0 %v1796
        %v1798 = vpop.xlane.xlu0 %1797
        %v1799 = vmul.f32 %v1798, %v857
        %v1800 = vsub.f32 %v1793, %v1799
        %v1801 = vmul.f32 %v1800, %v1800
        %v1802 = vsel %vm853, %v1801, 0.0
        %1803 = vadd.xlane.f32.xlu0 %v1802
        %v1804 = vpop.xlane.xlu0 %1803
        %v1805 = vmul.f32 %v1804, %v857
        %v1806 = vadd.f32 %v1805, 1e-12
        %v1807 = vrsqrt.pop %v1806
        %v1808 = vmul.f32 %v1800, %v1807
        %v1810 = vlaneseq
        %v1811 = vshrl.u32 %v1810, 7
        %v1812 = vsub.s32 0, %v1811
        %v1813 = vrot.slane %v1794, %v1812
        %v1815 = vmul.f32 %v1808, %v1813
        %v1817 = vlaneseq
        %v1818 = vshrl.u32 %v1817, 7
        %v1819 = vsub.s32 0, %v1818
        %v1820 = vrot.slane %v1795, %v1819
        %v1822 = vadd.f32 %v1815, %v1820
        %s1823 = scalar_lea.vmem %s6, 16
        %v1824 = vld [vmem:[%s1823] sm:$0xf]
        %v1825 = vld [vmem:[%s1823 + $0x4] sm:$0xf]
        %v1826 = vld [vmem:[%s1823 + $0x8] sm:$0xf]
        %v1827 = vld [vmem:[%s1823 + $0xc] sm:$0xf]
        %v1828 = vpack.c.bf16 %v1822, %v1822
        %s1829 = scalar_lea.vmem %s7, 1
        %v1830 = vld [vmem:[%s1829] sm:$0x1]
        %v1832 = vlaneseq
        %v1833 = vshrl.u32 %v1832, 7
        %v1834 = vsub.s32 0, %v1833
        %v1835 = vrot.slane %v1830, %v1834
        %v1841 = vunpack.c.l.b16 %v1824
        %v1842 = vunpack.c.l.b16 %v1825
        %v1843 = vunpack.c.l.b16 %v1826
        %v1844 = vunpack.c.l.b16 %v1827
        %v1845 = vpack.c.b16 %v1842, %v1841
        %v1846 = vpack.c.b16 %v1844, %v1843
        %v1850 = vsel %vm853, %v1828, 0
        %1852 = vmatprep.subr.bf16.mxu0 0
        %1853 = vmatpush1.bf16.msra.mxu0 0
        %1854 = vmatprep.subr.bf16.mxu0 0
        %1855 = vmatpush1.bf16.msra.mxu0 0
        %1856 = vmatprep.subr.bf16.mxu0 0
        %1857 = vmatpush1.bf16.msra.mxu0 0
        %1858 = vmatprep.subr.bf16.mxu0 0
        %1859 = vmatpush1.bf16.msra.mxu0 0
        %1860 = vmatprep.subr.bf16.mxu0 0
        %1861 = vmatpush1.bf16.msra.mxu0 0
        %1862 = vmatprep.subr.bf16.mxu0 0
        %1863 = vmatpush1.bf16.msra.mxu0 0
        %1864 = vmatprep.subr.bf16.mxu0 0
        %1865 = vmatpush1.bf16.msra.mxu0 %v1846
        %1866 = vmatprep.subr.bf16.mxu0 0
        %1867 = vmatpush1.bf16.msra.mxu0 %v1845
        %1868 = vmatprep.subr.bf16.mxu0 0
        %1869 = vmatpush2.bf16.msra.mxu0 0
        %1870 = vmatprep.subr.bf16.mxu0 0
        %1871 = vmatpush2.bf16.msra.mxu0 0
        %1872 = vmatprep.subr.bf16.mxu0 0
        %1873 = vmatpush2.bf16.msra.mxu0 0
        %1874 = vmatprep.subr.bf16.mxu0 0
        %1875 = vmatpush2.bf16.msra.mxu0 0
        %1876 = vmatprep.subr.bf16.mxu0 0
        %1877 = vmatpush2.bf16.msra.mxu0 0
        %1878 = vmatprep.subr.bf16.mxu0 0
        %1879 = vmatpush2.bf16.msra.mxu0 0
        %1880 = vmatprep.subr.bf16.mxu0 0
        %1881 = vmatpush2.bf16.msra.mxu0 0
        %1882 = vmatprep.subr.bf16.mxu0 0
        %1883 = vmatpush2.bf16.msra.mxu0 0
        %1884 = vmatprep.mubr.bf16.mxu0 0
        %1885 = vmatmul.mubr.bf16.gmra.mxu0 %v1850
        %v1886 = vpop.f32.mrf.mxu0
        %v1887 = vadd.f32 %v1835, %v1886
        %v1888 = vpop.f32.mrf.mxu0
        %v1889 = vpop.f32.mrf.mxu0
        %v1890 = vpop.f32.mrf.mxu0
        %1891 = vdwg.mxu0
        %s1892 = scalar_lea.vmem %s8, 16
        %v1893 = vld [vmem:[%s1892] sm:$0xf]
        %v1894 = vld [vmem:[%s1892 + $0x4] sm:$0xf]
        %v1895 = vld [vmem:[%s1892 + $0x8] sm:$0xf]
        %v1896 = vld [vmem:[%s1892 + $0xc] sm:$0xf]
        %v1897 = vmul.f32 %v1887, 0.35355338
        %v1898 = vpack.c.bf16 %v1897, %v1897
        %v1899 = vpack.c.bf16 %v1887, %v1887
        %1901 = vrot.lane.b32.xlu0 %v1899, 96
        %v1902 = vpop.permute.xlu0 %1901
        %v1904 = vsel %vm966, %v1898, 0
        %v1907 = vsel %vm966, %v1902, 0
        %1909 = vmatprep.subr.bf16.mxu0 0
        %1910 = vmatpush1.bf16.xpose.msra.mxu0 0
        %1911 = vmatprep.subr.bf16.mxu0 0
        %1912 = vmatpush1.bf16.xpose.msra.mxu0 0
        %1913 = vmatprep.subr.bf16.mxu0 0
        %1914 = vmatpush1.bf16.xpose.msra.mxu0 0
        %1915 = vmatprep.subr.bf16.mxu0 0
        %1916 = vmatpush1.bf16.xpose.msra.mxu0 0
        %1917 = vmatprep.subr.bf16.mxu0 0
        %1918 = vmatpush1.bf16.xpose.msra.mxu0 0
        %1919 = vmatprep.subr.bf16.mxu0 0
        %1920 = vmatpush1.bf16.xpose.msra.mxu0 0
        %1921 = vmatprep.subr.bf16.mxu0 0
        %1922 = vmatpush1.bf16.xpose.msra.mxu0 0
        %1923 = vmatprep.subr.bf16.mxu0 0
        %1924 = vmatpush1.bf16.xpose.msra.mxu0 %v1907
        %1925 = vmatprep.subr.bf16.mxu0 0
        %1926 = vmatpush2.bf16.xpose.msra.mxu0 0
        %1927 = vmatprep.subr.bf16.mxu0 0
        %1928 = vmatpush2.bf16.xpose.msra.mxu0 0
        %1929 = vmatprep.subr.bf16.mxu0 0
        %1930 = vmatpush2.bf16.xpose.msra.mxu0 0
        %1931 = vmatprep.subr.bf16.mxu0 0
        %1932 = vmatpush2.bf16.xpose.msra.mxu0 0
        %1933 = vmatprep.subr.bf16.mxu0 0
        %1934 = vmatpush2.bf16.xpose.msra.mxu0 0
        %1935 = vmatprep.subr.bf16.mxu0 0
        %1936 = vmatpush2.bf16.xpose.msra.mxu0 0
        %1937 = vmatprep.subr.bf16.mxu0 0
        %1938 = vmatpush2.bf16.xpose.msra.mxu0 0
        %1939 = vmatprep.subr.bf16.mxu0 0
        %1940 = vmatpush2.bf16.xpose.msra.mxu0 0
        %1941 = vmatprep.mubr.bf16.mxu0 0
        %1942 = vmatmul.mubr.bf16.gmra.mxu0 %v1904
        %v1943 = vpop.f32.mrf.mxu0
        %v1944 = vadd.f32 %v887, %v1943
        %v1945 = vpop.f32.mrf.mxu0
        %v1946 = vpop.f32.mrf.mxu0
        %v1947 = vpop.f32.mrf.mxu0
        %1948 = vdwg.mxu0
        %v1949 = vsel %vm966, %v1944, -inf
        %1950 = vmax.xlane.f32.xlu0 %v1949
        %v1951 = vpop.xlane.xlu0 %1950
        %v1952 = vsub.f32 %v1944, %v1951
        %v1953 = vmul.f32 %v1952, 1.442695
        %v1954 = vpow.pop %v1953
        %v1955 = vsel %vm966, %v1954, 0.0
        %1956 = vadd.xlane.f32.xlu0 %v1955
        %v1957 = vpop.xlane.xlu0 %1956
        %v1958 = vrcp.pop %v1957
        %v1959 = vmul.f32 %v1954, %v1958
        %v1960 = vpack.c.bf16 %v1959, %v1959
        %1961 = vrot.lane.b32.xlu0 %v1899, 64
        %v1962 = vpop.permute.xlu0 %1961
        %v1964 = vsel %vm966, %v1960, 0
        %v1967 = vsel %vm1030, %v1962, 0
        %1969 = vmatprep.subr.bf16.mxu0 0
        %1970 = vmatpush1.bf16.msra.mxu0 0
        %1971 = vmatprep.subr.bf16.mxu0 0
        %1972 = vmatpush1.bf16.msra.mxu0 0
        %1973 = vmatprep.subr.bf16.mxu0 0
        %1974 = vmatpush1.bf16.msra.mxu0 0
        %1975 = vmatprep.subr.bf16.mxu0 0
        %1976 = vmatpush1.bf16.msra.mxu0 0
        %1977 = vmatprep.subr.bf16.mxu0 0
        %1978 = vmatpush1.bf16.msra.mxu0 0
        %1979 = vmatprep.subr.bf16.mxu0 0
        %1980 = vmatpush1.bf16.msra.mxu0 0
        %1981 = vmatprep.subr.bf16.mxu0 0
        %1982 = vmatpush1.bf16.msra.mxu0 0
        %1983 = vmatprep.subr.bf16.mxu0 0
        %1984 = vmatpush1.bf16.msra.mxu0 %v1967
        %1985 = vmatprep.subr.bf16.mxu0 0
        %1986 = vmatpush2.bf16.msra.mxu0 0
        %1987 = vmatprep.subr.bf16.mxu0 0
        %1988 = vmatpush2.bf16.msra.mxu0 0
        %1989 = vmatprep.subr.bf16.mxu0 0
        %1990 = vmatpush2.bf16.msra.mxu0 0
        %1991 = vmatprep.subr.bf16.mxu0 0
        %1992 = vmatpush2.bf16.msra.mxu0 0
        %1993 = vmatprep.subr.bf16.mxu0 0
        %1994 = vmatpush2.bf16.msra.mxu0 0
        %1995 = vmatprep.subr.bf16.mxu0 0
        %1996 = vmatpush2.bf16.msra.mxu0 0
        %1997 = vmatprep.subr.bf16.mxu0 0
        %1998 = vmatpush2.bf16.msra.mxu0 0
        %1999 = vmatprep.subr.bf16.mxu0 0
        %2000 = vmatpush2.bf16.msra.mxu0 0
        %2001 = vmatprep.mubr.bf16.mxu0 0
        %2002 = vmatmul.mubr.bf16.gmra.mxu0 %v1964
        %v2003 = vpop.f32.mrf.mxu0
        %v2004 = vadd.f32 0.0, %v2003
        %v2005 = vpop.f32.mrf.mxu0
        %v2006 = vpop.f32.mrf.mxu0
        %v2007 = vpop.f32.mrf.mxu0
        %2008 = vdwg.mxu0
        %v2009 = vpack.c.bf16 %v2004, %v2004
        %2011 = vrot.lane.b32.xlu0 %v1898, 120
        %v2012 = vpop.permute.xlu0 %2011
        %2013 = vrot.lane.b32.xlu0 %v1899, 88
        %v2014 = vpop.permute.xlu0 %2013
        %v2016 = vsel %vm966, %v2012, 0
        %v2019 = vsel %vm966, %v2014, 0
        %2021 = vmatprep.subr.bf16.mxu0 0
        %2022 = vmatpush1.bf16.xpose.msra.mxu0 0
        %2023 = vmatprep.subr.bf16.mxu0 0
        %2024 = vmatpush1.bf16.xpose.msra.mxu0 0
        %2025 = vmatprep.subr.bf16.mxu0 0
        %2026 = vmatpush1.bf16.xpose.msra.mxu0 0
        %2027 = vmatprep.subr.bf16.mxu0 0
        %2028 = vmatpush1.bf16.xpose.msra.mxu0 0
        %2029 = vmatprep.subr.bf16.mxu0 0
        %2030 = vmatpush1.bf16.xpose.msra.mxu0 0
        %2031 = vmatprep.subr.bf16.mxu0 0
        %2032 = vmatpush1.bf16.xpose.msra.mxu0 0
        %2033 = vmatprep.subr.bf16.mxu0 0
        %2034 = vmatpush1.bf16.xpose.msra.mxu0 0
        %2035 = vmatprep.subr.bf16.mxu0 0
        %2036 = vmatpush1.bf16.xpose.msra.mxu0 %v2019
        %2037 = vmatprep.subr.bf16.mxu0 0
        %2038 = vmatpush2.bf16.xpose.msra.mxu0 0
        %2039 = vmatprep.subr.bf16.mxu0 0
        %2040 = vmatpush2.bf16.xpose.msra.mxu0 0
        %2041 = vmatprep.subr.bf16.mxu0 0
        %2042 = vmatpush2.bf16.xpose.msra.mxu0 0
        %2043 = vmatprep.subr.bf16.mxu0 0
        %2044 = vmatpush2.bf16.xpose.msra.mxu0 0
        %2045 = vmatprep.subr.bf16.mxu0 0
        %2046 = vmatpush2.bf16.xpose.msra.mxu0 0
        %2047 = vmatprep.subr.bf16.mxu0 0
        %2048 = vmatpush2.bf16.xpose.msra.mxu0 0
        %2049 = vmatprep.subr.bf16.mxu0 0
        %2050 = vmatpush2.bf16.xpose.msra.mxu0 0
        %2051 = vmatprep.subr.bf16.mxu0 0
        %2052 = vmatpush2.bf16.xpose.msra.mxu0 0
        %2053 = vmatprep.mubr.bf16.mxu0 0
        %2054 = vmatmul.mubr.bf16.gmra.mxu0 %v2016
        %v2055 = vpop.f32.mrf.mxu0
        %v2056 = vadd.f32 %v887, %v2055
        %v2057 = vpop.f32.mrf.mxu0
        %v2058 = vpop.f32.mrf.mxu0
        %v2059 = vpop.f32.mrf.mxu0
        %2060 = vdwg.mxu0
        %v2061 = vsel %vm966, %v2056, -inf
        %2062 = vmax.xlane.f32.xlu0 %v2061
        %v2063 = vpop.xlane.xlu0 %2062
        %v2064 = vsub.f32 %v2056, %v2063
        %v2065 = vmul.f32 %v2064, 1.442695
        %v2066 = vpow.pop %v2065
        %v2067 = vsel %vm966, %v2066, 0.0
        %2068 = vadd.xlane.f32.xlu0 %v2067
        %v2069 = vpop.xlane.xlu0 %2068
        %v2070 = vrcp.pop %v2069
        %v2071 = vmul.f32 %v2066, %v2070
        %v2072 = vpack.c.bf16 %v2071, %v2071
        %2073 = vrot.lane.b32.xlu0 %v1899, 56
        %v2074 = vpop.permute.xlu0 %2073
        %v2076 = vsel %vm966, %v2072, 0
        %v2079 = vsel %vm1030, %v2074, 0
        %2081 = vmatprep.subr.bf16.mxu0 0
        %2082 = vmatpush1.bf16.msra.mxu0 0
        %2083 = vmatprep.subr.bf16.mxu0 0
        %2084 = vmatpush1.bf16.msra.mxu0 0
        %2085 = vmatprep.subr.bf16.mxu0 0
        %2086 = vmatpush1.bf16.msra.mxu0 0
        %2087 = vmatprep.subr.bf16.mxu0 0
        %2088 = vmatpush1.bf16.msra.mxu0 0
        %2089 = vmatprep.subr.bf16.mxu0 0
        %2090 = vmatpush1.bf16.msra.mxu0 0
        %2091 = vmatprep.subr.bf16.mxu0 0
        %2092 = vmatpush1.bf16.msra.mxu0 0
        %2093 = vmatprep.subr.bf16.mxu0 0
        %2094 = vmatpush1.bf16.msra.mxu0 0
        %2095 = vmatprep.subr.bf16.mxu0 0
        %2096 = vmatpush1.bf16.msra.mxu0 %v2079
        %2097 = vmatprep.subr.bf16.mxu0 0
        %2098 = vmatpush2.bf16.msra.mxu0 0
        %2099 = vmatprep.subr.bf16.mxu0 0
        %2100 = vmatpush2.bf16.msra.mxu0 0
        %2101 = vmatprep.subr.bf16.mxu0 0
        %2102 = vmatpush2.bf16.msra.mxu0 0
        %2103 = vmatprep.subr.bf16.mxu0 0
        %2104 = vmatpush2.bf16.msra.mxu0 0
        %2105 = vmatprep.subr.bf16.mxu0 0
        %2106 = vmatpush2.bf16.msra.mxu0 0
        %2107 = vmatprep.subr.bf16.mxu0 0
        %2108 = vmatpush2.bf16.msra.mxu0 0
        %2109 = vmatprep.subr.bf16.mxu0 0
        %2110 = vmatpush2.bf16.msra.mxu0 0
        %2111 = vmatprep.subr.bf16.mxu0 0
        %2112 = vmatpush2.bf16.msra.mxu0 0
        %2113 = vmatprep.mubr.bf16.mxu0 0
        %2114 = vmatmul.mubr.bf16.gmra.mxu0 %v2076
        %v2115 = vpop.f32.mrf.mxu0
        %v2116 = vadd.f32 0.0, %v2115
        %v2117 = vpop.f32.mrf.mxu0
        %v2118 = vpop.f32.mrf.mxu0
        %v2119 = vpop.f32.mrf.mxu0
        %2120 = vdwg.mxu0
        %v2121 = vpack.c.bf16 %v2116, %v2116
        %v2123 = vsel %vm966, %v2121, 0
        %v2126 = vsel %vm1030, %v1894, 0
        %2128 = vmatprep.subr.bf16.mxu0 0
        %2129 = vmatpush1.bf16.msra.mxu0 0
        %2130 = vmatprep.subr.bf16.mxu0 0
        %2131 = vmatpush1.bf16.msra.mxu0 0
        %2132 = vmatprep.subr.bf16.mxu0 0
        %2133 = vmatpush1.bf16.msra.mxu0 0
        %2134 = vmatprep.subr.bf16.mxu0 0
        %2135 = vmatpush1.bf16.msra.mxu0 0
        %2136 = vmatprep.subr.bf16.mxu0 0
        %2137 = vmatpush1.bf16.msra.mxu0 0
        %2138 = vmatprep.subr.bf16.mxu0 0
        %2139 = vmatpush1.bf16.msra.mxu0 0
        %2140 = vmatprep.subr.bf16.mxu0 0
        %2141 = vmatpush1.bf16.msra.mxu0 0
        %2142 = vmatprep.subr.bf16.mxu0 0
        %2143 = vmatpush1.bf16.msra.mxu0 %v2126
        %2144 = vmatprep.subr.bf16.mxu0 0
        %2145 = vmatpush2.bf16.msra.mxu0 0
        %2146 = vmatprep.subr.bf16.mxu0 0
        %2147 = vmatpush2.bf16.msra.mxu0 0
        %2148 = vmatprep.subr.bf16.mxu0 0
        %2149 = vmatpush2.bf16.msra.mxu0 0
        %2150 = vmatprep.subr.bf16.mxu0 0
        %2151 = vmatpush2.bf16.msra.mxu0 0
        %2152 = vmatprep.subr.bf16.mxu0 0
        %2153 = vmatpush2.bf16.msra.mxu0 0
        %2154 = vmatprep.subr.bf16.mxu0 0
        %2155 = vmatpush2.bf16.msra.mxu0 0
        %2156 = vmatprep.subr.bf16.mxu0 0
        %2157 = vmatpush2.bf16.msra.mxu0 0
        %2158 = vmatprep.subr.bf16.mxu0 0
        %2159 = vmatpush2.bf16.msra.mxu0 0
        %2160 = vmatprep.mubr.bf16.mxu0 0
        %2161 = vmatmul.mubr.bf16.gmra.mxu0 %v2123
        %v2162 = vpop.f32.mrf.mxu0
        %v2163 = vadd.f32 0.0, %v2162
        %v2164 = vpop.f32.mrf.mxu0
        %v2165 = vpop.f32.mrf.mxu0
        %v2166 = vpop.f32.mrf.mxu0
        %2167 = vdwg.mxu0
        %v2169 = vsel %vm966, %v2009, 0
        %v2172 = vsel %vm1030, %v1893, 0
        %2174 = vmatprep.subr.bf16.mxu0 0
        %2175 = vmatpush1.bf16.msra.mxu0 0
        %2176 = vmatprep.subr.bf16.mxu0 0
        %2177 = vmatpush1.bf16.msra.mxu0 0
        %2178 = vmatprep.subr.bf16.mxu0 0
        %2179 = vmatpush1.bf16.msra.mxu0 0
        %2180 = vmatprep.subr.bf16.mxu0 0
        %2181 = vmatpush1.bf16.msra.mxu0 0
        %2182 = vmatprep.subr.bf16.mxu0 0
        %2183 = vmatpush1.bf16.msra.mxu0 0
        %2184 = vmatprep.subr.bf16.mxu0 0
        %2185 = vmatpush1.bf16.msra.mxu0 0
        %2186 = vmatprep.subr.bf16.mxu0 0
        %2187 = vmatpush1.bf16.msra.mxu0 0
        %2188 = vmatprep.subr.bf16.mxu0 0
        %2189 = vmatpush1.bf16.msra.mxu0 %v2172
        %2190 = vmatprep.subr.bf16.mxu0 0
        %2191 = vmatpush2.bf16.msra.mxu0 0
        %2192 = vmatprep.subr.bf16.mxu0 0
        %2193 = vmatpush2.bf16.msra.mxu0 0
        %2194 = vmatprep.subr.bf16.mxu0 0
        %2195 = vmatpush2.bf16.msra.mxu0 0
        %2196 = vmatprep.subr.bf16.mxu0 0
        %2197 = vmatpush2.bf16.msra.mxu0 0
        %2198 = vmatprep.subr.bf16.mxu0 0
        %2199 = vmatpush2.bf16.msra.mxu0 0
        %2200 = vmatprep.subr.bf16.mxu0 0
        %2201 = vmatpush2.bf16.msra.mxu0 0
        %2202 = vmatprep.subr.bf16.mxu0 0
        %2203 = vmatpush2.bf16.msra.mxu0 0
        %2204 = vmatprep.subr.bf16.mxu0 0
        %2205 = vmatpush2.bf16.msra.mxu0 0
        %2206 = vmatprep.mubr.bf16.mxu0 0
        %2207 = vmatmul.mubr.bf16.gmra.mxu0 %v2169
        %v2208 = vpop.f32.mrf.mxu0
        %v2209 = vadd.f32 %v2163, %v2208
        %v2210 = vpop.f32.mrf.mxu0
        %v2211 = vpop.f32.mrf.mxu0
        %v2212 = vpop.f32.mrf.mxu0
        %2213 = vdwg.mxu0
        %2214 = vrot.lane.b32.xlu0 %v1898, 112
        %v2215 = vpop.permute.xlu0 %2214
        %2216 = vrot.lane.b32.xlu0 %v1899, 80
        %v2217 = vpop.permute.xlu0 %2216
        %v2219 = vsel %vm966, %v2215, 0
        %v2222 = vsel %vm966, %v2217, 0
        %2224 = vmatprep.subr.bf16.mxu0 0
        %2225 = vmatpush1.bf16.xpose.msra.mxu0 0
        %2226 = vmatprep.subr.bf16.mxu0 0
        %2227 = vmatpush1.bf16.xpose.msra.mxu0 0
        %2228 = vmatprep.subr.bf16.mxu0 0
        %2229 = vmatpush1.bf16.xpose.msra.mxu0 0
        %2230 = vmatprep.subr.bf16.mxu0 0
        %2231 = vmatpush1.bf16.xpose.msra.mxu0 0
        %2232 = vmatprep.subr.bf16.mxu0 0
        %2233 = vmatpush1.bf16.xpose.msra.mxu0 0
        %2234 = vmatprep.subr.bf16.mxu0 0
        %2235 = vmatpush1.bf16.xpose.msra.mxu0 0
        %2236 = vmatprep.subr.bf16.mxu0 0
        %2237 = vmatpush1.bf16.xpose.msra.mxu0 0
        %2238 = vmatprep.subr.bf16.mxu0 0
        %2239 = vmatpush1.bf16.xpose.msra.mxu0 %v2222
        %2240 = vmatprep.subr.bf16.mxu0 0
        %2241 = vmatpush2.bf16.xpose.msra.mxu0 0
        %2242 = vmatprep.subr.bf16.mxu0 0
        %2243 = vmatpush2.bf16.xpose.msra.mxu0 0
        %2244 = vmatprep.subr.bf16.mxu0 0
        %2245 = vmatpush2.bf16.xpose.msra.mxu0 0
        %2246 = vmatprep.subr.bf16.mxu0 0
        %2247 = vmatpush2.bf16.xpose.msra.mxu0 0
        %2248 = vmatprep.subr.bf16.mxu0 0
        %2249 = vmatpush2.bf16.xpose.msra.mxu0 0
        %2250 = vmatprep.subr.bf16.mxu0 0
        %2251 = vmatpush2.bf16.xpose.msra.mxu0 0
        %2252 = vmatprep.subr.bf16.mxu0 0
        %2253 = vmatpush2.bf16.xpose.msra.mxu0 0
        %2254 = vmatprep.subr.bf16.mxu0 0
        %2255 = vmatpush2.bf16.xpose.msra.mxu0 0
        %2256 = vmatprep.mubr.bf16.mxu0 0
        %2257 = vmatmul.mubr.bf16.gmra.mxu0 %v2219
        %v2258 = vpop.f32.mrf.mxu0
        %v2259 = vadd.f32 %v887, %v2258
        %v2260 = vpop.f32.mrf.mxu0
        %v2261 = vpop.f32.mrf.mxu0
        %v2262 = vpop.f32.mrf.mxu0
        %2263 = vdwg.mxu0
        %v2264 = vsel %vm966, %v2259, -inf
        %2265 = vmax.xlane.f32.xlu0 %v2264
        %v2266 = vpop.xlane.xlu0 %2265
        %v2267 = vsub.f32 %v2259, %v2266
        %v2268 = vmul.f32 %v2267, 1.442695
        %v2269 = vpow.pop %v2268
        %v2270 = vsel %vm966, %v2269, 0.0
        %2271 = vadd.xlane.f32.xlu0 %v2270
        %v2272 = vpop.xlane.xlu0 %2271
        %v2273 = vrcp.pop %v2272
        %v2274 = vmul.f32 %v2269, %v2273
        %v2275 = vpack.c.bf16 %v2274, %v2274
        %2276 = vrot.lane.b32.xlu0 %v1899, 48
        %v2277 = vpop.permute.xlu0 %2276
        %v2279 = vsel %vm966, %v2275, 0
        %v2282 = vsel %vm1030, %v2277, 0
        %2284 = vmatprep.subr.bf16.mxu0 0
        %2285 = vmatpush1.bf16.msra.mxu0 0
        %2286 = vmatprep.subr.bf16.mxu0 0
        %2287 = vmatpush1.bf16.msra.mxu0 0
        %2288 = vmatprep.subr.bf16.mxu0 0
        %2289 = vmatpush1.bf16.msra.mxu0 0
        %2290 = vmatprep.subr.bf16.mxu0 0
        %2291 = vmatpush1.bf16.msra.mxu0 0
        %2292 = vmatprep.subr.bf16.mxu0 0
        %2293 = vmatpush1.bf16.msra.mxu0 0
        %2294 = vmatprep.subr.bf16.mxu0 0
        %2295 = vmatpush1.bf16.msra.mxu0 0
        %2296 = vmatprep.subr.bf16.mxu0 0
        %2297 = vmatpush1.bf16.msra.mxu0 0
        %2298 = vmatprep.subr.bf16.mxu0 0
        %2299 = vmatpush1.bf16.msra.mxu0 %v2282
        %2300 = vmatprep.subr.bf16.mxu0 0
        %2301 = vmatpush2.bf16.msra.mxu0 0
        %2302 = vmatprep.subr.bf16.mxu0 0
        %2303 = vmatpush2.bf16.msra.mxu0 0
        %2304 = vmatprep.subr.bf16.mxu0 0
        %2305 = vmatpush2.bf16.msra.mxu0 0
        %2306 = vmatprep.subr.bf16.mxu0 0
        %2307 = vmatpush2.bf16.msra.mxu0 0
        %2308 = vmatprep.subr.bf16.mxu0 0
        %2309 = vmatpush2.bf16.msra.mxu0 0
        %2310 = vmatprep.subr.bf16.mxu0 0
        %2311 = vmatpush2.bf16.msra.mxu0 0
        %2312 = vmatprep.subr.bf16.mxu0 0
        %2313 = vmatpush2.bf16.msra.mxu0 0
        %2314 = vmatprep.subr.bf16.mxu0 0
        %2315 = vmatpush2.bf16.msra.mxu0 0
        %2316 = vmatprep.mubr.bf16.mxu0 0
        %2317 = vmatmul.mubr.bf16.gmra.mxu0 %v2279
        %v2318 = vpop.f32.mrf.mxu0
        %v2319 = vadd.f32 0.0, %v2318
        %v2320 = vpop.f32.mrf.mxu0
        %v2321 = vpop.f32.mrf.mxu0
        %v2322 = vpop.f32.mrf.mxu0
        %2323 = vdwg.mxu0
        %v2324 = vpack.c.bf16 %v2319, %v2319
        %v2326 = vsel %vm966, %v2324, 0
        %v2329 = vsel %vm1030, %v1895, 0
        %2331 = vmatprep.subr.bf16.mxu0 0
        %2332 = vmatpush1.bf16.msra.mxu0 0
        %2333 = vmatprep.subr.bf16.mxu0 0
        %2334 = vmatpush1.bf16.msra.mxu0 0
        %2335 = vmatprep.subr.bf16.mxu0 0
        %2336 = vmatpush1.bf16.msra.mxu0 0
        %2337 = vmatprep.subr.bf16.mxu0 0
        %2338 = vmatpush1.bf16.msra.mxu0 0
        %2339 = vmatprep.subr.bf16.mxu0 0
        %2340 = vmatpush1.bf16.msra.mxu0 0
        %2341 = vmatprep.subr.bf16.mxu0 0
        %2342 = vmatpush1.bf16.msra.mxu0 0
        %2343 = vmatprep.subr.bf16.mxu0 0
        %2344 = vmatpush1.bf16.msra.mxu0 0
        %2345 = vmatprep.subr.bf16.mxu0 0
        %2346 = vmatpush1.bf16.msra.mxu0 %v2329
        %2347 = vmatprep.subr.bf16.mxu0 0
        %2348 = vmatpush2.bf16.msra.mxu0 0
        %2349 = vmatprep.subr.bf16.mxu0 0
        %2350 = vmatpush2.bf16.msra.mxu0 0
        %2351 = vmatprep.subr.bf16.mxu0 0
        %2352 = vmatpush2.bf16.msra.mxu0 0
        %2353 = vmatprep.subr.bf16.mxu0 0
        %2354 = vmatpush2.bf16.msra.mxu0 0
        %2355 = vmatprep.subr.bf16.mxu0 0
        %2356 = vmatpush2.bf16.msra.mxu0 0
        %2357 = vmatprep.subr.bf16.mxu0 0
        %2358 = vmatpush2.bf16.msra.mxu0 0
        %2359 = vmatprep.subr.bf16.mxu0 0
        %2360 = vmatpush2.bf16.msra.mxu0 0
        %2361 = vmatprep.subr.bf16.mxu0 0
        %2362 = vmatpush2.bf16.msra.mxu0 0
        %2363 = vmatprep.mubr.bf16.mxu0 0
        %2364 = vmatmul.mubr.bf16.gmra.mxu0 %v2326
        %v2365 = vpop.f32.mrf.mxu0
        %v2366 = vadd.f32 0.0, %v2365
        %v2367 = vpop.f32.mrf.mxu0
        %v2368 = vpop.f32.mrf.mxu0
        %v2369 = vpop.f32.mrf.mxu0
        %2370 = vdwg.mxu0
        %v2371 = vadd.f32 %v2209, %v2366
        %2372 = vrot.lane.b32.xlu0 %v1898, 104
        %v2373 = vpop.permute.xlu0 %2372
        %2374 = vrot.lane.b32.xlu0 %v1899, 72
        %v2375 = vpop.permute.xlu0 %2374
        %v2377 = vsel %vm966, %v2373, 0
        %v2380 = vsel %vm966, %v2375, 0
        %2382 = vmatprep.subr.bf16.mxu0 0
        %2383 = vmatpush1.bf16.xpose.msra.mxu0 0
        %2384 = vmatprep.subr.bf16.mxu0 0
        %2385 = vmatpush1.bf16.xpose.msra.mxu0 0
        %2386 = vmatprep.subr.bf16.mxu0 0
        %2387 = vmatpush1.bf16.xpose.msra.mxu0 0
        %2388 = vmatprep.subr.bf16.mxu0 0
        %2389 = vmatpush1.bf16.xpose.msra.mxu0 0
        %2390 = vmatprep.subr.bf16.mxu0 0
        %2391 = vmatpush1.bf16.xpose.msra.mxu0 0
        %2392 = vmatprep.subr.bf16.mxu0 0
        %2393 = vmatpush1.bf16.xpose.msra.mxu0 0
        %2394 = vmatprep.subr.bf16.mxu0 0
        %2395 = vmatpush1.bf16.xpose.msra.mxu0 0
        %2396 = vmatprep.subr.bf16.mxu0 0
        %2397 = vmatpush1.bf16.xpose.msra.mxu0 %v2380
        %2398 = vmatprep.subr.bf16.mxu0 0
        %2399 = vmatpush2.bf16.xpose.msra.mxu0 0
        %2400 = vmatprep.subr.bf16.mxu0 0
        %2401 = vmatpush2.bf16.xpose.msra.mxu0 0
        %2402 = vmatprep.subr.bf16.mxu0 0
        %2403 = vmatpush2.bf16.xpose.msra.mxu0 0
        %2404 = vmatprep.subr.bf16.mxu0 0
        %2405 = vmatpush2.bf16.xpose.msra.mxu0 0
        %2406 = vmatprep.subr.bf16.mxu0 0
        %2407 = vmatpush2.bf16.xpose.msra.mxu0 0
        %2408 = vmatprep.subr.bf16.mxu0 0
        %2409 = vmatpush2.bf16.xpose.msra.mxu0 0
        %2410 = vmatprep.subr.bf16.mxu0 0
        %2411 = vmatpush2.bf16.xpose.msra.mxu0 0
        %2412 = vmatprep.subr.bf16.mxu0 0
        %2413 = vmatpush2.bf16.xpose.msra.mxu0 0
        %2414 = vmatprep.mubr.bf16.mxu0 0
        %2415 = vmatmul.mubr.bf16.gmra.mxu0 %v2377
        %v2416 = vpop.f32.mrf.mxu0
        %v2417 = vadd.f32 %v887, %v2416
        %v2418 = vpop.f32.mrf.mxu0
        %v2419 = vpop.f32.mrf.mxu0
        %v2420 = vpop.f32.mrf.mxu0
        %2421 = vdwg.mxu0
        %v2422 = vsel %vm966, %v2417, -inf
        %2423 = vmax.xlane.f32.xlu0 %v2422
        %v2424 = vpop.xlane.xlu0 %2423
        %v2425 = vsub.f32 %v2417, %v2424
        %v2426 = vmul.f32 %v2425, 1.442695
        %v2427 = vpow.pop %v2426
        %v2428 = vsel %vm966, %v2427, 0.0
        %2429 = vadd.xlane.f32.xlu0 %v2428
        %v2430 = vpop.xlane.xlu0 %2429
        %v2431 = vrcp.pop %v2430
        %v2432 = vmul.f32 %v2427, %v2431
        %v2433 = vpack.c.bf16 %v2432, %v2432
        %2434 = vrot.lane.b32.xlu0 %v1899, 40
        %v2435 = vpop.permute.xlu0 %2434
        %v2437 = vsel %vm966, %v2433, 0
        %v2440 = vsel %vm1030, %v2435, 0
        %2442 = vmatprep.subr.bf16.mxu0 0
        %2443 = vmatpush1.bf16.msra.mxu0 0
        %2444 = vmatprep.subr.bf16.mxu0 0
        %2445 = vmatpush1.bf16.msra.mxu0 0
        %2446 = vmatprep.subr.bf16.mxu0 0
        %2447 = vmatpush1.bf16.msra.mxu0 0
        %2448 = vmatprep.subr.bf16.mxu0 0
        %2449 = vmatpush1.bf16.msra.mxu0 0
        %2450 = vmatprep.subr.bf16.mxu0 0
        %2451 = vmatpush1.bf16.msra.mxu0 0
        %2452 = vmatprep.subr.bf16.mxu0 0
        %2453 = vmatpush1.bf16.msra.mxu0 0
        %2454 = vmatprep.subr.bf16.mxu0 0
        %2455 = vmatpush1.bf16.msra.mxu0 0
        %2456 = vmatprep.subr.bf16.mxu0 0
        %2457 = vmatpush1.bf16.msra.mxu0 %v2440
        %2458 = vmatprep.subr.bf16.mxu0 0
        %2459 = vmatpush2.bf16.msra.mxu0 0
        %2460 = vmatprep.subr.bf16.mxu0 0
        %2461 = vmatpush2.bf16.msra.mxu0 0
        %2462 = vmatprep.subr.bf16.mxu0 0
        %2463 = vmatpush2.bf16.msra.mxu0 0
        %2464 = vmatprep.subr.bf16.mxu0 0
        %2465 = vmatpush2.bf16.msra.mxu0 0
        %2466 = vmatprep.subr.bf16.mxu0 0
        %2467 = vmatpush2.bf16.msra.mxu0 0
        %2468 = vmatprep.subr.bf16.mxu0 0
        %2469 = vmatpush2.bf16.msra.mxu0 0
        %2470 = vmatprep.subr.bf16.mxu0 0
        %2471 = vmatpush2.bf16.msra.mxu0 0
        %2472 = vmatprep.subr.bf16.mxu0 0
        %2473 = vmatpush2.bf16.msra.mxu0 0
        %2474 = vmatprep.mubr.bf16.mxu0 0
        %2475 = vmatmul.mubr.bf16.gmra.mxu0 %v2437
        %v2476 = vpop.f32.mrf.mxu0
        %v2477 = vadd.f32 0.0, %v2476
        %v2478 = vpop.f32.mrf.mxu0
        %v2479 = vpop.f32.mrf.mxu0
        %v2480 = vpop.f32.mrf.mxu0
        %2481 = vdwg.mxu0
        %v2482 = vpack.c.bf16 %v2477, %v2477
        %v2484 = vsel %vm966, %v2482, 0
        %v2487 = vsel %vm1030, %v1896, 0
        %2489 = vmatprep.subr.bf16.mxu0 0
        %2490 = vmatpush1.bf16.msra.mxu0 0
        %2491 = vmatprep.subr.bf16.mxu0 0
        %2492 = vmatpush1.bf16.msra.mxu0 0
        %2493 = vmatprep.subr.bf16.mxu0 0
        %2494 = vmatpush1.bf16.msra.mxu0 0
        %2495 = vmatprep.subr.bf16.mxu0 0
        %2496 = vmatpush1.bf16.msra.mxu0 0
        %2497 = vmatprep.subr.bf16.mxu0 0
        %2498 = vmatpush1.bf16.msra.mxu0 0
        %2499 = vmatprep.subr.bf16.mxu0 0
        %2500 = vmatpush1.bf16.msra.mxu0 0
        %2501 = vmatprep.subr.bf16.mxu0 0
        %2502 = vmatpush1.bf16.msra.mxu0 0
        %2503 = vmatprep.subr.bf16.mxu0 0
        %2504 = vmatpush1.bf16.msra.mxu0 %v2487
        %2505 = vmatprep.subr.bf16.mxu0 0
        %2506 = vmatpush2.bf16.msra.mxu0 0
        %2507 = vmatprep.subr.bf16.mxu0 0
        %2508 = vmatpush2.bf16.msra.mxu0 0
        %2509 = vmatprep.subr.bf16.mxu0 0
        %2510 = vmatpush2.bf16.msra.mxu0 0
        %2511 = vmatprep.subr.bf16.mxu0 0
        %2512 = vmatpush2.bf16.msra.mxu0 0
        %2513 = vmatprep.subr.bf16.mxu0 0
        %2514 = vmatpush2.bf16.msra.mxu0 0
        %2515 = vmatprep.subr.bf16.mxu0 0
        %2516 = vmatpush2.bf16.msra.mxu0 0
        %2517 = vmatprep.subr.bf16.mxu0 0
        %2518 = vmatpush2.bf16.msra.mxu0 0
        %2519 = vmatprep.subr.bf16.mxu0 0
        %2520 = vmatpush2.bf16.msra.mxu0 0
        %2521 = vmatprep.mubr.bf16.mxu0 0
        %2522 = vmatmul.mubr.bf16.gmra.mxu0 %v2484
        %v2523 = vpop.f32.mrf.mxu0
        %v2524 = vadd.f32 0.0, %v2523
        %v2525 = vpop.f32.mrf.mxu0
        %v2526 = vpop.f32.mrf.mxu0
        %v2527 = vpop.f32.mrf.mxu0
        %2528 = vdwg.mxu0
        %v2529 = vadd.f32 %v2371, %v2524
        %s2530 = scalar_lea.vmem %s9, 1
        %v2531 = vld [vmem:[%s2530] sm:$0x1]
        %v2533 = vlaneseq
        %v2534 = vshrl.u32 %v2533, 7
        %v2535 = vsub.s32 0, %v2534
        %v2536 = vrot.slane %v2531, %v2535
        %v2538 = vadd.f32 %v2529, %v2536
        %v2539 = vadd.f32 %v2538, %v1822
        %s2540 = scalar_lea.vmem %s10, 1
        %v2541 = vld [vmem:[%s2540] sm:$0x1]
        %s2542 = scalar_lea.vmem %s11, 1
        %v2543 = vld [vmem:[%s2542] sm:$0x1]
        %v2544 = vsel %vm853, %v2539, 0.0
        %2545 = vadd.xlane.f32.xlu0 %v2544
        %v2546 = vpop.xlane.xlu0 %2545
        %v2547 = vmul.f32 %v2546, %v857
        %v2548 = vsub.f32 %v2539, %v2547
        %v2549 = vmul.f32 %v2548, %v2548
        %v2550 = vsel %vm853, %v2549, 0.0
        %2551 = vadd.xlane.f32.xlu0 %v2550
        %v2552 = vpop.xlane.xlu0 %2551
        %v2553 = vmul.f32 %v2552, %v857
        %v2554 = vadd.f32 %v2553, 1e-12
        %v2555 = vrsqrt.pop %v2554
        %v2556 = vmul.f32 %v2548, %v2555
        %v2558 = vlaneseq
        %v2559 = vshrl.u32 %v2558, 7
        %v2560 = vsub.s32 0, %v2559
        %v2561 = vrot.slane %v2541, %v2560
        %v2563 = vmul.f32 %v2556, %v2561
        %v2565 = vlaneseq
        %v2566 = vshrl.u32 %v2565, 7
        %v2567 = vsub.s32 0, %v2566
        %v2568 = vrot.slane %v2543, %v2567
        %v2570 = vadd.f32 %v2563, %v2568
        %s2571 = scalar_lea.vmem %s12, 16
        %v2572 = vld [vmem:[%s2571] sm:$0xf]
        %v2573 = vld [vmem:[%s2571 + $0x4] sm:$0xf]
        %v2574 = vld [vmem:[%s2571 + $0x8] sm:$0xf]
        %v2575 = vld [vmem:[%s2571 + $0xc] sm:$0xf]
        %v2576 = vpack.c.bf16 %v2570, %v2570
        %s2577 = scalar_lea.vmem %s13, 1
        %v2578 = vld [vmem:[%s2577] sm:$0x1]
        %v2580 = vlaneseq
        %v2581 = vshrl.u32 %v2580, 7
        %v2582 = vsub.s32 0, %v2581
        %v2583 = vrot.slane %v2578, %v2582
        %v2589 = vunpack.c.l.b16 %v2572
        %v2590 = vunpack.c.l.b16 %v2573
        %v2591 = vunpack.c.l.b16 %v2574
        %v2592 = vunpack.c.l.b16 %v2575
        %v2593 = vpack.c.b16 %v2590, %v2589
        %v2594 = vpack.c.b16 %v2592, %v2591
        %v2598 = vsel %vm853, %v2576, 0
        %2600 = vmatprep.subr.bf16.mxu0 0
        %2601 = vmatpush1.bf16.msra.mxu0 0
        %2602 = vmatprep.subr.bf16.mxu0 0
        %2603 = vmatpush1.bf16.msra.mxu0 0
        %2604 = vmatprep.subr.bf16.mxu0 0
        %2605 = vmatpush1.bf16.msra.mxu0 0
        %2606 = vmatprep.subr.bf16.mxu0 0
        %2607 = vmatpush1.bf16.msra.mxu0 0
        %2608 = vmatprep.subr.bf16.mxu0 0
        %2609 = vmatpush1.bf16.msra.mxu0 0
        %2610 = vmatprep.subr.bf16.mxu0 0
        %2611 = vmatpush1.bf16.msra.mxu0 0
        %2612 = vmatprep.subr.bf16.mxu0 0
        %2613 = vmatpush1.bf16.msra.mxu0 %v2594
        %2614 = vmatprep.subr.bf16.mxu0 0
        %2615 = vmatpush1.bf16.msra.mxu0 %v2593
        %2616 = vmatprep.subr.bf16.mxu0 0
        %2617 = vmatpush2.bf16.msra.mxu0 0
        %2618 = vmatprep.subr.bf16.mxu0 0
        %2619 = vmatpush2.bf16.msra.mxu0 0
        %2620 = vmatprep.subr.bf16.mxu0 0
        %2621 = vmatpush2.bf16.msra.mxu0 0
        %2622 = vmatprep.subr.bf16.mxu0 0
        %2623 = vmatpush2.bf16.msra.mxu0 0
        %2624 = vmatprep.subr.bf16.mxu0 0
        %2625 = vmatpush2.bf16.msra.mxu0 0
        %2626 = vmatprep.subr.bf16.mxu0 0
        %2627 = vmatpush2.bf16.msra.mxu0 0
        %2628 = vmatprep.subr.bf16.mxu0 0
        %2629 = vmatpush2.bf16.msra.mxu0 0
        %2630 = vmatprep.subr.bf16.mxu0 0
        %2631 = vmatpush2.bf16.msra.mxu0 0
        %2632 = vmatprep.mubr.bf16.mxu0 0
        %2633 = vmatmul.mubr.bf16.gmra.mxu0 %v2598
        %v2634 = vpop.f32.mrf.mxu0
        %v2635 = vadd.f32 %v2583, %v2634
        %v2636 = vpop.f32.mrf.mxu0
        %v2637 = vpop.f32.mrf.mxu0
        %v2638 = vpop.f32.mrf.mxu0
        %2639 = vdwg.mxu0
        %v2640 = vmul.f32 %v2635, 0.5
        %v2641 = vmul.f32 %v2635, 0.044715
        %v2642 = vmul.f32 %v2641, %v2635
        %v2643 = vmul.f32 %v2642, %v2635
        %v2644 = vadd.f32 %v2635, %v2643
        %v2645 = vmul.f32 %v2644, 0.7978846
        %v2646 = vtanh.pop %v2645
        %v2647 = vadd.f32 %v2646, 1.0
        %v2648 = vmul.f32 %v2640, %v2647
        %s2649 = scalar_lea.vmem %s14, 32
        %v2650 = vld [vmem:[%s2649] sm:$0xf]
        %v2651 = vld [vmem:[%s2649 + $0x4] sm:$0xf]
        %v2652 = vld [vmem:[%s2649 + $0x8] sm:$0xf]
        %v2653 = vld [vmem:[%s2649 + $0xc] sm:$0xf]
        %v2654 = vld [vmem:[%s2649 + $0x10] sm:$0xf]
        %v2655 = vld [vmem:[%s2649 + $0x14] sm:$0xf]
        %v2656 = vld [vmem:[%s2649 + $0x18] sm:$0xf]
        %v2657 = vld [vmem:[%s2649 + $0x1c] sm:$0xf]
        %v2658 = vpack.c.bf16 %v2648, %v2648
        %s2659 = scalar_lea.vmem %s15, 1
        %v2660 = vld [vmem:[%s2659] sm:$0x1]
        %v2662 = vlaneseq
        %v2663 = vshrl.u32 %v2662, 7
        %v2664 = vsub.s32 0, %v2663
        %v2665 = vrot.slane %v2660, %v2664
        %v2675 = vunpack.c.l.b16 %v2650
        %v2676 = vunpack.c.l.b16 %v2651
        %v2677 = vunpack.c.l.b16 %v2652
        %v2678 = vunpack.c.l.b16 %v2653
        %v2679 = vunpack.c.l.b16 %v2654
        %v2680 = vunpack.c.l.b16 %v2655
        %v2681 = vunpack.c.l.b16 %v2656
        %v2682 = vunpack.c.l.b16 %v2657
        %v2683 = vpack.c.b16 %v2676, %v2675
        %v2684 = vpack.c.b16 %v2678, %v2677
        %v2685 = vpack.c.b16 %v2680, %v2679
        %v2686 = vpack.c.b16 %v2682, %v2681
        %v2692 = vsel %vm1749, %v2658, 0
        %2694 = vmatprep.subr.bf16.mxu0 0
        %2695 = vmatpush1.bf16.msra.mxu0 0
        %2696 = vmatprep.subr.bf16.mxu0 0
        %2697 = vmatpush1.bf16.msra.mxu0 0
        %2698 = vmatprep.subr.bf16.mxu0 0
        %2699 = vmatpush1.bf16.msra.mxu0 0
        %2700 = vmatprep.subr.bf16.mxu0 0
        %2701 = vmatpush1.bf16.msra.mxu0 0
        %2702 = vmatprep.subr.bf16.mxu0 0
        %2703 = vmatpush1.bf16.msra.mxu0 %v2686
        %2704 = vmatprep.subr.bf16.mxu0 0
        %2705 = vmatpush1.bf16.msra.mxu0 %v2685
        %2706 = vmatprep.subr.bf16.mxu0 0
        %2707 = vmatpush1.bf16.msra.mxu0 %v2684
        %2708 = vmatprep.subr.bf16.mxu0 0
        %2709 = vmatpush1.bf16.msra.mxu0 %v2683
        %2710 = vmatprep.subr.bf16.mxu0 0
        %2711 = vmatpush2.bf16.msra.mxu0 0
        %2712 = vmatprep.subr.bf16.mxu0 0
        %2713 = vmatpush2.bf16.msra.mxu0 0
        %2714 = vmatprep.subr.bf16.mxu0 0
        %2715 = vmatpush2.bf16.msra.mxu0 0
        %2716 = vmatprep.subr.bf16.mxu0 0
        %2717 = vmatpush2.bf16.msra.mxu0 0
        %2718 = vmatprep.subr.bf16.mxu0 0
        %2719 = vmatpush2.bf16.msra.mxu0 0
        %2720 = vmatprep.subr.bf16.mxu0 0
        %2721 = vmatpush2.bf16.msra.mxu0 0
        %2722 = vmatprep.subr.bf16.mxu0 0
        %2723 = vmatpush2.bf16.msra.mxu0 0
        %2724 = vmatprep.subr.bf16.mxu0 0
        %2725 = vmatpush2.bf16.msra.mxu0 0
        %2726 = vmatprep.mubr.bf16.mxu0 0
        %2727 = vmatmul.mubr.bf16.gmra.mxu0 %v2692
        %v2728 = vpop.f32.mrf.mxu0
        %v2729 = vadd.f32 %v2665, %v2728
        %v2730 = vpop.f32.mrf.mxu0
        %v2731 = vpop.f32.mrf.mxu0
        %v2732 = vpop.f32.mrf.mxu0
        %2733 = vdwg.mxu0
        %v2734 = vadd.f32 %v2729, %v2570
        %s2735 = scalar_lea.vmem %s16, 1
        %v2736 = vld [vmem:[%s2735] sm:$0x1]
        %s2737 = scalar_lea.vmem %s17, 1
        %v2738 = vld [vmem:[%s2737] sm:$0x1]
        %v2739 = vsel %vm853, %v2734, 0.0
        %2740 = vadd.xlane.f32.xlu0 %v2739
        %v2741 = vpop.xlane.xlu0 %2740
        %v2742 = vmul.f32 %v2741, %v857
        %v2743 = vsub.f32 %v2734, %v2742
        %v2744 = vmul.f32 %v2743, %v2743
        %v2745 = vsel %vm853, %v2744, 0.0
        %2746 = vadd.xlane.f32.xlu0 %v2745
        %v2747 = vpop.xlane.xlu0 %2746
        %v2748 = vmul.f32 %v2747, %v857
        %v2749 = vadd.f32 %v2748, 1e-12
        %v2750 = vrsqrt.pop %v2749
        %v2751 = vmul.f32 %v2743, %v2750
        %v2753 = vlaneseq
        %v2754 = vshrl.u32 %v2753, 7
        %v2755 = vsub.s32 0, %v2754
        %v2756 = vrot.slane %v2736, %v2755
        %v2758 = vmul.f32 %v2751, %v2756
        %v2760 = vlaneseq
        %v2761 = vshrl.u32 %v2760, 7
        %v2762 = vsub.s32 0, %v2761
        %v2763 = vrot.slane %v2738, %v2762
        %v2765 = vadd.f32 %v2758, %v2763
        %v2766 = vsub.f32 %v2765, %v881
        %v2767 = vld [vmem:[%s18] sm:$0xf]
        %v2768 = vld [vmem:[%s18 + $0x4] sm:$0xf]
        %v2769 = vld [vmem:[%s18 + $0x8] sm:$0xf]
        %v2770 = vld [vmem:[%s18 + $0xc] sm:$0xf]
        %v2771 = vpack.c.bf16 %v2766, %v2766
        %v2772 = vld [vmem:[%s19] sm:$0xf]
        %v2773 = vld [vmem:[%s19 + $0x4] sm:$0xf]
        %v2774 = vld [vmem:[%s19 + $0x8] sm:$0xf]
        %v2775 = vld [vmem:[%s19 + $0xc] sm:$0xf]
        %v2776 = vpack.c.bf16 %v2765, %v2765
        %v2781 = vunpack.c.l.b16 %v2772
        %v2782 = vunpack.c.l.b16 %v2773
        %v2783 = vunpack.c.l.b16 %v2774
        %v2784 = vunpack.c.l.b16 %v2775
        %v2785 = vpack.c.b16 %v2782, %v2781
        %v2786 = vpack.c.b16 %v2784, %v2783
        %v2790 = vsel %vm853, %v2776, 0
        %2792 = vmatprep.subr.bf16.mxu0 0
        %2793 = vmatpush1.bf16.msra.mxu0 0
        %2794 = vmatprep.subr.bf16.mxu0 0
        %2795 = vmatpush1.bf16.msra.mxu0 0
        %2796 = vmatprep.subr.bf16.mxu0 0
        %2797 = vmatpush1.bf16.msra.mxu0 0
        %2798 = vmatprep.subr.bf16.mxu0 0
        %2799 = vmatpush1.bf16.msra.mxu0 0
        %2800 = vmatprep.subr.bf16.mxu0 0
        %2801 = vmatpush1.bf16.msra.mxu0 0
        %2802 = vmatprep.subr.bf16.mxu0 0
        %2803 = vmatpush1.bf16.msra.mxu0 0
        %2804 = vmatprep.subr.bf16.mxu0 0
        %2805 = vmatpush1.bf16.msra.mxu0 %v2786
        %2806 = vmatprep.subr.bf16.mxu0 0
        %2807 = vmatpush1.bf16.msra.mxu0 %v2785
        %2808 = vmatprep.subr.bf16.mxu0 0
        %2809 = vmatpush2.bf16.msra.mxu0 0
        %2810 = vmatprep.subr.bf16.mxu0 0
        %2811 = vmatpush2.bf16.msra.mxu0 0
        %2812 = vmatprep.subr.bf16.mxu0 0
        %2813 = vmatpush2.bf16.msra.mxu0 0
        %2814 = vmatprep.subr.bf16.mxu0 0
        %2815 = vmatpush2.bf16.msra.mxu0 0
        %2816 = vmatprep.subr.bf16.mxu0 0
        %2817 = vmatpush2.bf16.msra.mxu0 0
        %2818 = vmatprep.subr.bf16.mxu0 0
        %2819 = vmatpush2.bf16.msra.mxu0 0
        %2820 = vmatprep.subr.bf16.mxu0 0
        %2821 = vmatpush2.bf16.msra.mxu0 0
        %2822 = vmatprep.subr.bf16.mxu0 0
        %2823 = vmatpush2.bf16.msra.mxu0 0
        %2824 = vmatprep.mubr.bf16.mxu0 0
        %2825 = vmatmul.mubr.bf16.gmra.mxu0 %v2790
        %v2826 = vpop.f32.mrf.mxu0
        %v2827 = vadd.f32 0.0, %v2826
        %v2828 = vpop.f32.mrf.mxu0
        %v2829 = vpop.f32.mrf.mxu0
        %v2830 = vpop.f32.mrf.mxu0
        %2831 = vdwg.mxu0
        %v2836 = vunpack.c.l.b16 %v2767
        %v2837 = vunpack.c.l.b16 %v2768
        %v2838 = vunpack.c.l.b16 %v2769
        %v2839 = vunpack.c.l.b16 %v2770
        %v2840 = vpack.c.b16 %v2837, %v2836
        %v2841 = vpack.c.b16 %v2839, %v2838
        %v2845 = vsel %vm853, %v2771, 0
        %2847 = vmatprep.subr.bf16.mxu0 0
        %2848 = vmatpush1.bf16.msra.mxu0 0
        %2849 = vmatprep.subr.bf16.mxu0 0
        %2850 = vmatpush1.bf16.msra.mxu0 0
        %2851 = vmatprep.subr.bf16.mxu0 0
        %2852 = vmatpush1.bf16.msra.mxu0 0
        %2853 = vmatprep.subr.bf16.mxu0 0
        %2854 = vmatpush1.bf16.msra.mxu0 0
        %2855 = vmatprep.subr.bf16.mxu0 0
        %2856 = vmatpush1.bf16.msra.mxu0 0
        %2857 = vmatprep.subr.bf16.mxu0 0
        %2858 = vmatpush1.bf16.msra.mxu0 0
        %2859 = vmatprep.subr.bf16.mxu0 0
        %2860 = vmatpush1.bf16.msra.mxu0 %v2841
        %2861 = vmatprep.subr.bf16.mxu0 0
        %2862 = vmatpush1.bf16.msra.mxu0 %v2840
        %2863 = vmatprep.subr.bf16.mxu0 0
        %2864 = vmatpush2.bf16.msra.mxu0 0
        %2865 = vmatprep.subr.bf16.mxu0 0
        %2866 = vmatpush2.bf16.msra.mxu0 0
        %2867 = vmatprep.subr.bf16.mxu0 0
        %2868 = vmatpush2.bf16.msra.mxu0 0
        %2869 = vmatprep.subr.bf16.mxu0 0
        %2870 = vmatpush2.bf16.msra.mxu0 0
        %2871 = vmatprep.subr.bf16.mxu0 0
        %2872 = vmatpush2.bf16.msra.mxu0 0
        %2873 = vmatprep.subr.bf16.mxu0 0
        %2874 = vmatpush2.bf16.msra.mxu0 0
        %2875 = vmatprep.subr.bf16.mxu0 0
        %2876 = vmatpush2.bf16.msra.mxu0 0
        %2877 = vmatprep.subr.bf16.mxu0 0
        %2878 = vmatpush2.bf16.msra.mxu0 0
        %2879 = vmatprep.mubr.bf16.mxu0 0
        %2880 = vmatmul.mubr.bf16.gmra.mxu0 %v2845
        %v2881 = vpop.f32.mrf.mxu0
        %v2882 = vadd.f32 %v2827, %v2881
        %v2883 = vpop.f32.mrf.mxu0
        %v2884 = vpop.f32.mrf.mxu0
        %v2885 = vpop.f32.mrf.mxu0
        %2886 = vdwg.mxu0
        %v2887 = vld [vmem:[%s20] sm:$0x1]
        %v2889 = vlaneseq
        %v2890 = vshrl.u32 %v2889, 7
        %v2891 = vsub.s32 0, %v2890
        %v2892 = vrot.slane %v2887, %v2891
        %v2894 = vadd.f32 %v2882, %v2892
        %v2895 = vld [vmem:[%s21] sm:$0xf]
        %v2896 = vld [vmem:[%s21 + $0x4] sm:$0xf]
        %v2897 = vld [vmem:[%s21 + $0x8] sm:$0xf]
        %v2898 = vld [vmem:[%s21 + $0xc] sm:$0xf]
        %v2899 = vpack.c.bf16 %v2894, %v2894
        %v2900 = vld [vmem:[%s22] sm:$0x1]
        %v2902 = vlaneseq
        %v2903 = vshrl.u32 %v2902, 7
        %v2904 = vsub.s32 0, %v2903
        %v2905 = vrot.slane %v2900, %v2904
        %v2911 = vunpack.c.l.b16 %v2895
        %v2912 = vunpack.c.l.b16 %v2896
        %v2913 = vunpack.c.l.b16 %v2897
        %v2914 = vunpack.c.l.b16 %v2898
        %v2915 = vpack.c.b16 %v2912, %v2911
        %v2916 = vpack.c.b16 %v2914, %v2913
        %v2920 = vsel %vm853, %v2899, 0
        %2922 = vmatprep.subr.bf16.mxu0 0
        %2923 = vmatpush1.bf16.msra.mxu0 0
        %2924 = vmatprep.subr.bf16.mxu0 0
        %2925 = vmatpush1.bf16.msra.mxu0 0
        %2926 = vmatprep.subr.bf16.mxu0 0
        %2927 = vmatpush1.bf16.msra.mxu0 0
        %2928 = vmatprep.subr.bf16.mxu0 0
        %2929 = vmatpush1.bf16.msra.mxu0 0
        %2930 = vmatprep.subr.bf16.mxu0 0
        %2931 = vmatpush1.bf16.msra.mxu0 0
        %2932 = vmatprep.subr.bf16.mxu0 0
        %2933 = vmatpush1.bf16.msra.mxu0 0
        %2934 = vmatprep.subr.bf16.mxu0 0
        %2935 = vmatpush1.bf16.msra.mxu0 %v2916
        %2936 = vmatprep.subr.bf16.mxu0 0
        %2937 = vmatpush1.bf16.msra.mxu0 %v2915
        %2938 = vmatprep.subr.bf16.mxu0 0
        %2939 = vmatpush2.bf16.msra.mxu0 0
        %2940 = vmatprep.subr.bf16.mxu0 0
        %2941 = vmatpush2.bf16.msra.mxu0 0
        %2942 = vmatprep.subr.bf16.mxu0 0
        %2943 = vmatpush2.bf16.msra.mxu0 0
        %2944 = vmatprep.subr.bf16.mxu0 0
        %2945 = vmatpush2.bf16.msra.mxu0 0
        %2946 = vmatprep.subr.bf16.mxu0 0
        %2947 = vmatpush2.bf16.msra.mxu0 0
        %2948 = vmatprep.subr.bf16.mxu0 0
        %2949 = vmatpush2.bf16.msra.mxu0 0
        %2950 = vmatprep.subr.bf16.mxu0 0
        %2951 = vmatpush2.bf16.msra.mxu0 0
        %2952 = vmatprep.subr.bf16.mxu0 0
        %2953 = vmatpush2.bf16.msra.mxu0 0
        %2954 = vmatprep.mubr.bf16.mxu0 0
        %2955 = vmatmul.mubr.bf16.gmra.mxu0 %v2920
        %v2956 = vpop.f32.mrf.mxu0
        %v2957 = vadd.f32 %v2905, %v2956
        %v2958 = vpop.f32.mrf.mxu0
        %v2959 = vpop.f32.mrf.mxu0
        %v2960 = vpop.f32.mrf.mxu0
        %2961 = vdwg.mxu0
        %v2962 = vmul.f32 %v2957, 0.5
        %v2963 = vmul.f32 %v2957, 0.044715
        %v2964 = vmul.f32 %v2963, %v2957
        %v2965 = vmul.f32 %v2964, %v2957
        %v2966 = vadd.f32 %v2957, %v2965
        %v2967 = vmul.f32 %v2966, 0.7978846
        %v2968 = vtanh.pop %v2967
        %v2969 = vadd.f32 %v2968, 1.0
        %v2970 = vmul.f32 %v2962, %v2969
        %v2971 = vld [vmem:[%s23] sm:$0x1]
        %v2972 = vld [vmem:[%s24] sm:$0x1]
        %v2973 = vsel %vm853, %v2970, 0.0
        %2974 = vadd.xlane.f32.xlu0 %v2973
        %v2975 = vpop.xlane.xlu0 %2974
        %v2976 = vmul.f32 %v2975, %v857
        %v2977 = vsub.f32 %v2970, %v2976
        %v2978 = vmul.f32 %v2977, %v2977
        %v2979 = vsel %vm853, %v2978, 0.0
        %2980 = vadd.xlane.f32.xlu0 %v2979
        %v2981 = vpop.xlane.xlu0 %2980
        %v2982 = vmul.f32 %v2981, %v857
        %v2983 = vadd.f32 %v2982, 1e-12
        %v2984 = vrsqrt.pop %v2983
        %v2985 = vmul.f32 %v2977, %v2984
        %v2987 = vlaneseq
        %v2988 = vshrl.u32 %v2987, 7
        %v2989 = vsub.s32 0, %v2988
        %v2990 = vrot.slane %v2971, %v2989
        %v2992 = vmul.f32 %v2985, %v2990
        %v2994 = vlaneseq
        %v2995 = vshrl.u32 %v2994, 7
        %v2996 = vsub.s32 0, %v2995
        %v2997 = vrot.slane %v2972, %v2996
        %v2999 = vadd.f32 %v2992, %v2997
        %v3000 = vld [vmem:[%s25] sm:$0xf]
        %v3001 = vld [vmem:[%s25 + $0x4] sm:$0xf]
        %v3002 = vld [vmem:[%s25 + $0x8] sm:$0xf]
        %v3003 = vld [vmem:[%s25 + $0xc] sm:$0xf]
        %v3004 = vpack.c.bf16 %v2999, %v2999
        %v3005 = vld [vmem:[%s26] sm:$0x1]
        %v3007 = vlaneseq
        %v3008 = vshrl.u32 %v3007, 7
        %v3009 = vsub.s32 0, %v3008
        %v3010 = vrot.slane %v3005, %v3009
        %v3016 = vunpack.c.l.b16 %v3000
        %v3017 = vunpack.c.l.b16 %v3001
        %v3018 = vunpack.c.l.b16 %v3002
        %v3019 = vunpack.c.l.b16 %v3003
        %v3020 = vpack.c.b16 %v3017, %v3016
        %v3021 = vpack.c.b16 %v3019, %v3018
        %v3025 = vsel %vm853, %v3004, 0
        %3027 = vmatprep.subr.bf16.mxu0 0
        %3028 = vmatpush1.bf16.msra.mxu0 0
        %3029 = vmatprep.subr.bf16.mxu0 0
        %3030 = vmatpush1.bf16.msra.mxu0 0
        %3031 = vmatprep.subr.bf16.mxu0 0
        %3032 = vmatpush1.bf16.msra.mxu0 0
        %3033 = vmatprep.subr.bf16.mxu0 0
        %3034 = vmatpush1.bf16.msra.mxu0 0
        %3035 = vmatprep.subr.bf16.mxu0 0
        %3036 = vmatpush1.bf16.msra.mxu0 0
        %3037 = vmatprep.subr.bf16.mxu0 0
        %3038 = vmatpush1.bf16.msra.mxu0 0
        %3039 = vmatprep.subr.bf16.mxu0 0
        %3040 = vmatpush1.bf16.msra.mxu0 %v3021
        %3041 = vmatprep.subr.bf16.mxu0 0
        %3042 = vmatpush1.bf16.msra.mxu0 %v3020
        %3043 = vmatprep.subr.bf16.mxu0 0
        %3044 = vmatpush2.bf16.msra.mxu0 0
        %3045 = vmatprep.subr.bf16.mxu0 0
        %3046 = vmatpush2.bf16.msra.mxu0 0
        %3047 = vmatprep.subr.bf16.mxu0 0
        %3048 = vmatpush2.bf16.msra.mxu0 0
        %3049 = vmatprep.subr.bf16.mxu0 0
        %3050 = vmatpush2.bf16.msra.mxu0 0
        %3051 = vmatprep.subr.bf16.mxu0 0
        %3052 = vmatpush2.bf16.msra.mxu0 0
        %3053 = vmatprep.subr.bf16.mxu0 0
        %3054 = vmatpush2.bf16.msra.mxu0 0
        %3055 = vmatprep.subr.bf16.mxu0 0
        %3056 = vmatpush2.bf16.msra.mxu0 0
        %3057 = vmatprep.subr.bf16.mxu0 0
        %3058 = vmatpush2.bf16.msra.mxu0 0
        %3059 = vmatprep.mubr.bf16.mxu0 0
        %3060 = vmatmul.mubr.bf16.gmra.mxu0 %v3025
        %v3061 = vpop.f32.mrf.mxu0
        %v3062 = vadd.f32 %v3010, %v3061
        %v3063 = vpop.f32.mrf.mxu0
        %v3064 = vpop.f32.mrf.mxu0
        %v3065 = vpop.f32.mrf.mxu0
        %3066 = vdwg.mxu0
        %3067 = vst [vmem:[%s833] sm:$0xff] %v3062
        %s3068 = sand.u32 %s631, 1
        %s3069 = scalar_lea.sflag [#allocation3], %s3068
        %s3070 = sand.u32 %s631, 1
        %s3071 = smul.addr %s3070, 8
        %s3072 = scalar_lea.vmem [#allocation2], %s3071
        // Predicated region
        $region129: #{masked_lm_forward.1} parent=127 // pred_check
          %p3073 = pneg %p641
        $region130: #{masked_lm_forward.1} parent=127 // pred_check_branch
          %3075 = sbr.rel (%p3073) target = $region132
        $region131: #{masked_lm_forward.1} parent=127 // pred_region
          %s3077 = ssub.s32 128, 128
          %3078 = vsyncadd %s3069, %s3077
          %s3079 = smul.addr %s41, 128
          %s3080 = scalar_lea.hbm %s27, %s3079
          %s3082 = sshll.u32 %s3072, 4
          %s3083 = int_to_ptr.vmem [resolvable:$true] %s3082
          %3085 = dma.vmem_to_hbm [thread:$0]  %s3083, 128, %s3080, %s3069
        $region132: #{masked_lm_forward.1} parent=127 // pred_fallthru
          _
      $region128: #{masked_lm_forward.1} parent=5 // pred_fallthru
        _
      %p3086 = scmp.le.s32.totalorder 2, %s36
      // Predicated region
      $region133: #{masked_lm_forward.1} parent=5 // pred_check
        %p3087 = pneg %p3086
      $region134: #{masked_lm_forward.1} parent=5 // pred_check_branch
        %3089 = sbr.rel (%p3087) target = $region136
      $region135: #{masked_lm_forward.1} parent=5 // pred_region
        %s3090 = ssub.s32 %s36, 2
        // Predicated region
        $region137: #{masked_lm_forward.1} parent=135 // pred_check
          %p3091 = pneg %p647
        $region138: #{masked_lm_forward.1} parent=135 // pred_check_branch
          %3093 = sbr.rel (%p3091) target = $region140
        $region139: #{masked_lm_forward.1} parent=135 // pred_region
          %s3094 = sand.u32 %s632, 1
          %s3095 = scalar_lea.sflag [#allocation3], %s3094
          %s3096 = sand.u32 %s632, 1
          %s3097 = smul.addr %s3096, 8
          %s3098 = scalar_lea.vmem [#allocation2], %s3097
          %3099 = dma.done %s3095, 128
        $region140: #{masked_lm_forward.1} parent=135 // pred_fallthru
          _
      $region136: #{masked_lm_forward.1} parent=5 // pred_fallthru
        _
    $region6: #{masked_lm_forward.1} parent=1 // loop_footer
      %s40 = sadd.s32 1, %s36
    $region7: #{masked_lm_forward.1} parent=1 // loop_footer_branch
      %35 = sbr.rel target = $region3
    $region8: #{masked_lm_forward.1} parent=1 // loop_exit
      _
    %3100 = vsyncpa [#allocation3], 1
    %s3101 = scalar_lea.sflag [#allocation3], 1
    %3102 = vsyncpa %s3101, 1

</llo_original>
